<compile_context>
chip_gen: v7x
topology: tpu7x:2x2x1
jax: 0.10.0
libtpu: 0.0.40
codegen_flags: <defaults>
</compile_context>

<pallas_src>
import functools
import math

import jax
import jax.numpy as jnp
from jax.experimental import pallas as pl
from jax.experimental.pallas import tpu as pltpu


def _binconv_kernel(x_ref, w_ref, o_ref, *, taps, stride, row_tile, ow):
    # x_ref: (1, Hp, Wp, C) bf16 -- mean-centered, zero-padded NHWC image
    #        (same block for every row tile of this image -> fetched once per n).
    # w_ref: (KH*KW, C, Cout) bf16 -- conv weights with BN 1/std folded in.
    # o_ref: (1, Cout, row_tile*OW) f32 -- lane-dense, NCHW-flat output tile.
    r = pl.program_id(1)                       # output-row tile index
    m = row_tile * ow
    cout = w_ref.shape[-1]

    acc = jnp.zeros((m, cout), jnp.float32)
    for t, (kh, kw) in enumerate(taps):        # in-kernel im2col: KH*KW shifted
        h0 = r * (row_tile * stride) + kh      # slices, accumulated MXU matmuls
        if stride == 1:
            rows = pl.ds(h0, row_tile)
            cols = pl.ds(kw, ow)
        else:
            rows = pl.ds(h0, row_tile, stride)
            cols = pl.ds(kw, ow, stride)
        lhs = x_ref[0, rows, cols, :]          # (row_tile, OW, C) bf16
        lhs = lhs.reshape(m, lhs.shape[-1])    # (row_tile*OW, C); free if OW%8==0
        acc = acc + jnp.dot(lhs, w_ref[t], preferred_element_type=jnp.float32)

    y = jnp.maximum(acc, 0.0)                  # fused ReLU
    o_ref[0] = y.T.astype(o_ref.dtype)         # (Cout, row_tile*OW): lane dim is
                                               # a multiple of 128 -> unmasked vst


def bin_conv2d(x_nchw, weight, *, stride=1, padding=0, eps=1e-5,
               row_tile=None, compute_dtype=jnp.bfloat16):
    """BatchNorm2d(affine=False, batch stats) -> Conv2d(bias=False) -> ReLU."""
    N, C, H, W = x_nchw.shape
    Cout, Cin, KH, KW = weight.shape
    assert Cin == C
    OH = (H + 2 * padding - KH) // stride + 1
    OW = (W + 2 * padding - KW) // stride + 1
    Hp, Wp = H + 2 * padding, W + 2 * padding

    x32 = x_nchw.astype(jnp.float32)

    # Training-mode BatchNorm statistics (biased variance over N, H, W): tiny
    # reduction, done in plain JAX glue.
    # TODO(synk): running_mean/running_var buffer updates (module side effects)
    # are not reproduced; forward output does not depend on them in train mode.
    mean = jnp.mean(x32, axis=(0, 2, 3))
    var = jnp.mean(jnp.square(x32 - mean[None, :, None, None]), axis=(0, 2, 3))
    inv_std = jax.lax.rsqrt(var + eps)

    # Fold BN: 1/std goes into the weights (per input channel); the mean is
    # subtracted from the raw input BEFORE zero padding so the pad region is an
    # exact post-BN zero.  The subtract touches only the un-inflated input and
    # fuses with the transpose/pad glue.
    w_taps = jnp.transpose(weight.astype(jnp.float32), (2, 3, 1, 0))  # (KH,KW,C,Cout)
    w_taps = w_taps.reshape(KH * KW, C, Cout) * inv_std[None, :, None]
    w_taps = w_taps.astype(compute_dtype)

    x = jnp.transpose(x32, (0, 2, 3, 1)) - mean[None, None, None, :]  # NHWC, centered
    x = jnp.pad(x, ((0, 0), (padding, padding), (padding, padding), (0, 0)))
    x = x.astype(compute_dtype)                # halve DMA bytes into the kernel

    if row_tile is None:
        row_tile = OH                          # whole image per grid step
    assert OH % row_tile == 0
    n_row_tiles = OH // row_tile
    # Keep the output store lane-dense (multiple of 128 lanes) unless the tile
    # already spans the full flattened spatial extent.
    assert row_tile == OH or (row_tile * OW) % 128 == 0

    taps = tuple((kh, kw) for kh in range(KH) for kw in range(KW))
    kernel = functools.partial(_binconv_kernel, taps=taps, stride=stride,
                               row_tile=row_tile, ow=OW)

    # Rough per-step VMEM estimate (double-buffered image + weights + out tile
    # + f32 accumulator); only raise the scoped-VMEM limit when actually needed
    # so small shapes keep the compiler defaults.
    itemsize = jnp.dtype(compute_dtype).itemsize
    vmem_est = (2 * Hp * Wp * C * itemsize            # image (double-buffered)
                + 2 * KH * KW * C * Cout * itemsize   # weights
                + 2 * Cout * row_tile * OW * 4        # output tile
                + 2 * row_tile * OW * Cout * 4)       # f32 accumulator + slack
    vmem_limit = None
    if vmem_est > 24 * 1024 * 1024:
        vmem_limit = min(int(vmem_est * 1.5), 100 * 1024 * 1024)

    out = pl.pallas_call(
        kernel,
        out_shape=jax.ShapeDtypeStruct((N, Cout, OH * OW), jnp.float32),
        grid_spec=pltpu.PrefetchScalarGridSpec(
            num_scalar_prefetch=0,
            grid=(N, n_row_tiles),
            in_specs=[
                # Full padded image for batch n; block index is independent of r,
                # so it is DMA'd once per image and reused across row tiles.
                pl.BlockSpec((1, Hp, Wp, C), lambda n, r: (n, 0, 0, 0)),
                # BN-folded weights, resident for the whole grid.
                pl.BlockSpec((KH * KW, C, Cout), lambda n, r: (0, 0, 0)),
            ],
            out_specs=pl.BlockSpec((1, Cout, row_tile * OW), lambda n, r: (n, 0, r)),
        ),
        compiler_params=pltpu.CompilerParams(
            dimension_semantics=("parallel", "parallel"),
            vmem_limit_bytes=vmem_limit,
        ),
    )(x, w_taps)

    # Output is already NCHW-flat: only a (free) reshape, no transpose.
    return out.reshape(N, Cout, OH, OW)


if __name__ == "__main__":
    key = jax.random.PRNGKey(0)
    kx, kw_ = jax.random.split(key)

    # Shapes consistent with BinConv2d(input_channels=4, output_channels=8,
    # kernel_size=3, stride=1, padding=1, bias=False).
    N, C, H, W = 2, 4, 16, 16
    Cout, KH, KW = 8, 3, 3
    stride, padding = 1, 1
    eps = 1e-5

    x = jax.random.normal(kx, (N, C, H, W), jnp.float32)
    fan_in = C * KH * KW
    bound = 1.0 / math.sqrt(fan_in)
    weight = jax.random.uniform(kw_, (Cout, C, KH, KW), jnp.float32, -bound, bound)

    y = bin_conv2d(x, weight, stride=stride, padding=padding, eps=eps)
    y = jax.block_until_ready(y)

    # ---- references -------------------------------------------------------
    mean = jnp.mean(x, axis=(0, 2, 3), keepdims=True)
    var = jnp.mean((x - mean) ** 2, axis=(0, 2, 3), keepdims=True)
    inv = jax.lax.rsqrt(var + eps)

    def conv_relu(inp, wgt):
        out = jax.lax.conv_general_dilated(
            inp, wgt, (stride, stride),
            [(padding, padding), (padding, padding)],
            dimension_numbers=("NCHW", "OIHW", "NCHW"),
            precision=jax.lax.Precision.HIGHEST)
        return jnp.maximum(out, 0.0)

    # (1) Module-faithful f32 reference: BN(train stats) -> conv -> ReLU.
    ref_f32 = conv_relu((x - mean) * inv, weight)

    # (2) Same math with operands rounded to bf16 exactly as the kernel rounds
    #     them: isolates MXU bf16 rounding so the kernel check stays tight.
    xc_q = (x - mean).astype(jnp.bfloat16).astype(jnp.float32)
    w_q = (weight * inv).astype(jnp.bfloat16).astype(jnp.float32)
    ref_q = conv_relu(xc_q, w_q)

    assert y.shape == ref_f32.shape == (N, Cout, H, W)
    err_tight = float(jnp.max(jnp.abs(y - ref_q)))
    err_full = float(jnp.max(jnp.abs(y - ref_f32)))
    assert err_tight < 2e-3, f"kernel vs bf16-operand reference: {err_tight}"
    assert err_full < 5e-2, f"kernel vs f32 module reference: {err_full}"

    print("KERNEL_OK")
</pallas_src>

<mosaic_0001>
module attributes {stable_mosaic.version = 11 : i64} {
  func.func @_binconv_kernel(%arg0: i32, %arg1: i32, %arg2: memref<1x18x18x4xbf16, #tpu.memory_space<vmem>>, %arg3: memref<9x4x8xbf16, #tpu.memory_space<vmem>>, %arg4: memref<1x8x256xf32, #tpu.memory_space<vmem>>) attributes {dimension_semantics = [#tpu.dimension_semantics<parallel>, #tpu.dimension_semantics<parallel>], iteration_bounds = array<i64: 2, 1>, scalar_prefetch = 0 : i64, scratch_operands = 0 : i64, tpu.core_type = #tpu.core_type<tc>, window_params = [{transform_indices = @transform_0, window_bounds = array<i64: 1, 18, 18, 4>}, {pipeline_mode = #tpu.pipeline_mode<synchronous>, transform_indices = @transform_1, window_bounds = array<i64: 9, 4, 8>}, {transform_indices = @transform_2, window_bounds = array<i64: 1, 8, 256>}]} {
    %cst = arith.constant 0.000000e+00 : f32
    %0 = vector.broadcast %cst : f32 to vector<256x8xf32>
    %c16_i32 = arith.constant 16 : i32
    %1 = arith.muli %arg1, %c16_i32 : i32
    %c0_i32 = arith.constant 0 : i32
    %2 = arith.addi %1, %c0_i32 : i32
    %c0 = arith.constant 0 : index
    %3 = arith.index_cast %2 : i32 to index
    %c0_0 = arith.constant 0 : index
    %c0_1 = arith.constant 0 : index
    %4 = vector.load %arg2[%c0, %3, %c0_0, %c0_1] : memref<1x18x18x4xbf16, #tpu.memory_space<vmem>>, vector<1x16x16x4xbf16>
    %5 = vector.shape_cast %4 : vector<1x16x16x4xbf16> to vector<16x16x4xbf16>
    %6 = vector.shape_cast %5 : vector<16x16x4xbf16> to vector<256x4xbf16>
    %c0_2 = arith.constant 0 : index
    %c0_3 = arith.constant 0 : index
    %c0_4 = arith.constant 0 : index
    %7 = vector.load %arg3[%c0_2, %c0_3, %c0_4] : memref<9x4x8xbf16, #tpu.memory_space<vmem>>, vector<1x4x8xbf16>
    %8 = vector.shape_cast %7 : vector<1x4x8xbf16> to vector<4x8xbf16>
    %cst_5 = arith.constant dense<0.000000e+00> : vector<256x8xf32>
    %9 = tpu.matmul %6, %8, %cst_5 {dimension_numbers = #tpu.dot_dimension_numbers<[1], [0], [0], [1], [0, 0, 1, 1], [], []>} : vector<256x4xbf16>, vector<4x8xbf16>, vector<256x8xf32> -> vector<256x8xf32>
    %10 = arith.addf %0, %9 : vector<256x8xf32>
    %c16_i32_6 = arith.constant 16 : i32
    %11 = arith.muli %arg1, %c16_i32_6 : i32
    %c0_i32_7 = arith.constant 0 : i32
    %12 = arith.addi %11, %c0_i32_7 : i32
    %c0_8 = arith.constant 0 : index
    %13 = arith.index_cast %12 : i32 to index
    %c1 = arith.constant 1 : index
    %c0_9 = arith.constant 0 : index
    %14 = vector.load %arg2[%c0_8, %13, %c1, %c0_9] : memref<1x18x18x4xbf16, #tpu.memory_space<vmem>>, vector<1x16x16x4xbf16>
    %15 = vector.shape_cast %14 : vector<1x16x16x4xbf16> to vector<16x16x4xbf16>
    %16 = vector.shape_cast %15 : vector<16x16x4xbf16> to vector<256x4xbf16>
    %c1_10 = arith.constant 1 : index
    %c0_11 = arith.constant 0 : index
    %c0_12 = arith.constant 0 : index
    %17 = vector.load %arg3[%c1_10, %c0_11, %c0_12] : memref<9x4x8xbf16, #tpu.memory_space<vmem>>, vector<1x4x8xbf16>
    %18 = vector.shape_cast %17 : vector<1x4x8xbf16> to vector<4x8xbf16>
    %cst_13 = arith.constant dense<0.000000e+00> : vector<256x8xf32>
    %19 = tpu.matmul %16, %18, %cst_13 {dimension_numbers = #tpu.dot_dimension_numbers<[1], [0], [0], [1], [0, 0, 1, 1], [], []>} : vector<256x4xbf16>, vector<4x8xbf16>, vector<256x8xf32> -> vector<256x8xf32>
    %20 = arith.addf %10, %19 : vector<256x8xf32>
    %c16_i32_14 = arith.constant 16 : i32
    %21 = arith.muli %arg1, %c16_i32_14 : i32
    %c0_i32_15 = arith.constant 0 : i32
    %22 = arith.addi %21, %c0_i32_15 : i32
    %c0_16 = arith.constant 0 : index
    %23 = arith.index_cast %22 : i32 to index
    %c2 = arith.constant 2 : index
    %c0_17 = arith.constant 0 : index
    %24 = vector.load %arg2[%c0_16, %23, %c2, %c0_17] : memref<1x18x18x4xbf16, #tpu.memory_space<vmem>>, vector<1x16x16x4xbf16>
    %25 = vector.shape_cast %24 : vector<1x16x16x4xbf16> to vector<16x16x4xbf16>
    %26 = vector.shape_cast %25 : vector<16x16x4xbf16> to vector<256x4xbf16>
    %c2_18 = arith.constant 2 : index
    %c0_19 = arith.constant 0 : index
    %c0_20 = arith.constant 0 : index
    %27 = vector.load %arg3[%c2_18, %c0_19, %c0_20] : memref<9x4x8xbf16, #tpu.memory_space<vmem>>, vector<1x4x8xbf16>
    %28 = vector.shape_cast %27 : vector<1x4x8xbf16> to vector<4x8xbf16>
    %cst_21 = arith.constant dense<0.000000e+00> : vector<256x8xf32>
    %29 = tpu.matmul %26, %28, %cst_21 {dimension_numbers = #tpu.dot_dimension_numbers<[1], [0], [0], [1], [0, 0, 1, 1], [], []>} : vector<256x4xbf16>, vector<4x8xbf16>, vector<256x8xf32> -> vector<256x8xf32>
    %30 = arith.addf %20, %29 : vector<256x8xf32>
    %c16_i32_22 = arith.constant 16 : i32
    %31 = arith.muli %arg1, %c16_i32_22 : i32
    %c1_i32 = arith.constant 1 : i32
    %32 = arith.addi %31, %c1_i32 : i32
    %c0_23 = arith.constant 0 : index
    %33 = arith.index_cast %32 : i32 to index
    %c0_24 = arith.constant 0 : index
    %c0_25 = arith.constant 0 : index
    %34 = vector.load %arg2[%c0_23, %33, %c0_24, %c0_25] : memref<1x18x18x4xbf16, #tpu.memory_space<vmem>>, vector<1x16x16x4xbf16>
    %35 = vector.shape_cast %34 : vector<1x16x16x4xbf16> to vector<16x16x4xbf16>
    %36 = vector.shape_cast %35 : vector<16x16x4xbf16> to vector<256x4xbf16>
    %c3 = arith.constant 3 : index
    %c0_26 = arith.constant 0 : index
    %c0_27 = arith.constant 0 : index
    %37 = vector.load %arg3[%c3, %c0_26, %c0_27] : memref<9x4x8xbf16, #tpu.memory_space<vmem>>, vector<1x4x8xbf16>
    %38 = vector.shape_cast %37 : vector<1x4x8xbf16> to vector<4x8xbf16>
    %cst_28 = arith.constant dense<0.000000e+00> : vector<256x8xf32>
    %39 = tpu.matmul %36, %38, %cst_28 {dimension_numbers = #tpu.dot_dimension_numbers<[1], [0], [0], [1], [0, 0, 1, 1], [], []>} : vector<256x4xbf16>, vector<4x8xbf16>, vector<256x8xf32> -> vector<256x8xf32>
    %40 = arith.addf %30, %39 : vector<256x8xf32>
    %c16_i32_29 = arith.constant 16 : i32
    %41 = arith.muli %arg1, %c16_i32_29 : i32
    %c1_i32_30 = arith.constant 1 : i32
    %42 = arith.addi %41, %c1_i32_30 : i32
    %c0_31 = arith.constant 0 : index
    %43 = arith.index_cast %42 : i32 to index
    %c1_32 = arith.constant 1 : index
    %c0_33 = arith.constant 0 : index
    %44 = vector.load %arg2[%c0_31, %43, %c1_32, %c0_33] : memref<1x18x18x4xbf16, #tpu.memory_space<vmem>>, vector<1x16x16x4xbf16>
    %45 = vector.shape_cast %44 : vector<1x16x16x4xbf16> to vector<16x16x4xbf16>
    %46 = vector.shape_cast %45 : vector<16x16x4xbf16> to vector<256x4xbf16>
    %c4 = arith.constant 4 : index
    %c0_34 = arith.constant 0 : index
    %c0_35 = arith.constant 0 : index
    %47 = vector.load %arg3[%c4, %c0_34, %c0_35] : memref<9x4x8xbf16, #tpu.memory_space<vmem>>, vector<1x4x8xbf16>
    %48 = vector.shape_cast %47 : vector<1x4x8xbf16> to vector<4x8xbf16>
    %cst_36 = arith.constant dense<0.000000e+00> : vector<256x8xf32>
    %49 = tpu.matmul %46, %48, %cst_36 {dimension_numbers = #tpu.dot_dimension_numbers<[1], [0], [0], [1], [0, 0, 1, 1], [], []>} : vector<256x4xbf16>, vector<4x8xbf16>, vector<256x8xf32> -> vector<256x8xf32>
    %50 = arith.addf %40, %49 : vector<256x8xf32>
    %c16_i32_37 = arith.constant 16 : i32
    %51 = arith.muli %arg1, %c16_i32_37 : i32
    %c1_i32_38 = arith.constant 1 : i32
    %52 = arith.addi %51, %c1_i32_38 : i32
    %c0_39 = arith.constant 0 : index
    %53 = arith.index_cast %52 : i32 to index
    %c2_40 = arith.constant 2 : index
    %c0_41 = arith.constant 0 : index
    %54 = vector.load %arg2[%c0_39, %53, %c2_40, %c0_41] : memref<1x18x18x4xbf16, #tpu.memory_space<vmem>>, vector<1x16x16x4xbf16>
    %55 = vector.shape_cast %54 : vector<1x16x16x4xbf16> to vector<16x16x4xbf16>
    %56 = vector.shape_cast %55 : vector<16x16x4xbf16> to vector<256x4xbf16>
    %c5 = arith.constant 5 : index
    %c0_42 = arith.constant 0 : index
    %c0_43 = arith.constant 0 : index
    %57 = vector.load %arg3[%c5, %c0_42, %c0_43] : memref<9x4x8xbf16, #tpu.memory_space<vmem>>, vector<1x4x8xbf16>
    %58 = vector.shape_cast %57 : vector<1x4x8xbf16> to vector<4x8xbf16>
    %cst_44 = arith.constant dense<0.000000e+00> : vector<256x8xf32>
    %59 = tpu.matmul %56, %58, %cst_44 {dimension_numbers = #tpu.dot_dimension_numbers<[1], [0], [0], [1], [0, 0, 1, 1], [], []>} : vector<256x4xbf16>, vector<4x8xbf16>, vector<256x8xf32> -> vector<256x8xf32>
    %60 = arith.addf %50, %59 : vector<256x8xf32>
    %c16_i32_45 = arith.constant 16 : i32
    %61 = arith.muli %arg1, %c16_i32_45 : i32
    %c2_i32 = arith.constant 2 : i32
    %62 = arith.addi %61, %c2_i32 : i32
    %c0_46 = arith.constant 0 : index
    %63 = arith.index_cast %62 : i32 to index
    %c0_47 = arith.constant 0 : index
    %c0_48 = arith.constant 0 : index
    %64 = vector.load %arg2[%c0_46, %63, %c0_47, %c0_48] : memref<1x18x18x4xbf16, #tpu.memory_space<vmem>>, vector<1x16x16x4xbf16>
    %65 = vector.shape_cast %64 : vector<1x16x16x4xbf16> to vector<16x16x4xbf16>
    %66 = vector.shape_cast %65 : vector<16x16x4xbf16> to vector<256x4xbf16>
    %c6 = arith.constant 6 : index
    %c0_49 = arith.constant 0 : index
    %c0_50 = arith.constant 0 : index
    %67 = vector.load %arg3[%c6, %c0_49, %c0_50] : memref<9x4x8xbf16, #tpu.memory_space<vmem>>, vector<1x4x8xbf16>
    %68 = vector.shape_cast %67 : vector<1x4x8xbf16> to vector<4x8xbf16>
    %cst_51 = arith.constant dense<0.000000e+00> : vector<256x8xf32>
    %69 = tpu.matmul %66, %68, %cst_51 {dimension_numbers = #tpu.dot_dimension_numbers<[1], [0], [0], [1], [0, 0, 1, 1], [], []>} : vector<256x4xbf16>, vector<4x8xbf16>, vector<256x8xf32> -> vector<256x8xf32>
    %70 = arith.addf %60, %69 : vector<256x8xf32>
    %c16_i32_52 = arith.constant 16 : i32
    %71 = arith.muli %arg1, %c16_i32_52 : i32
    %c2_i32_53 = arith.constant 2 : i32
    %72 = arith.addi %71, %c2_i32_53 : i32
    %c0_54 = arith.constant 0 : index
    %73 = arith.index_cast %72 : i32 to index
    %c1_55 = arith.constant 1 : index
    %c0_56 = arith.constant 0 : index
    %74 = vector.load %arg2[%c0_54, %73, %c1_55, %c0_56] : memref<1x18x18x4xbf16, #tpu.memory_space<vmem>>, vector<1x16x16x4xbf16>
    %75 = vector.shape_cast %74 : vector<1x16x16x4xbf16> to vector<16x16x4xbf16>
    %76 = vector.shape_cast %75 : vector<16x16x4xbf16> to vector<256x4xbf16>
    %c7 = arith.constant 7 : index
    %c0_57 = arith.constant 0 : index
    %c0_58 = arith.constant 0 : index
    %77 = vector.load %arg3[%c7, %c0_57, %c0_58] : memref<9x4x8xbf16, #tpu.memory_space<vmem>>, vector<1x4x8xbf16>
    %78 = vector.shape_cast %77 : vector<1x4x8xbf16> to vector<4x8xbf16>
    %cst_59 = arith.constant dense<0.000000e+00> : vector<256x8xf32>
    %79 = tpu.matmul %76, %78, %cst_59 {dimension_numbers = #tpu.dot_dimension_numbers<[1], [0], [0], [1], [0, 0, 1, 1], [], []>} : vector<256x4xbf16>, vector<4x8xbf16>, vector<256x8xf32> -> vector<256x8xf32>
    %80 = arith.addf %70, %79 : vector<256x8xf32>
    %c16_i32_60 = arith.constant 16 : i32
    %81 = arith.muli %arg1, %c16_i32_60 : i32
    %c2_i32_61 = arith.constant 2 : i32
    %82 = arith.addi %81, %c2_i32_61 : i32
    %c0_62 = arith.constant 0 : index
    %83 = arith.index_cast %82 : i32 to index
    %c2_63 = arith.constant 2 : index
    %c0_64 = arith.constant 0 : index
    %84 = vector.load %arg2[%c0_62, %83, %c2_63, %c0_64] : memref<1x18x18x4xbf16, #tpu.memory_space<vmem>>, vector<1x16x16x4xbf16>
    %85 = vector.shape_cast %84 : vector<1x16x16x4xbf16> to vector<16x16x4xbf16>
    %86 = vector.shape_cast %85 : vector<16x16x4xbf16> to vector<256x4xbf16>
    %c8 = arith.constant 8 : index
    %c0_65 = arith.constant 0 : index
    %c0_66 = arith.constant 0 : index
    %87 = vector.load %arg3[%c8, %c0_65, %c0_66] : memref<9x4x8xbf16, #tpu.memory_space<vmem>>, vector<1x4x8xbf16>
    %88 = vector.shape_cast %87 : vector<1x4x8xbf16> to vector<4x8xbf16>
    %cst_67 = arith.constant dense<0.000000e+00> : vector<256x8xf32>
    %89 = tpu.matmul %86, %88, %cst_67 {dimension_numbers = #tpu.dot_dimension_numbers<[1], [0], [0], [1], [0, 0, 1, 1], [], []>} : vector<256x4xbf16>, vector<4x8xbf16>, vector<256x8xf32> -> vector<256x8xf32>
    %90 = arith.addf %80, %89 : vector<256x8xf32>
    %cst_68 = arith.constant 0.000000e+00 : f32
    %91 = vector.broadcast %cst_68 : f32 to vector<256x8xf32>
    %92 = arith.maximumf %90, %91 : vector<256x8xf32>
    %93 = tpu.transpose %92, [1, 0] : vector<256x8xf32> -> vector<8x256xf32>
    %c0_69 = arith.constant 0 : index
    %c0_70 = arith.constant 0 : index
    %c0_71 = arith.constant 0 : index
    %94 = vector.load %arg4[%c0_69, %c0_70, %c0_71] : memref<1x8x256xf32, #tpu.memory_space<vmem>>, vector<1x8x256xf32>
    %95 = vector.shape_cast %94 : vector<1x8x256xf32> to vector<8x256xf32>
    %96 = vector.shape_cast %93 : vector<8x256xf32> to vector<1x8x256xf32>
    tpu.vector_store %arg4[%c0_69, %c0_70, %c0_71], %96 {strides = array<i32>} : memref<1x8x256xf32, #tpu.memory_space<vmem>>, vector<1x8x256xf32>,
    return
  }
  func.func @transform_0(%arg0: i32, %arg1: i32) -> (i32, i32, i32, i32) {
    %c0_i32 = arith.constant 0 : i32
    %c0_i32_0 = arith.constant 0 : i32
    %c0_i32_1 = arith.constant 0 : i32
    %c0_i32_2 = arith.constant 0 : i32
    return %arg0, %c0_i32, %c0_i32_0, %c0_i32_1 : i32, i32, i32, i32
  }
  func.func @transform_1(%arg0: i32, %arg1: i32) -> (i32, i32, i32) {
    %c0_i32 = arith.constant 0 : i32
    %c0_i32_0 = arith.constant 0 : i32
    %c0_i32_1 = arith.constant 0 : i32
    %c0_i32_2 = arith.constant 0 : i32
    return %c0_i32, %c0_i32_0, %c0_i32_1 : i32, i32, i32
  }
  func.func @transform_2(%arg0: i32, %arg1: i32) -> (i32, i32, i32) {
    %c0_i32 = arith.constant 0 : i32
    %c0_i32_0 = arith.constant 0 : i32
    return %arg0, %c0_i32, %arg1 : i32, i32, i32
  }
}

</mosaic_0001>

<llo_original>
// kernel: tpu_custom_call.1
$region0: #{tpu_custom_call.1}
  #allocation0 [shape = 'u32[]', space=smem, size = 0x4, offset = 0x4, fixed_abs, tag = 'smem constant byte address 0x4 - core index']
  #allocation1 [shape = 'u32[144,128]{1,0:T(1,128)}', space=vmem, size = 0x12000, scoped, tag = 'internal scratch']
  %s0 = inlined_call_operand.vmem [shape: bf16[2,18,18,4], index: 0, kind: input, shape index: {}]
  %s1 = inlined_call_operand.vmem [shape: bf16[9,4,8], index: 1, kind: input, shape index: {}]
  %s2 = inlined_call_operand.hbm [shape: f32[2,8,256], index: 2, kind: output, shape index: {}]
  %s3 = sld [smem:[#allocation0]]
  $region41: #{tpu_custom_call.1} parent=0
    _
  %s5 = ssub.s32 1, %s3
  %s6 = scalar_select 0, %s5, %s3
  $region1: #{tpu_custom_call.1} parent=0
    #allocation2 [shape = 'u8[16384]{0}', space=vmem, size = 0x4000, scoped, tag = 'output window, operand 0']
    #allocation3 [shape = 's32[2]{0}', space=sflag, size = 0x8, scoped, tag = 'scoped memory for tpu_custom_call.1']
    %7 = vsyncpa [#allocation3], 0
    %s8 = scalar_lea.sflag [#allocation3], 1
    %9 = vsyncpa %s8, 0
    loop: start=0, step=1, limit=4
    $region2: #{tpu_custom_call.1} parent=1 // loop_pre_header
      _
    $region3: #{tpu_custom_call.1} parent=1 // loop_header
      %s11 = sphi 0, %s15
      %p12 = scmp.ge.s32.totalorder %s11, 4
      %s18 = sphi 0, %s30
      %s19 = sphi 0, %s26
      %s20 = sphi 0, %s18
      %s21 = sphi 0, %s19
      %s22 = sphi 0, %s20
      %s23 = sphi 0, %s21
      %s33 = sphi 0, %s35
      %s36 = sphi 0, %s33
      %s37 = sphi 0, %s36
      %s53 = sphi 0, %s37
      %s57 = sphi 0, %s57
      %s59 = sphi 0, %s57
      %s60 = sphi 0, %s59
      %s74 = sphi 0, %s60
      %s82 = sphi 0, %s84
      %s85 = sphi 0, %s82
      %s86 = sphi 0, %s85
      %s102 = sphi 0, %s86
    $region4: #{tpu_custom_call.1} parent=1 // loop_header_branch
      %14 = sbr.rel (%p12) target = $region8
    $region5: #{tpu_custom_call.1} parent=1 // loop_body
      %s16 = ssub.s32 %s11, 1
      %s17 = ssub.s32 %s11, 2
      %s24 = sadd.s32 1, %s19
      %p25 = scmp.ge.s32.totalorder %s24, 1
      %s26 = scalar_select %p25, 0, %s24
      %s27 = sadd.s32 1, %s18
      %s28 = scalar_select %p25, %s27, %s18
      %p29 = scmp.ge.s32.totalorder %s28, 2
      %s30 = scalar_select %p29, 0, %s28
      %s31 = ssub.s32 %s18, %s30
      %p32 = scmp.eq.s32.totalorder %s31, 0
      %s34 = sadd.s32 %s33, 1
      %s35 = scalar_select %p32, %s33, %s34
      %p38 = pneg %p32
      %p39 = scmp.eq.s32.totalorder %s11, 1
      %p40 = por %p38, %p39
      %p41 = scmp.ne.s32.totalorder %s33, %s36
      %p42 = scmp.eq.s32.totalorder %s11, 0
      %p43 = por %p41, %p42
      %p44 = scmp.ne.s32.totalorder %s33, %s36
      %p45 = scmp.eq.s32.totalorder %s16, 1
      %p46 = por %p44, %p45
      %p47 = scmp.ne.s32.totalorder %s36, %s37
      %p48 = scmp.eq.s32.totalorder %s16, 0
      %p49 = por %p47, %p48
      %p50 = scmp.ne.s32.totalorder %s36, %s37
      %p51 = scmp.eq.s32.totalorder %s17, 1
      %p52 = por %p50, %p51
      %p54 = scmp.ne.s32.totalorder %s37, %s53
      %p55 = scmp.eq.s32.totalorder %s17, 0
      %p56 = por %p54, %p55
      %s58 = sadd.s32 %s57, 1
      %p61 = scmp.eq.s32.totalorder %s11, 1
      %p62 = scmp.ne.s32.totalorder %s57, %s59
      %p63 = scmp.eq.s32.totalorder %s11, 0
      %p64 = por %p62, %p63
      %p65 = scmp.ne.s32.totalorder %s57, %s59
      %p66 = scmp.eq.s32.totalorder %s16, 1
      %p67 = por %p65, %p66
      %p68 = scmp.ne.s32.totalorder %s59, %s60
      %p69 = scmp.eq.s32.totalorder %s16, 0
      %p70 = por %p68, %p69
      %p71 = scmp.ne.s32.totalorder %s59, %s60
      %p72 = scmp.eq.s32.totalorder %s17, 1
      %p73 = por %p71, %p72
      %p75 = scmp.ne.s32.totalorder %s60, %s74
      %p76 = scmp.eq.s32.totalorder %s17, 0
      %p77 = por %p75, %p76
      %s78 = ssub.s32 %s18, %s30
      %s79 = ssub.s32 %s19, %s26
      %s80 = sor.u32 %s78, %s79
      %p81 = scmp.eq.s32.totalorder %s80, 0
      %s83 = sadd.s32 %s82, 1
      %s84 = scalar_select %p81, %s82, %s83
      %p87 = pneg %p81
      %p88 = scmp.eq.s32.totalorder %s11, 1
      %p89 = por %p87, %p88
      %p90 = scmp.ne.s32.totalorder %s82, %s85
      %p91 = scmp.eq.s32.totalorder %s11, 0
      %p92 = por %p90, %p91
      %p93 = scmp.ne.s32.totalorder %s82, %s85
      %p94 = scmp.eq.s32.totalorder %s16, 1
      %p95 = por %p93, %p94
      %p96 = scmp.ne.s32.totalorder %s85, %s86
      %p97 = scmp.eq.s32.totalorder %s16, 0
      %p98 = por %p96, %p97
      %p99 = scmp.ne.s32.totalorder %s85, %s86
      %p100 = scmp.eq.s32.totalorder %s17, 1
      %p101 = por %p99, %p100
      %p103 = scmp.ne.s32.totalorder %s86, %s102
      %p104 = scmp.eq.s32.totalorder %s17, 0
      %p105 = por %p103, %p104
      %p106 = scmp.le.s32.totalorder 1, %s11
      %p107 = scmp.lt.s32.totalorder %s11, 3
      %p108 = pnand %p106, %p107
      %p109 = pneg %p108
      // Predicated region
      $region9: #{tpu_custom_call.1} parent=5 // pred_check
        _
      $region10: #{tpu_custom_call.1} parent=5 // pred_check_branch
        %111 = sbr.rel (%p108) target = $region12
      $region11: #{tpu_custom_call.1} parent=5 // pred_region
        %s112 = ssub.s32 %s11, 1
        // Predicated region
        $region13: #{tpu_custom_call.1} parent=11 // pred_check
          %p113 = pneg %p70
        $region14: #{tpu_custom_call.1} parent=11 // pred_check_branch
          %115 = sbr.rel (%p113) target = $region16
        $region15: #{tpu_custom_call.1} parent=11 // pred_region
          _
        $region16: #{tpu_custom_call.1} parent=11 // pred_fallthru
          _
      $region12: #{tpu_custom_call.1} parent=5 // pred_fallthru
        _
      %p116 = scmp.lt.s32.totalorder %s11, 2
      // Predicated region
      $region17: #{tpu_custom_call.1} parent=5 // pred_check
        %p117 = pneg %p116
      $region18: #{tpu_custom_call.1} parent=5 // pred_check_branch
        %119 = sbr.rel (%p117) target = $region20
      $region19: #{tpu_custom_call.1} parent=5 // pred_region
        // Predicated region
        $region21: #{tpu_custom_call.1} parent=19 // pred_check
          %p120 = pneg %p43
        $region22: #{tpu_custom_call.1} parent=19 // pred_check_branch
          %122 = sbr.rel (%p120) target = $region24
        $region23: #{tpu_custom_call.1} parent=19 // pred_region
          %p123 = scmp.lt.s32.totalorder %s18, 1
          %s124 = scalar_select %p123, %s18, 1
          %s125 = smul.addr %s124, 54
          %s126 = smul.addr %s125, 4
          %s127 = scalar_lea.vmem %s0, %s126
        $region24: #{tpu_custom_call.1} parent=19 // pred_fallthru
          _
      $region20: #{tpu_custom_call.1} parent=5 // pred_fallthru
        _
      %p128 = scmp.le.s32.totalorder 1, %s11
      %p129 = scmp.lt.s32.totalorder %s11, 3
      %p130 = pnand %p128, %p129
      %p131 = pneg %p130
      // Predicated region
      $region25: #{tpu_custom_call.1} parent=5 // pred_check
        _
      $region26: #{tpu_custom_call.1} parent=5 // pred_check_branch
        %133 = sbr.rel (%p130) target = $region28
      $region27: #{tpu_custom_call.1} parent=5 // pred_region
        %s134 = ssub.s32 %s11, 1
        %p135 = scmp.lt.s32.totalorder %s20, 1
        %s136 = scalar_select %p135, %s20, 1
        %s137 = smul.addr %s136, 54
        %s138 = smul.addr %s137, 4
        %s139 = scalar_lea.vmem %s0, %s138
        %p140 = pneg %p49
        %p141 = pneg %p46
        %p142 = pneg %p70
        %p143 = pneg %p67
        %p144 = pneg %p98
        %p145 = pneg %p95
        %s146 = sand.u32 %s85, 1
        %s147 = scalar_lea.sflag [#allocation3], %s146
        %s148 = sand.u32 %s85, 1
        %s149 = smul.addr %s148, 16
        %s150 = scalar_lea.vmem [#allocation2], %s149
        %p151 = scmp.lt.s32.totalorder %s20, 1
        %s152 = scalar_select %p151, %s20, 1
        %s153 = smul.addr %s152, 54
        %s154 = smul.addr %s153, 4
        %s155 = scalar_lea.vmem %s0, %s154
        %s156 = smul.u32 2, %s21
        %s158 = smul.u32 %s21, 16
        %s159 = smul.u32 %s158, 3
        %s160 = smul.addr %s159, 4
        %s161 = scalar_lea.vmem %s155, %s160
        %v162 = vld [vmem:[%s161] sm:$0xf]
        %v163 = vld [vmem:[%s161 + $0x4] sm:$0xf]
        %v164 = vld [vmem:[%s161 + $0xc] sm:$0xf]
        %v165 = vld [vmem:[%s161 + $0x10] sm:$0xf]
        %v166 = vld [vmem:[%s161 + $0x18] sm:$0xf]
        %v167 = vld [vmem:[%s161 + $0x1c] sm:$0xf]
        %v168 = vld [vmem:[%s161 + $0x24] sm:$0xf]
        %v169 = vld [vmem:[%s161 + $0x28] sm:$0xf]
        %v170 = vld [vmem:[%s161 + $0x30] sm:$0xf]
        %v171 = vld [vmem:[%s161 + $0x34] sm:$0xf]
        %v172 = vld [vmem:[%s161 + $0x3c] sm:$0xf]
        %v173 = vld [vmem:[%s161 + $0x40] sm:$0xf]
        %v174 = vld [vmem:[%s161 + $0x48] sm:$0xf]
        %v175 = vld [vmem:[%s161 + $0x4c] sm:$0xf]
        %v176 = vld [vmem:[%s161 + $0x54] sm:$0xf]
        %v177 = vld [vmem:[%s161 + $0x58] sm:$0xf]
        %v178 = vld [vmem:[%s161 + $0x60] sm:$0xf]
        %v179 = vld [vmem:[%s161 + $0x64] sm:$0xf]
        %v180 = vld [vmem:[%s161 + $0x6c] sm:$0xf]
        %v181 = vld [vmem:[%s161 + $0x70] sm:$0xf]
        %v182 = vld [vmem:[%s161 + $0x78] sm:$0xf]
        %v183 = vld [vmem:[%s161 + $0x7c] sm:$0xf]
        %v184 = vld [vmem:[%s161 + $0x84] sm:$0xf]
        %v185 = vld [vmem:[%s161 + $0x88] sm:$0xf]
        %v186 = vld [vmem:[%s161 + $0x90] sm:$0xf]
        %v187 = vld [vmem:[%s161 + $0x94] sm:$0xf]
        %v188 = vld [vmem:[%s161 + $0x9c] sm:$0xf]
        %v189 = vld [vmem:[%s161 + $0xa0] sm:$0xf]
        %v190 = vld [vmem:[%s161 + $0xa8] sm:$0xf]
        %v191 = vld [vmem:[%s161 + $0xac] sm:$0xf]
        %v192 = vld [vmem:[%s161 + $0xb4] sm:$0xf]
        %v193 = vld [vmem:[%s161 + $0xb8] sm:$0xf]
        %v194 = vld [vmem:[%s1] sm:$0x3]
        %v195 = vld [vmem:[%s161 + $0x8] sm:$0x1]
        %v196 = vld [vmem:[%s161 + $0x14] sm:$0x1]
        %v197 = vld [vmem:[%s161 + $0x20] sm:$0x1]
        %v198 = vld [vmem:[%s161 + $0x2c] sm:$0x1]
        %v199 = vld [vmem:[%s161 + $0x38] sm:$0x1]
        %v200 = vld [vmem:[%s161 + $0x44] sm:$0x1]
        %v201 = vld [vmem:[%s161 + $0x50] sm:$0x1]
        %v202 = vld [vmem:[%s161 + $0x5c] sm:$0x1]
        %v203 = vld [vmem:[%s161 + $0x68] sm:$0x1]
        %v204 = vld [vmem:[%s161 + $0x74] sm:$0x1]
        %v205 = vld [vmem:[%s161 + $0x80] sm:$0x1]
        %v206 = vld [vmem:[%s161 + $0x8c] sm:$0x1]
        %v207 = vld [vmem:[%s161 + $0x98] sm:$0x1]
        %v208 = vld [vmem:[%s161 + $0xa4] sm:$0x1]
        %v209 = vld [vmem:[%s161 + $0xb0] sm:$0x1]
        %v210 = vld [vmem:[%s161 + $0xbc] sm:$0x1]
        %vm211 = vsmask.f32 3328
        %vm212 = vsmask.f32 7440
        %vm213 = vmor %vm211, %vm212
        %v215 = vshrl.u32 %v162, 16
        %v217 = vrot.slane %v215, 4
        %v218 = vshll.u32 %v162, 16
        %v220 = vrot.slane %v218, 5
        %v221 = vor.u32 %v217, %v220
        %v222 = vrot.slane %v221, 4
        %v224 = vshll.u32 %v163, 16
        %v226 = vrot.slane %v224, 5
        %v227 = vsel %vm213, %v222, %v226
        %v228 = vshrl.u32 %v163, 16
        %v230 = vrot.slane %v228, 4
        %v231 = vor.u32 %v230, %v226
        %v232 = vrot.slane %v231, 4
        %v234 = vshll.u32 %v195, 16
        %v236 = vrot.slane %v234, 5
        %v237 = vsel %vm213, %v232, %v236
        %v239 = vshrl.u32 %v164, 16
        %v241 = vrot.slane %v239, 4
        %v242 = vshll.u32 %v164, 16
        %v244 = vrot.slane %v242, 5
        %v245 = vor.u32 %v241, %v244
        %v246 = vrot.slane %v245, 4
        %v248 = vshll.u32 %v165, 16
        %v250 = vrot.slane %v248, 5
        %v251 = vsel %vm213, %v246, %v250
        %v252 = vshrl.u32 %v165, 16
        %v254 = vrot.slane %v252, 4
        %v255 = vor.u32 %v254, %v250
        %v256 = vrot.slane %v255, 4
        %v258 = vshll.u32 %v196, 16
        %v260 = vrot.slane %v258, 5
        %v261 = vsel %vm213, %v256, %v260
        %v263 = vshrl.u32 %v166, 16
        %v265 = vrot.slane %v263, 4
        %v266 = vshll.u32 %v166, 16
        %v268 = vrot.slane %v266, 5
        %v269 = vor.u32 %v265, %v268
        %v270 = vrot.slane %v269, 4
        %v272 = vshll.u32 %v167, 16
        %v274 = vrot.slane %v272, 5
        %v275 = vsel %vm213, %v270, %v274
        %v276 = vshrl.u32 %v167, 16
        %v278 = vrot.slane %v276, 4
        %v279 = vor.u32 %v278, %v274
        %v280 = vrot.slane %v279, 4
        %v282 = vshll.u32 %v197, 16
        %v284 = vrot.slane %v282, 5
        %v285 = vsel %vm213, %v280, %v284
        %v287 = vshrl.u32 %v168, 16
        %v289 = vrot.slane %v287, 4
        %v290 = vshll.u32 %v168, 16
        %v292 = vrot.slane %v290, 5
        %v293 = vor.u32 %v289, %v292
        %v294 = vrot.slane %v293, 4
        %v296 = vshll.u32 %v169, 16
        %v298 = vrot.slane %v296, 5
        %v299 = vsel %vm213, %v294, %v298
        %v300 = vshrl.u32 %v169, 16
        %v302 = vrot.slane %v300, 4
        %v303 = vor.u32 %v302, %v298
        %v304 = vrot.slane %v303, 4
        %v306 = vshll.u32 %v198, 16
        %v308 = vrot.slane %v306, 5
        %v309 = vsel %vm213, %v304, %v308
        %v311 = vshrl.u32 %v170, 16
        %v313 = vrot.slane %v311, 4
        %v314 = vshll.u32 %v170, 16
        %v316 = vrot.slane %v314, 5
        %v317 = vor.u32 %v313, %v316
        %v318 = vrot.slane %v317, 4
        %v320 = vshll.u32 %v171, 16
        %v322 = vrot.slane %v320, 5
        %v323 = vsel %vm213, %v318, %v322
        %v324 = vshrl.u32 %v171, 16
        %v326 = vrot.slane %v324, 4
        %v327 = vor.u32 %v326, %v322
        %v328 = vrot.slane %v327, 4
        %v330 = vshll.u32 %v199, 16
        %v332 = vrot.slane %v330, 5
        %v333 = vsel %vm213, %v328, %v332
        %v335 = vshrl.u32 %v172, 16
        %v337 = vrot.slane %v335, 4
        %v338 = vshll.u32 %v172, 16
        %v340 = vrot.slane %v338, 5
        %v341 = vor.u32 %v337, %v340
        %v342 = vrot.slane %v341, 4
        %v344 = vshll.u32 %v173, 16
        %v346 = vrot.slane %v344, 5
        %v347 = vsel %vm213, %v342, %v346
        %v348 = vshrl.u32 %v173, 16
        %v350 = vrot.slane %v348, 4
        %v351 = vor.u32 %v350, %v346
        %v352 = vrot.slane %v351, 4
        %v354 = vshll.u32 %v200, 16
        %v356 = vrot.slane %v354, 5
        %v357 = vsel %vm213, %v352, %v356
        %v359 = vshrl.u32 %v174, 16
        %v361 = vrot.slane %v359, 4
        %v362 = vshll.u32 %v174, 16
        %v364 = vrot.slane %v362, 5
        %v365 = vor.u32 %v361, %v364
        %v366 = vrot.slane %v365, 4
        %v368 = vshll.u32 %v175, 16
        %v370 = vrot.slane %v368, 5
        %v371 = vsel %vm213, %v366, %v370
        %v372 = vshrl.u32 %v175, 16
        %v374 = vrot.slane %v372, 4
        %v375 = vor.u32 %v374, %v370
        %v376 = vrot.slane %v375, 4
        %v378 = vshll.u32 %v201, 16
        %v380 = vrot.slane %v378, 5
        %v381 = vsel %vm213, %v376, %v380
        %v383 = vshrl.u32 %v176, 16
        %v385 = vrot.slane %v383, 4
        %v386 = vshll.u32 %v176, 16
        %v388 = vrot.slane %v386, 5
        %v389 = vor.u32 %v385, %v388
        %v390 = vrot.slane %v389, 4
        %v392 = vshll.u32 %v177, 16
        %v394 = vrot.slane %v392, 5
        %v395 = vsel %vm213, %v390, %v394
        %v396 = vshrl.u32 %v177, 16
        %v398 = vrot.slane %v396, 4
        %v399 = vor.u32 %v398, %v394
        %v400 = vrot.slane %v399, 4
        %v402 = vshll.u32 %v202, 16
        %v404 = vrot.slane %v402, 5
        %v405 = vsel %vm213, %v400, %v404
        %v407 = vshrl.u32 %v178, 16
        %v409 = vrot.slane %v407, 4
        %v410 = vshll.u32 %v178, 16
        %v412 = vrot.slane %v410, 5
        %v413 = vor.u32 %v409, %v412
        %v414 = vrot.slane %v413, 4
        %v416 = vshll.u32 %v179, 16
        %v418 = vrot.slane %v416, 5
        %v419 = vsel %vm213, %v414, %v418
        %v420 = vshrl.u32 %v179, 16
        %v422 = vrot.slane %v420, 4
        %v423 = vor.u32 %v422, %v418
        %v424 = vrot.slane %v423, 4
        %v426 = vshll.u32 %v203, 16
        %v428 = vrot.slane %v426, 5
        %v429 = vsel %vm213, %v424, %v428
        %v431 = vshrl.u32 %v180, 16
        %v433 = vrot.slane %v431, 4
        %v434 = vshll.u32 %v180, 16
        %v436 = vrot.slane %v434, 5
        %v437 = vor.u32 %v433, %v436
        %v438 = vrot.slane %v437, 4
        %v440 = vshll.u32 %v181, 16
        %v442 = vrot.slane %v440, 5
        %v443 = vsel %vm213, %v438, %v442
        %v444 = vshrl.u32 %v181, 16
        %v446 = vrot.slane %v444, 4
        %v447 = vor.u32 %v446, %v442
        %v448 = vrot.slane %v447, 4
        %v450 = vshll.u32 %v204, 16
        %v452 = vrot.slane %v450, 5
        %v453 = vsel %vm213, %v448, %v452
        %v455 = vshrl.u32 %v182, 16
        %v457 = vrot.slane %v455, 4
        %v458 = vshll.u32 %v182, 16
        %v460 = vrot.slane %v458, 5
        %v461 = vor.u32 %v457, %v460
        %v462 = vrot.slane %v461, 4
        %v464 = vshll.u32 %v183, 16
        %v466 = vrot.slane %v464, 5
        %v467 = vsel %vm213, %v462, %v466
        %v468 = vshrl.u32 %v183, 16
        %v470 = vrot.slane %v468, 4
        %v471 = vor.u32 %v470, %v466
        %v472 = vrot.slane %v471, 4
        %v474 = vshll.u32 %v205, 16
        %v476 = vrot.slane %v474, 5
        %v477 = vsel %vm213, %v472, %v476
        %v479 = vshrl.u32 %v184, 16
        %v481 = vrot.slane %v479, 4
        %v482 = vshll.u32 %v184, 16
        %v484 = vrot.slane %v482, 5
        %v485 = vor.u32 %v481, %v484
        %v486 = vrot.slane %v485, 4
        %v488 = vshll.u32 %v185, 16
        %v490 = vrot.slane %v488, 5
        %v491 = vsel %vm213, %v486, %v490
        %v492 = vshrl.u32 %v185, 16
        %v494 = vrot.slane %v492, 4
        %v495 = vor.u32 %v494, %v490
        %v496 = vrot.slane %v495, 4
        %v498 = vshll.u32 %v206, 16
        %v500 = vrot.slane %v498, 5
        %v501 = vsel %vm213, %v496, %v500
        %v503 = vshrl.u32 %v186, 16
        %v505 = vrot.slane %v503, 4
        %v506 = vshll.u32 %v186, 16
        %v508 = vrot.slane %v506, 5
        %v509 = vor.u32 %v505, %v508
        %v510 = vrot.slane %v509, 4
        %v512 = vshll.u32 %v187, 16
        %v514 = vrot.slane %v512, 5
        %v515 = vsel %vm213, %v510, %v514
        %v516 = vshrl.u32 %v187, 16
        %v518 = vrot.slane %v516, 4
        %v519 = vor.u32 %v518, %v514
        %v520 = vrot.slane %v519, 4
        %v522 = vshll.u32 %v207, 16
        %v524 = vrot.slane %v522, 5
        %v525 = vsel %vm213, %v520, %v524
        %v527 = vshrl.u32 %v188, 16
        %v529 = vrot.slane %v527, 4
        %v530 = vshll.u32 %v188, 16
        %v532 = vrot.slane %v530, 5
        %v533 = vor.u32 %v529, %v532
        %v534 = vrot.slane %v533, 4
        %v536 = vshll.u32 %v189, 16
        %v538 = vrot.slane %v536, 5
        %v539 = vsel %vm213, %v534, %v538
        %v540 = vshrl.u32 %v189, 16
        %v542 = vrot.slane %v540, 4
        %v543 = vor.u32 %v542, %v538
        %v544 = vrot.slane %v543, 4
        %v546 = vshll.u32 %v208, 16
        %v548 = vrot.slane %v546, 5
        %v549 = vsel %vm213, %v544, %v548
        %v551 = vshrl.u32 %v190, 16
        %v553 = vrot.slane %v551, 4
        %v554 = vshll.u32 %v190, 16
        %v556 = vrot.slane %v554, 5
        %v557 = vor.u32 %v553, %v556
        %v558 = vrot.slane %v557, 4
        %v560 = vshll.u32 %v191, 16
        %v562 = vrot.slane %v560, 5
        %v563 = vsel %vm213, %v558, %v562
        %v564 = vshrl.u32 %v191, 16
        %v566 = vrot.slane %v564, 4
        %v567 = vor.u32 %v566, %v562
        %v568 = vrot.slane %v567, 4
        %v570 = vshll.u32 %v209, 16
        %v572 = vrot.slane %v570, 5
        %v573 = vsel %vm213, %v568, %v572
        %v575 = vshrl.u32 %v192, 16
        %v577 = vrot.slane %v575, 4
        %v578 = vshll.u32 %v192, 16
        %v580 = vrot.slane %v578, 5
        %v581 = vor.u32 %v577, %v580
        %v582 = vrot.slane %v581, 4
        %v584 = vshll.u32 %v193, 16
        %v586 = vrot.slane %v584, 5
        %v587 = vsel %vm213, %v582, %v586
        %v588 = vshrl.u32 %v193, 16
        %v590 = vrot.slane %v588, 4
        %v591 = vor.u32 %v590, %v586
        %v592 = vrot.slane %v591, 4
        %v594 = vshll.u32 %v210, 16
        %v596 = vrot.slane %v594, 5
        %v597 = vsel %vm213, %v592, %v596
        %s598 = scalar_lea.vmem %s1, 2
        %v599 = vld [vmem:[%s598] sm:$0x3]
        %v600 = vunpack.c.l.b16 %v227
        %v601 = vunpack.c.l.b16 %v237
        %v602 = vunpack.c.l.b16 %v251
        %v603 = vunpack.c.l.b16 %v261
        %v604 = vunpack.c.l.b16 %v275
        %v605 = vunpack.c.l.b16 %v285
        %v606 = vunpack.c.l.b16 %v299
        %v607 = vunpack.c.l.b16 %v309
        %v608 = vunpack.c.l.b16 %v323
        %v609 = vunpack.c.l.b16 %v333
        %v610 = vunpack.c.l.b16 %v347
        %v611 = vunpack.c.l.b16 %v357
        %v612 = vunpack.c.l.b16 %v371
        %v613 = vunpack.c.l.b16 %v381
        %v614 = vunpack.c.l.b16 %v395
        %v615 = vunpack.c.l.b16 %v405
        %v616 = vunpack.c.l.b16 %v419
        %v617 = vunpack.c.l.b16 %v429
        %v618 = vunpack.c.l.b16 %v443
        %v619 = vunpack.c.l.b16 %v453
        %v620 = vunpack.c.l.b16 %v467
        %v621 = vunpack.c.l.b16 %v477
        %v622 = vunpack.c.l.b16 %v491
        %v623 = vunpack.c.l.b16 %v501
        %v624 = vunpack.c.l.b16 %v515
        %v625 = vunpack.c.l.b16 %v525
        %v626 = vunpack.c.l.b16 %v539
        %v627 = vunpack.c.l.b16 %v549
        %v628 = vunpack.c.l.b16 %v563
        %v629 = vunpack.c.l.b16 %v573
        %v630 = vunpack.c.l.b16 %v587
        %v631 = vunpack.c.l.b16 %v597
        %v632 = vpack.c.b16 %v601, %v600
        %v633 = vpack.c.b16 %v603, %v602
        %v634 = vpack.c.b16 %v605, %v604
        %v635 = vpack.c.b16 %v607, %v606
        %v636 = vpack.c.b16 %v609, %v608
        %v637 = vpack.c.b16 %v611, %v610
        %v638 = vpack.c.b16 %v613, %v612
        %v639 = vpack.c.b16 %v615, %v614
        %v640 = vpack.c.b16 %v617, %v616
        %v641 = vpack.c.b16 %v619, %v618
        %v642 = vpack.c.b16 %v621, %v620
        %v643 = vpack.c.b16 %v623, %v622
        %v644 = vpack.c.b16 %v625, %v624
        %v645 = vpack.c.b16 %v627, %v626
        %v646 = vpack.c.b16 %v629, %v628
        %v647 = vpack.c.b16 %v631, %v630
        %vm648 = vcmask 31744
        %v650 = vsel %vm648, %v632, 0
        %v653 = vsel %vm648, %v633, 0
        %v656 = vsel %vm648, %v634, 0
        %v659 = vsel %vm648, %v635, 0
        %v662 = vsel %vm648, %v636, 0
        %v665 = vsel %vm648, %v637, 0
        %v668 = vsel %vm648, %v638, 0
        %v671 = vsel %vm648, %v639, 0
        %v674 = vsel %vm648, %v640, 0
        %v677 = vsel %vm648, %v641, 0
        %v680 = vsel %vm648, %v642, 0
        %v683 = vsel %vm648, %v643, 0
        %v686 = vsel %vm648, %v644, 0
        %v689 = vsel %vm648, %v645, 0
        %v692 = vsel %vm648, %v646, 0
        %v695 = vsel %vm648, %v647, 0
        %vm697 = vcmask 1041408
        %v699 = vsel %vm697, %v599, 0
        %701 = vmatprep.subr.bf16.mxu0 0
        %702 = vmatpush1.bf16.msra.mxu0 %v699
        %703 = vmatprep.subr.bf16.mxu0 0
        %704 = vmatpush1.bf16.msra.mxu0 0
        %705 = vmatprep.subr.bf16.mxu0 0
        %706 = vmatpush1.bf16.msra.mxu0 0
        %707 = vmatprep.subr.bf16.mxu0 0
        %708 = vmatpush1.bf16.msra.mxu0 0
        %709 = vmatprep.subr.bf16.mxu0 0
        %710 = vmatpush1.bf16.msra.mxu0 0
        %711 = vmatprep.subr.bf16.mxu0 0
        %712 = vmatpush1.bf16.msra.mxu0 0
        %713 = vmatprep.subr.bf16.mxu0 0
        %714 = vmatpush1.bf16.msra.mxu0 0
        %715 = vmatprep.subr.bf16.mxu0 0
        %716 = vmatpush1.bf16.msra.mxu0 0
        %717 = vmatprep.subr.bf16.mxu0 0
        %718 = vmatpush1.bf16.msra.mxu0 0
        %719 = vmatprep.subr.bf16.mxu0 0
        %720 = vmatpush1.bf16.msra.mxu0 0
        %721 = vmatprep.subr.bf16.mxu0 0
        %722 = vmatpush1.bf16.msra.mxu0 0
        %723 = vmatprep.subr.bf16.mxu0 0
        %724 = vmatpush1.bf16.msra.mxu0 0
        %725 = vmatprep.subr.bf16.mxu0 0
        %726 = vmatpush1.bf16.msra.mxu0 0
        %727 = vmatprep.subr.bf16.mxu0 0
        %728 = vmatpush1.bf16.msra.mxu0 0
        %729 = vmatprep.subr.bf16.mxu0 0
        %730 = vmatpush1.bf16.msra.mxu0 0
        %731 = vmatprep.subr.bf16.mxu0 0
        %732 = vmatpush1.bf16.msra.mxu0 0
        %733 = vmatprep.mubr.bf16.mxu0 0
        %734 = vmatmul.mubr.bf16.gmra.mrb[0].mxu0 %v650
        %v735 = vpop.f32.mrb[0].mxu0
        %v736 = vadd.f32 0.0, %v735
        %v737 = vpop.f32.mrb[0].mxu0
        %v738 = vpop.f32.mrb[0].mxu0
        %v739 = vadd.f32 0.0, %v738
        %v740 = vpop.f32.mrb[0].mxu0
        %741 = vmatprep.mubr.bf16.mxu0 0
        %742 = vmatmul.mubr.bf16.gmra.mrb[0].mxu0 %v653
        %v743 = vpop.f32.mrb[0].mxu0
        %v744 = vadd.f32 0.0, %v743
        %v745 = vpop.f32.mrb[0].mxu0
        %v746 = vpop.f32.mrb[0].mxu0
        %v747 = vadd.f32 0.0, %v746
        %v748 = vpop.f32.mrb[0].mxu0
        %749 = vmatprep.mubr.bf16.mxu0 0
        %750 = vmatmul.mubr.bf16.gmra.mrb[0].mxu0 %v656
        %v751 = vpop.f32.mrb[0].mxu0
        %v752 = vadd.f32 0.0, %v751
        %v753 = vpop.f32.mrb[0].mxu0
        %v754 = vpop.f32.mrb[0].mxu0
        %v755 = vadd.f32 0.0, %v754
        %v756 = vpop.f32.mrb[0].mxu0
        %757 = vmatprep.mubr.bf16.mxu0 0
        %758 = vmatmul.mubr.bf16.gmra.mrb[0].mxu0 %v659
        %v759 = vpop.f32.mrb[0].mxu0
        %v760 = vadd.f32 0.0, %v759
        %v761 = vpop.f32.mrb[0].mxu0
        %v762 = vpop.f32.mrb[0].mxu0
        %v763 = vadd.f32 0.0, %v762
        %v764 = vpop.f32.mrb[0].mxu0
        %765 = vmatprep.mubr.bf16.mxu0 0
        %766 = vmatmul.mubr.bf16.gmra.mrb[0].mxu0 %v662
        %v767 = vpop.f32.mrb[0].mxu0
        %v768 = vadd.f32 0.0, %v767
        %v769 = vpop.f32.mrb[0].mxu0
        %v770 = vpop.f32.mrb[0].mxu0
        %v771 = vadd.f32 0.0, %v770
        %v772 = vpop.f32.mrb[0].mxu0
        %773 = vmatprep.mubr.bf16.mxu0 0
        %774 = vmatmul.mubr.bf16.gmra.mrb[0].mxu0 %v665
        %v775 = vpop.f32.mrb[0].mxu0
        %v776 = vadd.f32 0.0, %v775
        %v777 = vpop.f32.mrb[0].mxu0
        %v778 = vpop.f32.mrb[0].mxu0
        %v779 = vadd.f32 0.0, %v778
        %v780 = vpop.f32.mrb[0].mxu0
        %781 = vmatprep.mubr.bf16.mxu0 0
        %782 = vmatmul.mubr.bf16.gmra.mrb[0].mxu0 %v668
        %v783 = vpop.f32.mrb[0].mxu0
        %v784 = vadd.f32 0.0, %v783
        %v785 = vpop.f32.mrb[0].mxu0
        %v786 = vpop.f32.mrb[0].mxu0
        %v787 = vadd.f32 0.0, %v786
        %v788 = vpop.f32.mrb[0].mxu0
        %789 = vmatprep.mubr.bf16.mxu0 0
        %790 = vmatmul.mubr.bf16.gmra.mrb[0].mxu0 %v671
        %v791 = vpop.f32.mrb[0].mxu0
        %v792 = vadd.f32 0.0, %v791
        %v793 = vpop.f32.mrb[0].mxu0
        %v794 = vpop.f32.mrb[0].mxu0
        %v795 = vadd.f32 0.0, %v794
        %v796 = vpop.f32.mrb[0].mxu0
        %797 = vmatprep.mubr.bf16.mxu0 0
        %798 = vmatmul.mubr.bf16.gmra.mrb[0].mxu0 %v674
        %v799 = vpop.f32.mrb[0].mxu0
        %v800 = vadd.f32 0.0, %v799
        %v801 = vpop.f32.mrb[0].mxu0
        %v802 = vpop.f32.mrb[0].mxu0
        %v803 = vadd.f32 0.0, %v802
        %v804 = vpop.f32.mrb[0].mxu0
        %805 = vmatprep.mubr.bf16.mxu0 0
        %806 = vmatmul.mubr.bf16.gmra.mrb[0].mxu0 %v677
        %v807 = vpop.f32.mrb[0].mxu0
        %v808 = vadd.f32 0.0, %v807
        %v809 = vpop.f32.mrb[0].mxu0
        %v810 = vpop.f32.mrb[0].mxu0
        %v811 = vadd.f32 0.0, %v810
        %v812 = vpop.f32.mrb[0].mxu0
        %813 = vmatprep.mubr.bf16.mxu0 0
        %814 = vmatmul.mubr.bf16.gmra.mrb[0].mxu0 %v680
        %v815 = vpop.f32.mrb[0].mxu0
        %v816 = vadd.f32 0.0, %v815
        %v817 = vpop.f32.mrb[0].mxu0
        %v818 = vpop.f32.mrb[0].mxu0
        %v819 = vadd.f32 0.0, %v818
        %v820 = vpop.f32.mrb[0].mxu0
        %821 = vmatprep.mubr.bf16.mxu0 0
        %822 = vmatmul.mubr.bf16.gmra.mrb[0].mxu0 %v683
        %v823 = vpop.f32.mrb[0].mxu0
        %v824 = vadd.f32 0.0, %v823
        %v825 = vpop.f32.mrb[0].mxu0
        %v826 = vpop.f32.mrb[0].mxu0
        %v827 = vadd.f32 0.0, %v826
        %v828 = vpop.f32.mrb[0].mxu0
        %829 = vmatprep.mubr.bf16.mxu0 0
        %830 = vmatmul.mubr.bf16.gmra.mrb[0].mxu0 %v686
        %v831 = vpop.f32.mrb[0].mxu0
        %v832 = vadd.f32 0.0, %v831
        %v833 = vpop.f32.mrb[0].mxu0
        %v834 = vpop.f32.mrb[0].mxu0
        %v835 = vadd.f32 0.0, %v834
        %v836 = vpop.f32.mrb[0].mxu0
        %837 = vmatprep.mubr.bf16.mxu0 0
        %838 = vmatmul.mubr.bf16.gmra.mrb[0].mxu0 %v689
        %v839 = vpop.f32.mrb[0].mxu0
        %v840 = vadd.f32 0.0, %v839
        %v841 = vpop.f32.mrb[0].mxu0
        %v842 = vpop.f32.mrb[0].mxu0
        %v843 = vadd.f32 0.0, %v842
        %v844 = vpop.f32.mrb[0].mxu0
        %845 = vmatprep.mubr.bf16.mxu0 0
        %846 = vmatmul.mubr.bf16.gmra.mrb[0].mxu0 %v692
        %v847 = vpop.f32.mrb[0].mxu0
        %v848 = vadd.f32 0.0, %v847
        %v849 = vpop.f32.mrb[0].mxu0
        %v850 = vpop.f32.mrb[0].mxu0
        %v851 = vadd.f32 0.0, %v850
        %v852 = vpop.f32.mrb[0].mxu0
        %853 = vmatprep.mubr.bf16.mxu0 0
        %854 = vmatmul.mubr.bf16.gmra.mrb[0].mxu0 %v695
        %v855 = vpop.f32.mrb[0].mxu0
        %v856 = vadd.f32 0.0, %v855
        %v857 = vpop.f32.mrb[0].mxu0
        %v858 = vpop.f32.mrb[0].mxu0
        %v859 = vadd.f32 0.0, %v858
        %v860 = vpop.f32.mrb[0].mxu0
        %861 = vdwg.mxu0
        %v894 = vunpack.c.l.b16 %v162
        %v895 = vunpack.c.l.b16 %v163
        %v896 = vunpack.c.l.b16 %v164
        %v897 = vunpack.c.l.b16 %v165
        %v898 = vunpack.c.l.b16 %v166
        %v899 = vunpack.c.l.b16 %v167
        %v900 = vunpack.c.l.b16 %v168
        %v901 = vunpack.c.l.b16 %v169
        %v902 = vunpack.c.l.b16 %v170
        %v903 = vunpack.c.l.b16 %v171
        %v904 = vunpack.c.l.b16 %v172
        %v905 = vunpack.c.l.b16 %v173
        %v906 = vunpack.c.l.b16 %v174
        %v907 = vunpack.c.l.b16 %v175
        %v908 = vunpack.c.l.b16 %v176
        %v909 = vunpack.c.l.b16 %v177
        %v910 = vunpack.c.l.b16 %v178
        %v911 = vunpack.c.l.b16 %v179
        %v912 = vunpack.c.l.b16 %v180
        %v913 = vunpack.c.l.b16 %v181
        %v914 = vunpack.c.l.b16 %v182
        %v915 = vunpack.c.l.b16 %v183
        %v916 = vunpack.c.l.b16 %v184
        %v917 = vunpack.c.l.b16 %v185
        %v918 = vunpack.c.l.b16 %v186
        %v919 = vunpack.c.l.b16 %v187
        %v920 = vunpack.c.l.b16 %v188
        %v921 = vunpack.c.l.b16 %v189
        %v922 = vunpack.c.l.b16 %v190
        %v923 = vunpack.c.l.b16 %v191
        %v924 = vunpack.c.l.b16 %v192
        %v925 = vunpack.c.l.b16 %v193
        %v926 = vpack.c.b16 %v895, %v894
        %v927 = vpack.c.b16 %v897, %v896
        %v928 = vpack.c.b16 %v899, %v898
        %v929 = vpack.c.b16 %v901, %v900
        %v930 = vpack.c.b16 %v903, %v902
        %v931 = vpack.c.b16 %v905, %v904
        %v932 = vpack.c.b16 %v907, %v906
        %v933 = vpack.c.b16 %v909, %v908
        %v934 = vpack.c.b16 %v911, %v910
        %v935 = vpack.c.b16 %v913, %v912
        %v936 = vpack.c.b16 %v915, %v914
        %v937 = vpack.c.b16 %v917, %v916
        %v938 = vpack.c.b16 %v919, %v918
        %v939 = vpack.c.b16 %v921, %v920
        %v940 = vpack.c.b16 %v923, %v922
        %v941 = vpack.c.b16 %v925, %v924
        %v943 = vsel %vm648, %v926, 0
        %v946 = vsel %vm648, %v927, 0
        %v949 = vsel %vm648, %v928, 0
        %v952 = vsel %vm648, %v929, 0
        %v955 = vsel %vm648, %v930, 0
        %v958 = vsel %vm648, %v931, 0
        %v961 = vsel %vm648, %v932, 0
        %v964 = vsel %vm648, %v933, 0
        %v967 = vsel %vm648, %v934, 0
        %v970 = vsel %vm648, %v935, 0
        %v973 = vsel %vm648, %v936, 0
        %v976 = vsel %vm648, %v937, 0
        %v979 = vsel %vm648, %v938, 0
        %v982 = vsel %vm648, %v939, 0
        %v985 = vsel %vm648, %v940, 0
        %v988 = vsel %vm648, %v941, 0
        %v991 = vsel %vm697, %v194, 0
        %993 = vmatprep.subr.bf16.mxu0 0
        %994 = vmatpush1.bf16.msra.mxu0 %v991
        %995 = vmatprep.subr.bf16.mxu0 0
        %996 = vmatpush1.bf16.msra.mxu0 0
        %997 = vmatprep.subr.bf16.mxu0 0
        %998 = vmatpush1.bf16.msra.mxu0 0
        %999 = vmatprep.subr.bf16.mxu0 0
        %1000 = vmatpush1.bf16.msra.mxu0 0
        %1001 = vmatprep.subr.bf16.mxu0 0
        %1002 = vmatpush1.bf16.msra.mxu0 0
        %1003 = vmatprep.subr.bf16.mxu0 0
        %1004 = vmatpush1.bf16.msra.mxu0 0
        %1005 = vmatprep.subr.bf16.mxu0 0
        %1006 = vmatpush1.bf16.msra.mxu0 0
        %1007 = vmatprep.subr.bf16.mxu0 0
        %1008 = vmatpush1.bf16.msra.mxu0 0
        %1009 = vmatprep.subr.bf16.mxu0 0
        %1010 = vmatpush1.bf16.msra.mxu0 0
        %1011 = vmatprep.subr.bf16.mxu0 0
        %1012 = vmatpush1.bf16.msra.mxu0 0
        %1013 = vmatprep.subr.bf16.mxu0 0
        %1014 = vmatpush1.bf16.msra.mxu0 0
        %1015 = vmatprep.subr.bf16.mxu0 0
        %1016 = vmatpush1.bf16.msra.mxu0 0
        %1017 = vmatprep.subr.bf16.mxu0 0
        %1018 = vmatpush1.bf16.msra.mxu0 0
        %1019 = vmatprep.subr.bf16.mxu0 0
        %1020 = vmatpush1.bf16.msra.mxu0 0
        %1021 = vmatprep.subr.bf16.mxu0 0
        %1022 = vmatpush1.bf16.msra.mxu0 0
        %1023 = vmatprep.subr.bf16.mxu0 0
        %1024 = vmatpush1.bf16.msra.mxu0 0
        %1025 = vmatprep.mubr.bf16.mxu0 0
        %1026 = vmatmul.mubr.bf16.gmra.mrb[0].mxu0 %v943
        %v1027 = vpop.f32.mrb[0].mxu0
        %v1028 = vadd.f32 %v736, %v1027
        %v1029 = vpop.f32.mrb[0].mxu0
        %v1030 = vpop.f32.mrb[0].mxu0
        %v1031 = vadd.f32 %v739, %v1030
        %v1032 = vpop.f32.mrb[0].mxu0
        %1033 = vmatprep.mubr.bf16.mxu0 0
        %1034 = vmatmul.mubr.bf16.gmra.mrb[0].mxu0 %v946
        %v1035 = vpop.f32.mrb[0].mxu0
        %v1036 = vadd.f32 %v744, %v1035
        %v1037 = vpop.f32.mrb[0].mxu0
        %v1038 = vpop.f32.mrb[0].mxu0
        %v1039 = vadd.f32 %v747, %v1038
        %v1040 = vpop.f32.mrb[0].mxu0
        %1041 = vmatprep.mubr.bf16.mxu0 0
        %1042 = vmatmul.mubr.bf16.gmra.mrb[0].mxu0 %v949
        %v1043 = vpop.f32.mrb[0].mxu0
        %v1044 = vadd.f32 %v752, %v1043
        %v1045 = vpop.f32.mrb[0].mxu0
        %v1046 = vpop.f32.mrb[0].mxu0
        %v1047 = vadd.f32 %v755, %v1046
        %v1048 = vpop.f32.mrb[0].mxu0
        %1049 = vmatprep.mubr.bf16.mxu0 0
        %1050 = vmatmul.mubr.bf16.gmra.mrb[0].mxu0 %v952
        %v1051 = vpop.f32.mrb[0].mxu0
        %v1052 = vadd.f32 %v760, %v1051
        %v1053 = vpop.f32.mrb[0].mxu0
        %v1054 = vpop.f32.mrb[0].mxu0
        %v1055 = vadd.f32 %v763, %v1054
        %v1056 = vpop.f32.mrb[0].mxu0
        %1057 = vmatprep.mubr.bf16.mxu0 0
        %1058 = vmatmul.mubr.bf16.gmra.mrb[0].mxu0 %v955
        %v1059 = vpop.f32.mrb[0].mxu0
        %v1060 = vadd.f32 %v768, %v1059
        %v1061 = vpop.f32.mrb[0].mxu0
        %v1062 = vpop.f32.mrb[0].mxu0
        %v1063 = vadd.f32 %v771, %v1062
        %v1064 = vpop.f32.mrb[0].mxu0
        %1065 = vmatprep.mubr.bf16.mxu0 0
        %1066 = vmatmul.mubr.bf16.gmra.mrb[0].mxu0 %v958
        %v1067 = vpop.f32.mrb[0].mxu0
        %v1068 = vadd.f32 %v776, %v1067
        %v1069 = vpop.f32.mrb[0].mxu0
        %v1070 = vpop.f32.mrb[0].mxu0
        %v1071 = vadd.f32 %v779, %v1070
        %v1072 = vpop.f32.mrb[0].mxu0
        %1073 = vmatprep.mubr.bf16.mxu0 0
        %1074 = vmatmul.mubr.bf16.gmra.mrb[0].mxu0 %v961
        %v1075 = vpop.f32.mrb[0].mxu0
        %v1076 = vadd.f32 %v784, %v1075
        %v1077 = vpop.f32.mrb[0].mxu0
        %v1078 = vpop.f32.mrb[0].mxu0
        %v1079 = vadd.f32 %v787, %v1078
        %v1080 = vpop.f32.mrb[0].mxu0
        %1081 = vmatprep.mubr.bf16.mxu0 0
        %1082 = vmatmul.mubr.bf16.gmra.mrb[0].mxu0 %v964
        %v1083 = vpop.f32.mrb[0].mxu0
        %v1084 = vadd.f32 %v792, %v1083
        %v1085 = vpop.f32.mrb[0].mxu0
        %v1086 = vpop.f32.mrb[0].mxu0
        %v1087 = vadd.f32 %v795, %v1086
        %v1088 = vpop.f32.mrb[0].mxu0
        %1089 = vmatprep.mubr.bf16.mxu0 0
        %1090 = vmatmul.mubr.bf16.gmra.mrb[0].mxu0 %v967
        %v1091 = vpop.f32.mrb[0].mxu0
        %v1092 = vadd.f32 %v800, %v1091
        %v1093 = vpop.f32.mrb[0].mxu0
        %v1094 = vpop.f32.mrb[0].mxu0
        %v1095 = vadd.f32 %v803, %v1094
        %v1096 = vpop.f32.mrb[0].mxu0
        %1097 = vmatprep.mubr.bf16.mxu0 0
        %1098 = vmatmul.mubr.bf16.gmra.mrb[0].mxu0 %v970
        %v1099 = vpop.f32.mrb[0].mxu0
        %v1100 = vadd.f32 %v808, %v1099
        %v1101 = vpop.f32.mrb[0].mxu0
        %v1102 = vpop.f32.mrb[0].mxu0
        %v1103 = vadd.f32 %v811, %v1102
        %v1104 = vpop.f32.mrb[0].mxu0
        %1105 = vmatprep.mubr.bf16.mxu0 0
        %1106 = vmatmul.mubr.bf16.gmra.mrb[0].mxu0 %v973
        %v1107 = vpop.f32.mrb[0].mxu0
        %v1108 = vadd.f32 %v816, %v1107
        %v1109 = vpop.f32.mrb[0].mxu0
        %v1110 = vpop.f32.mrb[0].mxu0
        %v1111 = vadd.f32 %v819, %v1110
        %v1112 = vpop.f32.mrb[0].mxu0
        %1113 = vmatprep.mubr.bf16.mxu0 0
        %1114 = vmatmul.mubr.bf16.gmra.mrb[0].mxu0 %v976
        %v1115 = vpop.f32.mrb[0].mxu0
        %v1116 = vadd.f32 %v824, %v1115
        %v1117 = vpop.f32.mrb[0].mxu0
        %v1118 = vpop.f32.mrb[0].mxu0
        %v1119 = vadd.f32 %v827, %v1118
        %v1120 = vpop.f32.mrb[0].mxu0
        %1121 = vmatprep.mubr.bf16.mxu0 0
        %1122 = vmatmul.mubr.bf16.gmra.mrb[0].mxu0 %v979
        %v1123 = vpop.f32.mrb[0].mxu0
        %v1124 = vadd.f32 %v832, %v1123
        %v1125 = vpop.f32.mrb[0].mxu0
        %v1126 = vpop.f32.mrb[0].mxu0
        %v1127 = vadd.f32 %v835, %v1126
        %v1128 = vpop.f32.mrb[0].mxu0
        %1129 = vmatprep.mubr.bf16.mxu0 0
        %1130 = vmatmul.mubr.bf16.gmra.mrb[0].mxu0 %v982
        %v1131 = vpop.f32.mrb[0].mxu0
        %v1132 = vadd.f32 %v840, %v1131
        %v1133 = vpop.f32.mrb[0].mxu0
        %v1134 = vpop.f32.mrb[0].mxu0
        %v1135 = vadd.f32 %v843, %v1134
        %v1136 = vpop.f32.mrb[0].mxu0
        %1137 = vmatprep.mubr.bf16.mxu0 0
        %1138 = vmatmul.mubr.bf16.gmra.mrb[0].mxu0 %v985
        %v1139 = vpop.f32.mrb[0].mxu0
        %v1140 = vadd.f32 %v848, %v1139
        %v1141 = vpop.f32.mrb[0].mxu0
        %v1142 = vpop.f32.mrb[0].mxu0
        %v1143 = vadd.f32 %v851, %v1142
        %v1144 = vpop.f32.mrb[0].mxu0
        %1145 = vmatprep.mubr.bf16.mxu0 0
        %1146 = vmatmul.mubr.bf16.gmra.mrb[0].mxu0 %v988
        %v1147 = vpop.f32.mrb[0].mxu0
        %v1148 = vadd.f32 %v856, %v1147
        %v1149 = vpop.f32.mrb[0].mxu0
        %v1150 = vpop.f32.mrb[0].mxu0
        %v1151 = vadd.f32 %v859, %v1150
        %v1152 = vpop.f32.mrb[0].mxu0
        %1153 = vdwg.mxu0
        %v1154 = vld [vmem:[%s161] sm:$0xe]
        %v1155 = vld [vmem:[%s161 + $0xc] sm:$0xe]
        %v1156 = vld [vmem:[%s161 + $0x18] sm:$0xe]
        %v1157 = vld [vmem:[%s161 + $0x24] sm:$0xe]
        %v1158 = vld [vmem:[%s161 + $0x30] sm:$0xe]
        %v1159 = vld [vmem:[%s161 + $0x3c] sm:$0xe]
        %v1160 = vld [vmem:[%s161 + $0x48] sm:$0xe]
        %v1161 = vld [vmem:[%s161 + $0x54] sm:$0xe]
        %v1162 = vld [vmem:[%s161 + $0x60] sm:$0xe]
        %v1163 = vld [vmem:[%s161 + $0x6c] sm:$0xe]
        %v1164 = vld [vmem:[%s161 + $0x78] sm:$0xe]
        %v1165 = vld [vmem:[%s161 + $0x84] sm:$0xe]
        %v1166 = vld [vmem:[%s161 + $0x90] sm:$0xe]
        %v1167 = vld [vmem:[%s161 + $0x9c] sm:$0xe]
        %v1168 = vld [vmem:[%s161 + $0xa8] sm:$0xe]
        %v1169 = vld [vmem:[%s161 + $0xb4] sm:$0xe]
        %vm1202 = vcmask 1042432
        %vm1203 = vcmask 1046532
        %vm1204 = vmor %vm1202, %vm1203
        %v1205 = vrot.slane %v1154, 5
        %v1206 = vrot.slane %v1205, 4
        %v1207 = vrot.slane %v163, 5
        %v1208 = vsel %vm1204, %v1206, %v1207
        %v1209 = vrot.slane %v1207, 4
        %v1210 = vrot.slane %v195, 5
        %v1211 = vsel %vm1204, %v1209, %v1210
        %v1212 = vrot.slane %v1155, 5
        %v1213 = vrot.slane %v1212, 4
        %v1214 = vrot.slane %v165, 5
        %v1215 = vsel %vm1204, %v1213, %v1214
        %v1216 = vrot.slane %v1214, 4
        %v1217 = vrot.slane %v196, 5
        %v1218 = vsel %vm1204, %v1216, %v1217
        %v1219 = vrot.slane %v1156, 5
        %v1220 = vrot.slane %v1219, 4
        %v1221 = vrot.slane %v167, 5
        %v1222 = vsel %vm1204, %v1220, %v1221
        %v1223 = vrot.slane %v1221, 4
        %v1224 = vrot.slane %v197, 5
        %v1225 = vsel %vm1204, %v1223, %v1224
        %v1226 = vrot.slane %v1157, 5
        %v1227 = vrot.slane %v1226, 4
        %v1228 = vrot.slane %v169, 5
        %v1229 = vsel %vm1204, %v1227, %v1228
        %v1230 = vrot.slane %v1228, 4
        %v1231 = vrot.slane %v198, 5
        %v1232 = vsel %vm1204, %v1230, %v1231
        %v1233 = vrot.slane %v1158, 5
        %v1234 = vrot.slane %v1233, 4
        %v1235 = vrot.slane %v171, 5
        %v1236 = vsel %vm1204, %v1234, %v1235
        %v1237 = vrot.slane %v1235, 4
        %v1238 = vrot.slane %v199, 5
        %v1239 = vsel %vm1204, %v1237, %v1238
        %v1240 = vrot.slane %v1159, 5
        %v1241 = vrot.slane %v1240, 4
        %v1242 = vrot.slane %v173, 5
        %v1243 = vsel %vm1204, %v1241, %v1242
        %v1244 = vrot.slane %v1242, 4
        %v1245 = vrot.slane %v200, 5
        %v1246 = vsel %vm1204, %v1244, %v1245
        %v1247 = vrot.slane %v1160, 5
        %v1248 = vrot.slane %v1247, 4
        %v1249 = vrot.slane %v175, 5
        %v1250 = vsel %vm1204, %v1248, %v1249
        %v1251 = vrot.slane %v1249, 4
        %v1252 = vrot.slane %v201, 5
        %v1253 = vsel %vm1204, %v1251, %v1252
        %v1254 = vrot.slane %v1161, 5
        %v1255 = vrot.slane %v1254, 4
        %v1256 = vrot.slane %v177, 5
        %v1257 = vsel %vm1204, %v1255, %v1256
        %v1258 = vrot.slane %v1256, 4
        %v1259 = vrot.slane %v202, 5
        %v1260 = vsel %vm1204, %v1258, %v1259
        %v1261 = vrot.slane %v1162, 5
        %v1262 = vrot.slane %v1261, 4
        %v1263 = vrot.slane %v179, 5
        %v1264 = vsel %vm1204, %v1262, %v1263
        %v1265 = vrot.slane %v1263, 4
        %v1266 = vrot.slane %v203, 5
        %v1267 = vsel %vm1204, %v1265, %v1266
        %v1268 = vrot.slane %v1163, 5
        %v1269 = vrot.slane %v1268, 4
        %v1270 = vrot.slane %v181, 5
        %v1271 = vsel %vm1204, %v1269, %v1270
        %v1272 = vrot.slane %v1270, 4
        %v1273 = vrot.slane %v204, 5
        %v1274 = vsel %vm1204, %v1272, %v1273
        %v1275 = vrot.slane %v1164, 5
        %v1276 = vrot.slane %v1275, 4
        %v1277 = vrot.slane %v183, 5
        %v1278 = vsel %vm1204, %v1276, %v1277
        %v1279 = vrot.slane %v1277, 4
        %v1280 = vrot.slane %v205, 5
        %v1281 = vsel %vm1204, %v1279, %v1280
        %v1282 = vrot.slane %v1165, 5
        %v1283 = vrot.slane %v1282, 4
        %v1284 = vrot.slane %v185, 5
        %v1285 = vsel %vm1204, %v1283, %v1284
        %v1286 = vrot.slane %v1284, 4
        %v1287 = vrot.slane %v206, 5
        %v1288 = vsel %vm1204, %v1286, %v1287
        %v1289 = vrot.slane %v1166, 5
        %v1290 = vrot.slane %v1289, 4
        %v1291 = vrot.slane %v187, 5
        %v1292 = vsel %vm1204, %v1290, %v1291
        %v1293 = vrot.slane %v1291, 4
        %v1294 = vrot.slane %v207, 5
        %v1295 = vsel %vm1204, %v1293, %v1294
        %v1296 = vrot.slane %v1167, 5
        %v1297 = vrot.slane %v1296, 4
        %v1298 = vrot.slane %v189, 5
        %v1299 = vsel %vm1204, %v1297, %v1298
        %v1300 = vrot.slane %v1298, 4
        %v1301 = vrot.slane %v208, 5
        %v1302 = vsel %vm1204, %v1300, %v1301
        %v1303 = vrot.slane %v1168, 5
        %v1304 = vrot.slane %v1303, 4
        %v1305 = vrot.slane %v191, 5
        %v1306 = vsel %vm1204, %v1304, %v1305
        %v1307 = vrot.slane %v1305, 4
        %v1308 = vrot.slane %v209, 5
        %v1309 = vsel %vm1204, %v1307, %v1308
        %v1310 = vrot.slane %v1169, 5
        %v1311 = vrot.slane %v1310, 4
        %v1312 = vrot.slane %v193, 5
        %v1313 = vsel %vm1204, %v1311, %v1312
        %v1314 = vrot.slane %v1312, 4
        %v1315 = vrot.slane %v210, 5
        %v1316 = vsel %vm1204, %v1314, %v1315
        %s1317 = scalar_lea.vmem %s1, 4
        %v1318 = vld [vmem:[%s1317] sm:$0x3]
        %v1319 = vunpack.c.l.b16 %v1208
        %v1320 = vunpack.c.l.b16 %v1211
        %v1321 = vunpack.c.l.b16 %v1215
        %v1322 = vunpack.c.l.b16 %v1218
        %v1323 = vunpack.c.l.b16 %v1222
        %v1324 = vunpack.c.l.b16 %v1225
        %v1325 = vunpack.c.l.b16 %v1229
        %v1326 = vunpack.c.l.b16 %v1232
        %v1327 = vunpack.c.l.b16 %v1236
        %v1328 = vunpack.c.l.b16 %v1239
        %v1329 = vunpack.c.l.b16 %v1243
        %v1330 = vunpack.c.l.b16 %v1246
        %v1331 = vunpack.c.l.b16 %v1250
        %v1332 = vunpack.c.l.b16 %v1253
        %v1333 = vunpack.c.l.b16 %v1257
        %v1334 = vunpack.c.l.b16 %v1260
        %v1335 = vunpack.c.l.b16 %v1264
        %v1336 = vunpack.c.l.b16 %v1267
        %v1337 = vunpack.c.l.b16 %v1271
        %v1338 = vunpack.c.l.b16 %v1274
        %v1339 = vunpack.c.l.b16 %v1278
        %v1340 = vunpack.c.l.b16 %v1281
        %v1341 = vunpack.c.l.b16 %v1285
        %v1342 = vunpack.c.l.b16 %v1288
        %v1343 = vunpack.c.l.b16 %v1292
        %v1344 = vunpack.c.l.b16 %v1295
        %v1345 = vunpack.c.l.b16 %v1299
        %v1346 = vunpack.c.l.b16 %v1302
        %v1347 = vunpack.c.l.b16 %v1306
        %v1348 = vunpack.c.l.b16 %v1309
        %v1349 = vunpack.c.l.b16 %v1313
        %v1350 = vunpack.c.l.b16 %v1316
        %v1351 = vpack.c.b16 %v1320, %v1319
        %v1352 = vpack.c.b16 %v1322, %v1321
        %v1353 = vpack.c.b16 %v1324, %v1323
        %v1354 = vpack.c.b16 %v1326, %v1325
        %v1355 = vpack.c.b16 %v1328, %v1327
        %v1356 = vpack.c.b16 %v1330, %v1329
        %v1357 = vpack.c.b16 %v1332, %v1331
        %v1358 = vpack.c.b16 %v1334, %v1333
        %v1359 = vpack.c.b16 %v1336, %v1335
        %v1360 = vpack.c.b16 %v1338, %v1337
        %v1361 = vpack.c.b16 %v1340, %v1339
        %v1362 = vpack.c.b16 %v1342, %v1341
        %v1363 = vpack.c.b16 %v1344, %v1343
        %v1364 = vpack.c.b16 %v1346, %v1345
        %v1365 = vpack.c.b16 %v1348, %v1347
        %v1366 = vpack.c.b16 %v1350, %v1349
        %v1368 = vsel %vm648, %v1351, 0
        %v1371 = vsel %vm648, %v1352, 0
        %v1374 = vsel %vm648, %v1353, 0
        %v1377 = vsel %vm648, %v1354, 0
        %v1380 = vsel %vm648, %v1355, 0
        %v1383 = vsel %vm648, %v1356, 0
        %v1386 = vsel %vm648, %v1357, 0
        %v1389 = vsel %vm648, %v1358, 0
        %v1392 = vsel %vm648, %v1359, 0
        %v1395 = vsel %vm648, %v1360, 0
        %v1398 = vsel %vm648, %v1361, 0
        %v1401 = vsel %vm648, %v1362, 0
        %v1404 = vsel %vm648, %v1363, 0
        %v1407 = vsel %vm648, %v1364, 0
        %v1410 = vsel %vm648, %v1365, 0
        %v1413 = vsel %vm648, %v1366, 0
        %v1416 = vsel %vm697, %v1318, 0
        %1418 = vmatprep.subr.bf16.mxu0 0
        %1419 = vmatpush1.bf16.msra.mxu0 %v1416
        %1420 = vmatprep.subr.bf16.mxu0 0
        %1421 = vmatpush1.bf16.msra.mxu0 0
        %1422 = vmatprep.subr.bf16.mxu0 0
        %1423 = vmatpush1.bf16.msra.mxu0 0
        %1424 = vmatprep.subr.bf16.mxu0 0
        %1425 = vmatpush1.bf16.msra.mxu0 0
        %1426 = vmatprep.subr.bf16.mxu0 0
        %1427 = vmatpush1.bf16.msra.mxu0 0
        %1428 = vmatprep.subr.bf16.mxu0 0
        %1429 = vmatpush1.bf16.msra.mxu0 0
        %1430 = vmatprep.subr.bf16.mxu0 0
        %1431 = vmatpush1.bf16.msra.mxu0 0
        %1432 = vmatprep.subr.bf16.mxu0 0
        %1433 = vmatpush1.bf16.msra.mxu0 0
        %1434 = vmatprep.subr.bf16.mxu0 0
        %1435 = vmatpush1.bf16.msra.mxu0 0
        %1436 = vmatprep.subr.bf16.mxu0 0
        %1437 = vmatpush1.bf16.msra.mxu0 0
        %1438 = vmatprep.subr.bf16.mxu0 0
        %1439 = vmatpush1.bf16.msra.mxu0 0
        %1440 = vmatprep.subr.bf16.mxu0 0
        %1441 = vmatpush1.bf16.msra.mxu0 0
        %1442 = vmatprep.subr.bf16.mxu0 0
        %1443 = vmatpush1.bf16.msra.mxu0 0
        %1444 = vmatprep.subr.bf16.mxu0 0
        %1445 = vmatpush1.bf16.msra.mxu0 0
        %1446 = vmatprep.subr.bf16.mxu0 0
        %1447 = vmatpush1.bf16.msra.mxu0 0
        %1448 = vmatprep.subr.bf16.mxu0 0
        %1449 = vmatpush1.bf16.msra.mxu0 0
        %1450 = vmatprep.mubr.bf16.mxu0 0
        %1451 = vmatmul.mubr.bf16.gmra.mrb[0].mxu0 %v1368
        %v1452 = vpop.f32.mrb[0].mxu0
        %v1453 = vadd.f32 0.0, %v1452
        %v1454 = vpop.f32.mrb[0].mxu0
        %v1455 = vpop.f32.mrb[0].mxu0
        %v1456 = vadd.f32 0.0, %v1455
        %v1457 = vpop.f32.mrb[0].mxu0
        %1458 = vmatprep.mubr.bf16.mxu0 0
        %1459 = vmatmul.mubr.bf16.gmra.mrb[0].mxu0 %v1371
        %v1460 = vpop.f32.mrb[0].mxu0
        %v1461 = vadd.f32 0.0, %v1460
        %v1462 = vpop.f32.mrb[0].mxu0
        %v1463 = vpop.f32.mrb[0].mxu0
        %v1464 = vadd.f32 0.0, %v1463
        %v1465 = vpop.f32.mrb[0].mxu0
        %1466 = vmatprep.mubr.bf16.mxu0 0
        %1467 = vmatmul.mubr.bf16.gmra.mrb[0].mxu0 %v1374
        %v1468 = vpop.f32.mrb[0].mxu0
        %v1469 = vadd.f32 0.0, %v1468
        %v1470 = vpop.f32.mrb[0].mxu0
        %v1471 = vpop.f32.mrb[0].mxu0
        %v1472 = vadd.f32 0.0, %v1471
        %v1473 = vpop.f32.mrb[0].mxu0
        %1474 = vmatprep.mubr.bf16.mxu0 0
        %1475 = vmatmul.mubr.bf16.gmra.mrb[0].mxu0 %v1377
        %v1476 = vpop.f32.mrb[0].mxu0
        %v1477 = vadd.f32 0.0, %v1476
        %v1478 = vpop.f32.mrb[0].mxu0
        %v1479 = vpop.f32.mrb[0].mxu0
        %v1480 = vadd.f32 0.0, %v1479
        %v1481 = vpop.f32.mrb[0].mxu0
        %1482 = vmatprep.mubr.bf16.mxu0 0
        %1483 = vmatmul.mubr.bf16.gmra.mrb[0].mxu0 %v1380
        %v1484 = vpop.f32.mrb[0].mxu0
        %v1485 = vadd.f32 0.0, %v1484
        %v1486 = vpop.f32.mrb[0].mxu0
        %v1487 = vpop.f32.mrb[0].mxu0
        %v1488 = vadd.f32 0.0, %v1487
        %v1489 = vpop.f32.mrb[0].mxu0
        %1490 = vmatprep.mubr.bf16.mxu0 0
        %1491 = vmatmul.mubr.bf16.gmra.mrb[0].mxu0 %v1383
        %v1492 = vpop.f32.mrb[0].mxu0
        %v1493 = vadd.f32 0.0, %v1492
        %v1494 = vpop.f32.mrb[0].mxu0
        %v1495 = vpop.f32.mrb[0].mxu0
        %v1496 = vadd.f32 0.0, %v1495
        %v1497 = vpop.f32.mrb[0].mxu0
        %1498 = vmatprep.mubr.bf16.mxu0 0
        %1499 = vmatmul.mubr.bf16.gmra.mrb[0].mxu0 %v1386
        %v1500 = vpop.f32.mrb[0].mxu0
        %v1501 = vadd.f32 0.0, %v1500
        %v1502 = vpop.f32.mrb[0].mxu0
        %v1503 = vpop.f32.mrb[0].mxu0
        %v1504 = vadd.f32 0.0, %v1503
        %v1505 = vpop.f32.mrb[0].mxu0
        %1506 = vmatprep.mubr.bf16.mxu0 0
        %1507 = vmatmul.mubr.bf16.gmra.mrb[0].mxu0 %v1389
        %v1508 = vpop.f32.mrb[0].mxu0
        %v1509 = vadd.f32 0.0, %v1508
        %v1510 = vpop.f32.mrb[0].mxu0
        %v1511 = vpop.f32.mrb[0].mxu0
        %v1512 = vadd.f32 0.0, %v1511
        %v1513 = vpop.f32.mrb[0].mxu0
        %1514 = vmatprep.mubr.bf16.mxu0 0
        %1515 = vmatmul.mubr.bf16.gmra.mrb[0].mxu0 %v1392
        %v1516 = vpop.f32.mrb[0].mxu0
        %v1517 = vadd.f32 0.0, %v1516
        %v1518 = vpop.f32.mrb[0].mxu0
        %v1519 = vpop.f32.mrb[0].mxu0
        %v1520 = vadd.f32 0.0, %v1519
        %v1521 = vpop.f32.mrb[0].mxu0
        %1522 = vmatprep.mubr.bf16.mxu0 0
        %1523 = vmatmul.mubr.bf16.gmra.mrb[0].mxu0 %v1395
        %v1524 = vpop.f32.mrb[0].mxu0
        %v1525 = vadd.f32 0.0, %v1524
        %v1526 = vpop.f32.mrb[0].mxu0
        %v1527 = vpop.f32.mrb[0].mxu0
        %v1528 = vadd.f32 0.0, %v1527
        %v1529 = vpop.f32.mrb[0].mxu0
        %1530 = vmatprep.mubr.bf16.mxu0 0
        %1531 = vmatmul.mubr.bf16.gmra.mrb[0].mxu0 %v1398
        %v1532 = vpop.f32.mrb[0].mxu0
        %v1533 = vadd.f32 0.0, %v1532
        %v1534 = vpop.f32.mrb[0].mxu0
        %v1535 = vpop.f32.mrb[0].mxu0
        %v1536 = vadd.f32 0.0, %v1535
        %v1537 = vpop.f32.mrb[0].mxu0
        %1538 = vmatprep.mubr.bf16.mxu0 0
        %1539 = vmatmul.mubr.bf16.gmra.mrb[0].mxu0 %v1401
        %v1540 = vpop.f32.mrb[0].mxu0
        %v1541 = vadd.f32 0.0, %v1540
        %v1542 = vpop.f32.mrb[0].mxu0
        %v1543 = vpop.f32.mrb[0].mxu0
        %v1544 = vadd.f32 0.0, %v1543
        %v1545 = vpop.f32.mrb[0].mxu0
        %1546 = vmatprep.mubr.bf16.mxu0 0
        %1547 = vmatmul.mubr.bf16.gmra.mrb[0].mxu0 %v1404
        %v1548 = vpop.f32.mrb[0].mxu0
        %v1549 = vadd.f32 0.0, %v1548
        %v1550 = vpop.f32.mrb[0].mxu0
        %v1551 = vpop.f32.mrb[0].mxu0
        %v1552 = vadd.f32 0.0, %v1551
        %v1553 = vpop.f32.mrb[0].mxu0
        %1554 = vmatprep.mubr.bf16.mxu0 0
        %1555 = vmatmul.mubr.bf16.gmra.mrb[0].mxu0 %v1407
        %v1556 = vpop.f32.mrb[0].mxu0
        %v1557 = vadd.f32 0.0, %v1556
        %v1558 = vpop.f32.mrb[0].mxu0
        %v1559 = vpop.f32.mrb[0].mxu0
        %v1560 = vadd.f32 0.0, %v1559
        %v1561 = vpop.f32.mrb[0].mxu0
        %1562 = vmatprep.mubr.bf16.mxu0 0
        %1563 = vmatmul.mubr.bf16.gmra.mrb[0].mxu0 %v1410
        %v1564 = vpop.f32.mrb[0].mxu0
        %v1565 = vadd.f32 0.0, %v1564
        %v1566 = vpop.f32.mrb[0].mxu0
        %v1567 = vpop.f32.mrb[0].mxu0
        %v1568 = vadd.f32 0.0, %v1567
        %v1569 = vpop.f32.mrb[0].mxu0
        %1570 = vmatprep.mubr.bf16.mxu0 0
        %1571 = vmatmul.mubr.bf16.gmra.mrb[0].mxu0 %v1413
        %v1572 = vpop.f32.mrb[0].mxu0
        %v1573 = vadd.f32 0.0, %v1572
        %v1574 = vpop.f32.mrb[0].mxu0
        %v1575 = vpop.f32.mrb[0].mxu0
        %v1576 = vadd.f32 0.0, %v1575
        %v1577 = vpop.f32.mrb[0].mxu0
        %1578 = vdwg.mxu0
        %v1579 = vadd.f32 %v1028, %v1453
        %v1580 = vadd.f32 %v1031, %v1456
        %v1581 = vadd.f32 %v1036, %v1461
        %v1582 = vadd.f32 %v1039, %v1464
        %v1583 = vadd.f32 %v1044, %v1469
        %v1584 = vadd.f32 %v1047, %v1472
        %v1585 = vadd.f32 %v1052, %v1477
        %v1586 = vadd.f32 %v1055, %v1480
        %v1587 = vadd.f32 %v1060, %v1485
        %v1588 = vadd.f32 %v1063, %v1488
        %v1589 = vadd.f32 %v1068, %v1493
        %v1590 = vadd.f32 %v1071, %v1496
        %v1591 = vadd.f32 %v1076, %v1501
        %v1592 = vadd.f32 %v1079, %v1504
        %v1593 = vadd.f32 %v1084, %v1509
        %v1594 = vadd.f32 %v1087, %v1512
        %v1595 = vadd.f32 %v1092, %v1517
        %v1596 = vadd.f32 %v1095, %v1520
        %v1597 = vadd.f32 %v1100, %v1525
        %v1598 = vadd.f32 %v1103, %v1528
        %v1599 = vadd.f32 %v1108, %v1533
        %v1600 = vadd.f32 %v1111, %v1536
        %v1601 = vadd.f32 %v1116, %v1541
        %v1602 = vadd.f32 %v1119, %v1544
        %v1603 = vadd.f32 %v1124, %v1549
        %v1604 = vadd.f32 %v1127, %v1552
        %v1605 = vadd.f32 %v1132, %v1557
        %v1606 = vadd.f32 %v1135, %v1560
        %v1607 = vadd.f32 %v1140, %v1565
        %v1608 = vadd.f32 %v1143, %v1568
        %v1609 = vadd.f32 %v1148, %v1573
        %v1610 = vadd.f32 %v1151, %v1576
        %s1611 = sadd.s32 %s158, 1
        %s1612 = smul.u32 %s1611, 3
        %s1613 = smul.addr %s1612, 4
        %s1614 = scalar_lea.vmem %s155, %s1613
        %v1615 = vld [vmem:[%s1614] sm:$0xf]
        %v1616 = vld [vmem:[%s1614 + $0x4] sm:$0xf]
        %v1617 = vld [vmem:[%s1614 + $0xc] sm:$0xf]
        %v1618 = vld [vmem:[%s1614 + $0x10] sm:$0xf]
        %v1619 = vld [vmem:[%s1614 + $0x18] sm:$0xf]
        %v1620 = vld [vmem:[%s1614 + $0x1c] sm:$0xf]
        %v1621 = vld [vmem:[%s1614 + $0x24] sm:$0xf]
        %v1622 = vld [vmem:[%s1614 + $0x28] sm:$0xf]
        %v1623 = vld [vmem:[%s1614 + $0x30] sm:$0xf]
        %v1624 = vld [vmem:[%s1614 + $0x34] sm:$0xf]
        %v1625 = vld [vmem:[%s1614 + $0x3c] sm:$0xf]
        %v1626 = vld [vmem:[%s1614 + $0x40] sm:$0xf]
        %v1627 = vld [vmem:[%s1614 + $0x48] sm:$0xf]
        %v1628 = vld [vmem:[%s1614 + $0x4c] sm:$0xf]
        %v1629 = vld [vmem:[%s1614 + $0x54] sm:$0xf]
        %v1630 = vld [vmem:[%s1614 + $0x58] sm:$0xf]
        %v1631 = vld [vmem:[%s1614 + $0x60] sm:$0xf]
        %v1632 = vld [vmem:[%s1614 + $0x64] sm:$0xf]
        %v1633 = vld [vmem:[%s1614 + $0x6c] sm:$0xf]
        %v1634 = vld [vmem:[%s1614 + $0x70] sm:$0xf]
        %v1635 = vld [vmem:[%s1614 + $0x78] sm:$0xf]
        %v1636 = vld [vmem:[%s1614 + $0x7c] sm:$0xf]
        %v1637 = vld [vmem:[%s1614 + $0x84] sm:$0xf]
        %v1638 = vld [vmem:[%s1614 + $0x88] sm:$0xf]
        %v1639 = vld [vmem:[%s1614 + $0x90] sm:$0xf]
        %v1640 = vld [vmem:[%s1614 + $0x94] sm:$0xf]
        %v1641 = vld [vmem:[%s1614 + $0x9c] sm:$0xf]
        %v1642 = vld [vmem:[%s1614 + $0xa0] sm:$0xf]
        %v1643 = vld [vmem:[%s1614 + $0xa8] sm:$0xf]
        %v1644 = vld [vmem:[%s1614 + $0xac] sm:$0xf]
        %v1645 = vld [vmem:[%s1614 + $0xb4] sm:$0xf]
        %v1646 = vld [vmem:[%s1614 + $0xb8] sm:$0xf]
        %s1647 = scalar_lea.vmem %s1, 6
        %v1648 = vld [vmem:[%s1647] sm:$0x3]
        %v1681 = vunpack.c.l.b16 %v1615
        %v1682 = vunpack.c.l.b16 %v1616
        %v1683 = vunpack.c.l.b16 %v1617
        %v1684 = vunpack.c.l.b16 %v1618
        %v1685 = vunpack.c.l.b16 %v1619
        %v1686 = vunpack.c.l.b16 %v1620
        %v1687 = vunpack.c.l.b16 %v1621
        %v1688 = vunpack.c.l.b16 %v1622
        %v1689 = vunpack.c.l.b16 %v1623
        %v1690 = vunpack.c.l.b16 %v1624
        %v1691 = vunpack.c.l.b16 %v1625
        %v1692 = vunpack.c.l.b16 %v1626
        %v1693 = vunpack.c.l.b16 %v1627
        %v1694 = vunpack.c.l.b16 %v1628
        %v1695 = vunpack.c.l.b16 %v1629
        %v1696 = vunpack.c.l.b16 %v1630
        %v1697 = vunpack.c.l.b16 %v1631
        %v1698 = vunpack.c.l.b16 %v1632
        %v1699 = vunpack.c.l.b16 %v1633
        %v1700 = vunpack.c.l.b16 %v1634
        %v1701 = vunpack.c.l.b16 %v1635
        %v1702 = vunpack.c.l.b16 %v1636
        %v1703 = vunpack.c.l.b16 %v1637
        %v1704 = vunpack.c.l.b16 %v1638
        %v1705 = vunpack.c.l.b16 %v1639
        %v1706 = vunpack.c.l.b16 %v1640
        %v1707 = vunpack.c.l.b16 %v1641
        %v1708 = vunpack.c.l.b16 %v1642
        %v1709 = vunpack.c.l.b16 %v1643
        %v1710 = vunpack.c.l.b16 %v1644
        %v1711 = vunpack.c.l.b16 %v1645
        %v1712 = vunpack.c.l.b16 %v1646
        %v1713 = vpack.c.b16 %v1682, %v1681
        %v1714 = vpack.c.b16 %v1684, %v1683
        %v1715 = vpack.c.b16 %v1686, %v1685
        %v1716 = vpack.c.b16 %v1688, %v1687
        %v1717 = vpack.c.b16 %v1690, %v1689
        %v1718 = vpack.c.b16 %v1692, %v1691
        %v1719 = vpack.c.b16 %v1694, %v1693
        %v1720 = vpack.c.b16 %v1696, %v1695
        %v1721 = vpack.c.b16 %v1698, %v1697
        %v1722 = vpack.c.b16 %v1700, %v1699
        %v1723 = vpack.c.b16 %v1702, %v1701
        %v1724 = vpack.c.b16 %v1704, %v1703
        %v1725 = vpack.c.b16 %v1706, %v1705
        %v1726 = vpack.c.b16 %v1708, %v1707
        %v1727 = vpack.c.b16 %v1710, %v1709
        %v1728 = vpack.c.b16 %v1712, %v1711
        %v1730 = vsel %vm648, %v1713, 0
        %v1733 = vsel %vm648, %v1714, 0
        %v1736 = vsel %vm648, %v1715, 0
        %v1739 = vsel %vm648, %v1716, 0
        %v1742 = vsel %vm648, %v1717, 0
        %v1745 = vsel %vm648, %v1718, 0
        %v1748 = vsel %vm648, %v1719, 0
        %v1751 = vsel %vm648, %v1720, 0
        %v1754 = vsel %vm648, %v1721, 0
        %v1757 = vsel %vm648, %v1722, 0
        %v1760 = vsel %vm648, %v1723, 0
        %v1763 = vsel %vm648, %v1724, 0
        %v1766 = vsel %vm648, %v1725, 0
        %v1769 = vsel %vm648, %v1726, 0
        %v1772 = vsel %vm648, %v1727, 0
        %v1775 = vsel %vm648, %v1728, 0
        %v1778 = vsel %vm697, %v1648, 0
        %1780 = vmatprep.subr.bf16.mxu0 0
        %1781 = vmatpush1.bf16.msra.mxu0 %v1778
        %1782 = vmatprep.subr.bf16.mxu0 0
        %1783 = vmatpush1.bf16.msra.mxu0 0
        %1784 = vmatprep.subr.bf16.mxu0 0
        %1785 = vmatpush1.bf16.msra.mxu0 0
        %1786 = vmatprep.subr.bf16.mxu0 0
        %1787 = vmatpush1.bf16.msra.mxu0 0
        %1788 = vmatprep.subr.bf16.mxu0 0
        %1789 = vmatpush1.bf16.msra.mxu0 0
        %1790 = vmatprep.subr.bf16.mxu0 0
        %1791 = vmatpush1.bf16.msra.mxu0 0
        %1792 = vmatprep.subr.bf16.mxu0 0
        %1793 = vmatpush1.bf16.msra.mxu0 0
        %1794 = vmatprep.subr.bf16.mxu0 0
        %1795 = vmatpush1.bf16.msra.mxu0 0
        %1796 = vmatprep.subr.bf16.mxu0 0
        %1797 = vmatpush1.bf16.msra.mxu0 0
        %1798 = vmatprep.subr.bf16.mxu0 0
        %1799 = vmatpush1.bf16.msra.mxu0 0
        %1800 = vmatprep.subr.bf16.mxu0 0
        %1801 = vmatpush1.bf16.msra.mxu0 0
        %1802 = vmatprep.subr.bf16.mxu0 0
        %1803 = vmatpush1.bf16.msra.mxu0 0
        %1804 = vmatprep.subr.bf16.mxu0 0
        %1805 = vmatpush1.bf16.msra.mxu0 0
        %1806 = vmatprep.subr.bf16.mxu0 0
        %1807 = vmatpush1.bf16.msra.mxu0 0
        %1808 = vmatprep.subr.bf16.mxu0 0
        %1809 = vmatpush1.bf16.msra.mxu0 0
        %1810 = vmatprep.subr.bf16.mxu0 0
        %1811 = vmatpush1.bf16.msra.mxu0 0
        %1812 = vmatprep.mubr.bf16.mxu0 0
        %1813 = vmatmul.mubr.bf16.gmra.mrb[0].mxu0 %v1730
        %v1814 = vpop.f32.mrb[0].mxu0
        %v1815 = vadd.f32 0.0, %v1814
        %v1816 = vpop.f32.mrb[0].mxu0
        %v1817 = vpop.f32.mrb[0].mxu0
        %v1818 = vadd.f32 0.0, %v1817
        %v1819 = vpop.f32.mrb[0].mxu0
        %1820 = vmatprep.mubr.bf16.mxu0 0
        %1821 = vmatmul.mubr.bf16.gmra.mrb[0].mxu0 %v1733
        %v1822 = vpop.f32.mrb[0].mxu0
        %v1823 = vadd.f32 0.0, %v1822
        %v1824 = vpop.f32.mrb[0].mxu0
        %v1825 = vpop.f32.mrb[0].mxu0
        %v1826 = vadd.f32 0.0, %v1825
        %v1827 = vpop.f32.mrb[0].mxu0
        %1828 = vmatprep.mubr.bf16.mxu0 0
        %1829 = vmatmul.mubr.bf16.gmra.mrb[0].mxu0 %v1736
        %v1830 = vpop.f32.mrb[0].mxu0
        %v1831 = vadd.f32 0.0, %v1830
        %v1832 = vpop.f32.mrb[0].mxu0
        %v1833 = vpop.f32.mrb[0].mxu0
        %v1834 = vadd.f32 0.0, %v1833
        %v1835 = vpop.f32.mrb[0].mxu0
        %1836 = vmatprep.mubr.bf16.mxu0 0
        %1837 = vmatmul.mubr.bf16.gmra.mrb[0].mxu0 %v1739
        %v1838 = vpop.f32.mrb[0].mxu0
        %v1839 = vadd.f32 0.0, %v1838
        %v1840 = vpop.f32.mrb[0].mxu0
        %v1841 = vpop.f32.mrb[0].mxu0
        %v1842 = vadd.f32 0.0, %v1841
        %v1843 = vpop.f32.mrb[0].mxu0
        %1844 = vmatprep.mubr.bf16.mxu0 0
        %1845 = vmatmul.mubr.bf16.gmra.mrb[0].mxu0 %v1742
        %v1846 = vpop.f32.mrb[0].mxu0
        %v1847 = vadd.f32 0.0, %v1846
        %v1848 = vpop.f32.mrb[0].mxu0
        %v1849 = vpop.f32.mrb[0].mxu0
        %v1850 = vadd.f32 0.0, %v1849
        %v1851 = vpop.f32.mrb[0].mxu0
        %1852 = vmatprep.mubr.bf16.mxu0 0
        %1853 = vmatmul.mubr.bf16.gmra.mrb[0].mxu0 %v1745
        %v1854 = vpop.f32.mrb[0].mxu0
        %v1855 = vadd.f32 0.0, %v1854
        %v1856 = vpop.f32.mrb[0].mxu0
        %v1857 = vpop.f32.mrb[0].mxu0
        %v1858 = vadd.f32 0.0, %v1857
        %v1859 = vpop.f32.mrb[0].mxu0
        %1860 = vmatprep.mubr.bf16.mxu0 0
        %1861 = vmatmul.mubr.bf16.gmra.mrb[0].mxu0 %v1748
        %v1862 = vpop.f32.mrb[0].mxu0
        %v1863 = vadd.f32 0.0, %v1862
        %v1864 = vpop.f32.mrb[0].mxu0
        %v1865 = vpop.f32.mrb[0].mxu0
        %v1866 = vadd.f32 0.0, %v1865
        %v1867 = vpop.f32.mrb[0].mxu0
        %1868 = vmatprep.mubr.bf16.mxu0 0
        %1869 = vmatmul.mubr.bf16.gmra.mrb[0].mxu0 %v1751
        %v1870 = vpop.f32.mrb[0].mxu0
        %v1871 = vadd.f32 0.0, %v1870
        %v1872 = vpop.f32.mrb[0].mxu0
        %v1873 = vpop.f32.mrb[0].mxu0
        %v1874 = vadd.f32 0.0, %v1873
        %v1875 = vpop.f32.mrb[0].mxu0
        %1876 = vmatprep.mubr.bf16.mxu0 0
        %1877 = vmatmul.mubr.bf16.gmra.mrb[0].mxu0 %v1754
        %v1878 = vpop.f32.mrb[0].mxu0
        %v1879 = vadd.f32 0.0, %v1878
        %v1880 = vpop.f32.mrb[0].mxu0
        %v1881 = vpop.f32.mrb[0].mxu0
        %v1882 = vadd.f32 0.0, %v1881
        %v1883 = vpop.f32.mrb[0].mxu0
        %1884 = vmatprep.mubr.bf16.mxu0 0
        %1885 = vmatmul.mubr.bf16.gmra.mrb[0].mxu0 %v1757
        %v1886 = vpop.f32.mrb[0].mxu0
        %v1887 = vadd.f32 0.0, %v1886
        %v1888 = vpop.f32.mrb[0].mxu0
        %v1889 = vpop.f32.mrb[0].mxu0
        %v1890 = vadd.f32 0.0, %v1889
        %v1891 = vpop.f32.mrb[0].mxu0
        %1892 = vmatprep.mubr.bf16.mxu0 0
        %1893 = vmatmul.mubr.bf16.gmra.mrb[0].mxu0 %v1760
        %v1894 = vpop.f32.mrb[0].mxu0
        %v1895 = vadd.f32 0.0, %v1894
        %v1896 = vpop.f32.mrb[0].mxu0
        %v1897 = vpop.f32.mrb[0].mxu0
        %v1898 = vadd.f32 0.0, %v1897
        %v1899 = vpop.f32.mrb[0].mxu0
        %1900 = vmatprep.mubr.bf16.mxu0 0
        %1901 = vmatmul.mubr.bf16.gmra.mrb[0].mxu0 %v1763
        %v1902 = vpop.f32.mrb[0].mxu0
        %v1903 = vadd.f32 0.0, %v1902
        %v1904 = vpop.f32.mrb[0].mxu0
        %v1905 = vpop.f32.mrb[0].mxu0
        %v1906 = vadd.f32 0.0, %v1905
        %v1907 = vpop.f32.mrb[0].mxu0
        %1908 = vmatprep.mubr.bf16.mxu0 0
        %1909 = vmatmul.mubr.bf16.gmra.mrb[0].mxu0 %v1766
        %v1910 = vpop.f32.mrb[0].mxu0
        %v1911 = vadd.f32 0.0, %v1910
        %v1912 = vpop.f32.mrb[0].mxu0
        %v1913 = vpop.f32.mrb[0].mxu0
        %v1914 = vadd.f32 0.0, %v1913
        %v1915 = vpop.f32.mrb[0].mxu0
        %1916 = vmatprep.mubr.bf16.mxu0 0
        %1917 = vmatmul.mubr.bf16.gmra.mrb[0].mxu0 %v1769
        %v1918 = vpop.f32.mrb[0].mxu0
        %v1919 = vadd.f32 0.0, %v1918
        %v1920 = vpop.f32.mrb[0].mxu0
        %v1921 = vpop.f32.mrb[0].mxu0
        %v1922 = vadd.f32 0.0, %v1921
        %v1923 = vpop.f32.mrb[0].mxu0
        %1924 = vmatprep.mubr.bf16.mxu0 0
        %1925 = vmatmul.mubr.bf16.gmra.mrb[0].mxu0 %v1772
        %v1926 = vpop.f32.mrb[0].mxu0
        %v1927 = vadd.f32 0.0, %v1926
        %v1928 = vpop.f32.mrb[0].mxu0
        %v1929 = vpop.f32.mrb[0].mxu0
        %v1930 = vadd.f32 0.0, %v1929
        %v1931 = vpop.f32.mrb[0].mxu0
        %1932 = vmatprep.mubr.bf16.mxu0 0
        %1933 = vmatmul.mubr.bf16.gmra.mrb[0].mxu0 %v1775
        %v1934 = vpop.f32.mrb[0].mxu0
        %v1935 = vadd.f32 0.0, %v1934
        %v1936 = vpop.f32.mrb[0].mxu0
        %v1937 = vpop.f32.mrb[0].mxu0
        %v1938 = vadd.f32 0.0, %v1937
        %v1939 = vpop.f32.mrb[0].mxu0
        %1940 = vdwg.mxu0
        %v1941 = vadd.f32 %v1579, %v1815
        %v1942 = vadd.f32 %v1580, %v1818
        %v1943 = vadd.f32 %v1581, %v1823
        %v1944 = vadd.f32 %v1582, %v1826
        %v1945 = vadd.f32 %v1583, %v1831
        %v1946 = vadd.f32 %v1584, %v1834
        %v1947 = vadd.f32 %v1585, %v1839
        %v1948 = vadd.f32 %v1586, %v1842
        %v1949 = vadd.f32 %v1587, %v1847
        %v1950 = vadd.f32 %v1588, %v1850
        %v1951 = vadd.f32 %v1589, %v1855
        %v1952 = vadd.f32 %v1590, %v1858
        %v1953 = vadd.f32 %v1591, %v1863
        %v1954 = vadd.f32 %v1592, %v1866
        %v1955 = vadd.f32 %v1593, %v1871
        %v1956 = vadd.f32 %v1594, %v1874
        %v1957 = vadd.f32 %v1595, %v1879
        %v1958 = vadd.f32 %v1596, %v1882
        %v1959 = vadd.f32 %v1597, %v1887
        %v1960 = vadd.f32 %v1598, %v1890
        %v1961 = vadd.f32 %v1599, %v1895
        %v1962 = vadd.f32 %v1600, %v1898
        %v1963 = vadd.f32 %v1601, %v1903
        %v1964 = vadd.f32 %v1602, %v1906
        %v1965 = vadd.f32 %v1603, %v1911
        %v1966 = vadd.f32 %v1604, %v1914
        %v1967 = vadd.f32 %v1605, %v1919
        %v1968 = vadd.f32 %v1606, %v1922
        %v1969 = vadd.f32 %v1607, %v1927
        %v1970 = vadd.f32 %v1608, %v1930
        %v1971 = vadd.f32 %v1609, %v1935
        %v1972 = vadd.f32 %v1610, %v1938
        %v1973 = vld [vmem:[%s1614] sm:$0xf]
        %v1974 = vld [vmem:[%s1614 + $0x4] sm:$0xf]
        %v1975 = vld [vmem:[%s1614 + $0x8] sm:$0x1]
        %v1976 = vld [vmem:[%s1614 + $0xc] sm:$0xf]
        %v1977 = vld [vmem:[%s1614 + $0x10] sm:$0xf]
        %v1978 = vld [vmem:[%s1614 + $0x14] sm:$0x1]
        %v1979 = vld [vmem:[%s1614 + $0x18] sm:$0xf]
        %v1980 = vld [vmem:[%s1614 + $0x1c] sm:$0xf]
        %v1981 = vld [vmem:[%s1614 + $0x20] sm:$0x1]
        %v1982 = vld [vmem:[%s1614 + $0x24] sm:$0xf]
        %v1983 = vld [vmem:[%s1614 + $0x28] sm:$0xf]
        %v1984 = vld [vmem:[%s1614 + $0x2c] sm:$0x1]
        %v1985 = vld [vmem:[%s1614 + $0x30] sm:$0xf]
        %v1986 = vld [vmem:[%s1614 + $0x34] sm:$0xf]
        %v1987 = vld [vmem:[%s1614 + $0x38] sm:$0x1]
        %v1988 = vld [vmem:[%s1614 + $0x3c] sm:$0xf]
        %v1989 = vld [vmem:[%s1614 + $0x40] sm:$0xf]
        %v1990 = vld [vmem:[%s1614 + $0x44] sm:$0x1]
        %v1991 = vld [vmem:[%s1614 + $0x48] sm:$0xf]
        %v1992 = vld [vmem:[%s1614 + $0x4c] sm:$0xf]
        %v1993 = vld [vmem:[%s1614 + $0x50] sm:$0x1]
        %v1994 = vld [vmem:[%s1614 + $0x54] sm:$0xf]
        %v1995 = vld [vmem:[%s1614 + $0x58] sm:$0xf]
        %v1996 = vld [vmem:[%s1614 + $0x5c] sm:$0x1]
        %v1997 = vld [vmem:[%s1614 + $0x60] sm:$0xf]
        %v1998 = vld [vmem:[%s1614 + $0x64] sm:$0xf]
        %v1999 = vld [vmem:[%s1614 + $0x68] sm:$0x1]
        %v2000 = vld [vmem:[%s1614 + $0x6c] sm:$0xf]
        %v2001 = vld [vmem:[%s1614 + $0x70] sm:$0xf]
        %v2002 = vld [vmem:[%s1614 + $0x74] sm:$0x1]
        %v2003 = vld [vmem:[%s1614 + $0x78] sm:$0xf]
        %v2004 = vld [vmem:[%s1614 + $0x7c] sm:$0xf]
        %v2005 = vld [vmem:[%s1614 + $0x80] sm:$0x1]
        %v2006 = vld [vmem:[%s1614 + $0x84] sm:$0xf]
        %v2007 = vld [vmem:[%s1614 + $0x88] sm:$0xf]
        %v2008 = vld [vmem:[%s1614 + $0x8c] sm:$0x1]
        %v2009 = vld [vmem:[%s1614 + $0x90] sm:$0xf]
        %v2010 = vld [vmem:[%s1614 + $0x94] sm:$0xf]
        %v2011 = vld [vmem:[%s1614 + $0x98] sm:$0x1]
        %v2012 = vld [vmem:[%s1614 + $0x9c] sm:$0xf]
        %v2013 = vld [vmem:[%s1614 + $0xa0] sm:$0xf]
        %v2014 = vld [vmem:[%s1614 + $0xa4] sm:$0x1]
        %v2015 = vld [vmem:[%s1614 + $0xa8] sm:$0xf]
        %v2016 = vld [vmem:[%s1614 + $0xac] sm:$0xf]
        %v2017 = vld [vmem:[%s1614 + $0xb0] sm:$0x1]
        %v2018 = vld [vmem:[%s1614 + $0xb4] sm:$0xf]
        %v2019 = vld [vmem:[%s1614 + $0xb8] sm:$0xf]
        %v2020 = vld [vmem:[%s1614 + $0xbc] sm:$0x1]
        %v2022 = vshrl.u32 %v1973, 16
        %v2024 = vrot.slane %v2022, 4
        %v2025 = vshll.u32 %v1973, 16
        %v2027 = vrot.slane %v2025, 5
        %v2028 = vor.u32 %v2024, %v2027
        %v2029 = vrot.slane %v2028, 4
        %v2031 = vshll.u32 %v1974, 16
        %v2033 = vrot.slane %v2031, 5
        %v2034 = vsel %vm213, %v2029, %v2033
        %v2035 = vshrl.u32 %v1974, 16
        %v2037 = vrot.slane %v2035, 4
        %v2038 = vor.u32 %v2037, %v2033
        %v2039 = vrot.slane %v2038, 4
        %v2041 = vshll.u32 %v1975, 16
        %v2043 = vrot.slane %v2041, 5
        %v2044 = vsel %vm213, %v2039, %v2043
        %v2046 = vshrl.u32 %v1976, 16
        %v2048 = vrot.slane %v2046, 4
        %v2049 = vshll.u32 %v1976, 16
        %v2051 = vrot.slane %v2049, 5
        %v2052 = vor.u32 %v2048, %v2051
        %v2053 = vrot.slane %v2052, 4
        %v2055 = vshll.u32 %v1977, 16
        %v2057 = vrot.slane %v2055, 5
        %v2058 = vsel %vm213, %v2053, %v2057
        %v2059 = vshrl.u32 %v1977, 16
        %v2061 = vrot.slane %v2059, 4
        %v2062 = vor.u32 %v2061, %v2057
        %v2063 = vrot.slane %v2062, 4
        %v2065 = vshll.u32 %v1978, 16
        %v2067 = vrot.slane %v2065, 5
        %v2068 = vsel %vm213, %v2063, %v2067
        %v2070 = vshrl.u32 %v1979, 16
        %v2072 = vrot.slane %v2070, 4
        %v2073 = vshll.u32 %v1979, 16
        %v2075 = vrot.slane %v2073, 5
        %v2076 = vor.u32 %v2072, %v2075
        %v2077 = vrot.slane %v2076, 4
        %v2079 = vshll.u32 %v1980, 16
        %v2081 = vrot.slane %v2079, 5
        %v2082 = vsel %vm213, %v2077, %v2081
        %v2083 = vshrl.u32 %v1980, 16
        %v2085 = vrot.slane %v2083, 4
        %v2086 = vor.u32 %v2085, %v2081
        %v2087 = vrot.slane %v2086, 4
        %v2089 = vshll.u32 %v1981, 16
        %v2091 = vrot.slane %v2089, 5
        %v2092 = vsel %vm213, %v2087, %v2091
        %v2094 = vshrl.u32 %v1982, 16
        %v2096 = vrot.slane %v2094, 4
        %v2097 = vshll.u32 %v1982, 16
        %v2099 = vrot.slane %v2097, 5
        %v2100 = vor.u32 %v2096, %v2099
        %v2101 = vrot.slane %v2100, 4
        %v2103 = vshll.u32 %v1983, 16
        %v2105 = vrot.slane %v2103, 5
        %v2106 = vsel %vm213, %v2101, %v2105
        %v2107 = vshrl.u32 %v1983, 16
        %v2109 = vrot.slane %v2107, 4
        %v2110 = vor.u32 %v2109, %v2105
        %v2111 = vrot.slane %v2110, 4
        %v2113 = vshll.u32 %v1984, 16
        %v2115 = vrot.slane %v2113, 5
        %v2116 = vsel %vm213, %v2111, %v2115
        %v2118 = vshrl.u32 %v1985, 16
        %v2120 = vrot.slane %v2118, 4
        %v2121 = vshll.u32 %v1985, 16
        %v2123 = vrot.slane %v2121, 5
        %v2124 = vor.u32 %v2120, %v2123
        %v2125 = vrot.slane %v2124, 4
        %v2127 = vshll.u32 %v1986, 16
        %v2129 = vrot.slane %v2127, 5
        %v2130 = vsel %vm213, %v2125, %v2129
        %v2131 = vshrl.u32 %v1986, 16
        %v2133 = vrot.slane %v2131, 4
        %v2134 = vor.u32 %v2133, %v2129
        %v2135 = vrot.slane %v2134, 4
        %v2137 = vshll.u32 %v1987, 16
        %v2139 = vrot.slane %v2137, 5
        %v2140 = vsel %vm213, %v2135, %v2139
        %v2142 = vshrl.u32 %v1988, 16
        %v2144 = vrot.slane %v2142, 4
        %v2145 = vshll.u32 %v1988, 16
        %v2147 = vrot.slane %v2145, 5
        %v2148 = vor.u32 %v2144, %v2147
        %v2149 = vrot.slane %v2148, 4
        %v2151 = vshll.u32 %v1989, 16
        %v2153 = vrot.slane %v2151, 5
        %v2154 = vsel %vm213, %v2149, %v2153
        %v2155 = vshrl.u32 %v1989, 16
        %v2157 = vrot.slane %v2155, 4
        %v2158 = vor.u32 %v2157, %v2153
        %v2159 = vrot.slane %v2158, 4
        %v2161 = vshll.u32 %v1990, 16
        %v2163 = vrot.slane %v2161, 5
        %v2164 = vsel %vm213, %v2159, %v2163
        %v2166 = vshrl.u32 %v1991, 16
        %v2168 = vrot.slane %v2166, 4
        %v2169 = vshll.u32 %v1991, 16
        %v2171 = vrot.slane %v2169, 5
        %v2172 = vor.u32 %v2168, %v2171
        %v2173 = vrot.slane %v2172, 4
        %v2175 = vshll.u32 %v1992, 16
        %v2177 = vrot.slane %v2175, 5
        %v2178 = vsel %vm213, %v2173, %v2177
        %v2179 = vshrl.u32 %v1992, 16
        %v2181 = vrot.slane %v2179, 4
        %v2182 = vor.u32 %v2181, %v2177
        %v2183 = vrot.slane %v2182, 4
        %v2185 = vshll.u32 %v1993, 16
        %v2187 = vrot.slane %v2185, 5
        %v2188 = vsel %vm213, %v2183, %v2187
        %v2190 = vshrl.u32 %v1994, 16
        %v2192 = vrot.slane %v2190, 4
        %v2193 = vshll.u32 %v1994, 16
        %v2195 = vrot.slane %v2193, 5
        %v2196 = vor.u32 %v2192, %v2195
        %v2197 = vrot.slane %v2196, 4
        %v2199 = vshll.u32 %v1995, 16
        %v2201 = vrot.slane %v2199, 5
        %v2202 = vsel %vm213, %v2197, %v2201
        %v2203 = vshrl.u32 %v1995, 16
        %v2205 = vrot.slane %v2203, 4
        %v2206 = vor.u32 %v2205, %v2201
        %v2207 = vrot.slane %v2206, 4
        %v2209 = vshll.u32 %v1996, 16
        %v2211 = vrot.slane %v2209, 5
        %v2212 = vsel %vm213, %v2207, %v2211
        %v2214 = vshrl.u32 %v1997, 16
        %v2216 = vrot.slane %v2214, 4
        %v2217 = vshll.u32 %v1997, 16
        %v2219 = vrot.slane %v2217, 5
        %v2220 = vor.u32 %v2216, %v2219
        %v2221 = vrot.slane %v2220, 4
        %v2223 = vshll.u32 %v1998, 16
        %v2225 = vrot.slane %v2223, 5
        %v2226 = vsel %vm213, %v2221, %v2225
        %v2227 = vshrl.u32 %v1998, 16
        %v2229 = vrot.slane %v2227, 4
        %v2230 = vor.u32 %v2229, %v2225
        %v2231 = vrot.slane %v2230, 4
        %v2233 = vshll.u32 %v1999, 16
        %v2235 = vrot.slane %v2233, 5
        %v2236 = vsel %vm213, %v2231, %v2235
        %v2238 = vshrl.u32 %v2000, 16
        %v2240 = vrot.slane %v2238, 4
        %v2241 = vshll.u32 %v2000, 16
        %v2243 = vrot.slane %v2241, 5
        %v2244 = vor.u32 %v2240, %v2243
        %v2245 = vrot.slane %v2244, 4
        %v2247 = vshll.u32 %v2001, 16
        %v2249 = vrot.slane %v2247, 5
        %v2250 = vsel %vm213, %v2245, %v2249
        %v2251 = vshrl.u32 %v2001, 16
        %v2253 = vrot.slane %v2251, 4
        %v2254 = vor.u32 %v2253, %v2249
        %v2255 = vrot.slane %v2254, 4
        %v2257 = vshll.u32 %v2002, 16
        %v2259 = vrot.slane %v2257, 5
        %v2260 = vsel %vm213, %v2255, %v2259
        %v2262 = vshrl.u32 %v2003, 16
        %v2264 = vrot.slane %v2262, 4
        %v2265 = vshll.u32 %v2003, 16
        %v2267 = vrot.slane %v2265, 5
        %v2268 = vor.u32 %v2264, %v2267
        %v2269 = vrot.slane %v2268, 4
        %v2271 = vshll.u32 %v2004, 16
        %v2273 = vrot.slane %v2271, 5
        %v2274 = vsel %vm213, %v2269, %v2273
        %v2275 = vshrl.u32 %v2004, 16
        %v2277 = vrot.slane %v2275, 4
        %v2278 = vor.u32 %v2277, %v2273
        %v2279 = vrot.slane %v2278, 4
        %v2281 = vshll.u32 %v2005, 16
        %v2283 = vrot.slane %v2281, 5
        %v2284 = vsel %vm213, %v2279, %v2283
        %v2286 = vshrl.u32 %v2006, 16
        %v2288 = vrot.slane %v2286, 4
        %v2289 = vshll.u32 %v2006, 16
        %v2291 = vrot.slane %v2289, 5
        %v2292 = vor.u32 %v2288, %v2291
        %v2293 = vrot.slane %v2292, 4
        %v2295 = vshll.u32 %v2007, 16
        %v2297 = vrot.slane %v2295, 5
        %v2298 = vsel %vm213, %v2293, %v2297
        %v2299 = vshrl.u32 %v2007, 16
        %v2301 = vrot.slane %v2299, 4
        %v2302 = vor.u32 %v2301, %v2297
        %v2303 = vrot.slane %v2302, 4
        %v2305 = vshll.u32 %v2008, 16
        %v2307 = vrot.slane %v2305, 5
        %v2308 = vsel %vm213, %v2303, %v2307
        %v2310 = vshrl.u32 %v2009, 16
        %v2312 = vrot.slane %v2310, 4
        %v2313 = vshll.u32 %v2009, 16
        %v2315 = vrot.slane %v2313, 5
        %v2316 = vor.u32 %v2312, %v2315
        %v2317 = vrot.slane %v2316, 4
        %v2319 = vshll.u32 %v2010, 16
        %v2321 = vrot.slane %v2319, 5
        %v2322 = vsel %vm213, %v2317, %v2321
        %v2323 = vshrl.u32 %v2010, 16
        %v2325 = vrot.slane %v2323, 4
        %v2326 = vor.u32 %v2325, %v2321
        %v2327 = vrot.slane %v2326, 4
        %v2329 = vshll.u32 %v2011, 16
        %v2331 = vrot.slane %v2329, 5
        %v2332 = vsel %vm213, %v2327, %v2331
        %v2334 = vshrl.u32 %v2012, 16
        %v2336 = vrot.slane %v2334, 4
        %v2337 = vshll.u32 %v2012, 16
        %v2339 = vrot.slane %v2337, 5
        %v2340 = vor.u32 %v2336, %v2339
        %v2341 = vrot.slane %v2340, 4
        %v2343 = vshll.u32 %v2013, 16
        %v2345 = vrot.slane %v2343, 5
        %v2346 = vsel %vm213, %v2341, %v2345
        %v2347 = vshrl.u32 %v2013, 16
        %v2349 = vrot.slane %v2347, 4
        %v2350 = vor.u32 %v2349, %v2345
        %v2351 = vrot.slane %v2350, 4
        %v2353 = vshll.u32 %v2014, 16
        %v2355 = vrot.slane %v2353, 5
        %v2356 = vsel %vm213, %v2351, %v2355
        %v2358 = vshrl.u32 %v2015, 16
        %v2360 = vrot.slane %v2358, 4
        %v2361 = vshll.u32 %v2015, 16
        %v2363 = vrot.slane %v2361, 5
        %v2364 = vor.u32 %v2360, %v2363
        %v2365 = vrot.slane %v2364, 4
        %v2367 = vshll.u32 %v2016, 16
        %v2369 = vrot.slane %v2367, 5
        %v2370 = vsel %vm213, %v2365, %v2369
        %v2371 = vshrl.u32 %v2016, 16
        %v2373 = vrot.slane %v2371, 4
        %v2374 = vor.u32 %v2373, %v2369
        %v2375 = vrot.slane %v2374, 4
        %v2377 = vshll.u32 %v2017, 16
        %v2379 = vrot.slane %v2377, 5
        %v2380 = vsel %vm213, %v2375, %v2379
        %v2382 = vshrl.u32 %v2018, 16
        %v2384 = vrot.slane %v2382, 4
        %v2385 = vshll.u32 %v2018, 16
        %v2387 = vrot.slane %v2385, 5
        %v2388 = vor.u32 %v2384, %v2387
        %v2389 = vrot.slane %v2388, 4
        %v2391 = vshll.u32 %v2019, 16
        %v2393 = vrot.slane %v2391, 5
        %v2394 = vsel %vm213, %v2389, %v2393
        %v2395 = vshrl.u32 %v2019, 16
        %v2397 = vrot.slane %v2395, 4
        %v2398 = vor.u32 %v2397, %v2393
        %v2399 = vrot.slane %v2398, 4
        %v2401 = vshll.u32 %v2020, 16
        %v2403 = vrot.slane %v2401, 5
        %v2404 = vsel %vm213, %v2399, %v2403
        %s2405 = scalar_lea.vmem %s1, 8
        %v2406 = vld [vmem:[%s2405] sm:$0x3]
        %v2407 = vunpack.c.l.b16 %v2034
        %v2408 = vunpack.c.l.b16 %v2044
        %v2409 = vunpack.c.l.b16 %v2058
        %v2410 = vunpack.c.l.b16 %v2068
        %v2411 = vunpack.c.l.b16 %v2082
        %v2412 = vunpack.c.l.b16 %v2092
        %v2413 = vunpack.c.l.b16 %v2106
        %v2414 = vunpack.c.l.b16 %v2116
        %v2415 = vunpack.c.l.b16 %v2130
        %v2416 = vunpack.c.l.b16 %v2140
        %v2417 = vunpack.c.l.b16 %v2154
        %v2418 = vunpack.c.l.b16 %v2164
        %v2419 = vunpack.c.l.b16 %v2178
        %v2420 = vunpack.c.l.b16 %v2188
        %v2421 = vunpack.c.l.b16 %v2202
        %v2422 = vunpack.c.l.b16 %v2212
        %v2423 = vunpack.c.l.b16 %v2226
        %v2424 = vunpack.c.l.b16 %v2236
        %v2425 = vunpack.c.l.b16 %v2250
        %v2426 = vunpack.c.l.b16 %v2260
        %v2427 = vunpack.c.l.b16 %v2274
        %v2428 = vunpack.c.l.b16 %v2284
        %v2429 = vunpack.c.l.b16 %v2298
        %v2430 = vunpack.c.l.b16 %v2308
        %v2431 = vunpack.c.l.b16 %v2322
        %v2432 = vunpack.c.l.b16 %v2332
        %v2433 = vunpack.c.l.b16 %v2346
        %v2434 = vunpack.c.l.b16 %v2356
        %v2435 = vunpack.c.l.b16 %v2370
        %v2436 = vunpack.c.l.b16 %v2380
        %v2437 = vunpack.c.l.b16 %v2394
        %v2438 = vunpack.c.l.b16 %v2404
        %v2439 = vpack.c.b16 %v2408, %v2407
        %v2440 = vpack.c.b16 %v2410, %v2409
        %v2441 = vpack.c.b16 %v2412, %v2411
        %v2442 = vpack.c.b16 %v2414, %v2413
        %v2443 = vpack.c.b16 %v2416, %v2415
        %v2444 = vpack.c.b16 %v2418, %v2417
        %v2445 = vpack.c.b16 %v2420, %v2419
        %v2446 = vpack.c.b16 %v2422, %v2421
        %v2447 = vpack.c.b16 %v2424, %v2423
        %v2448 = vpack.c.b16 %v2426, %v2425
        %v2449 = vpack.c.b16 %v2428, %v2427
        %v2450 = vpack.c.b16 %v2430, %v2429
        %v2451 = vpack.c.b16 %v2432, %v2431
        %v2452 = vpack.c.b16 %v2434, %v2433
        %v2453 = vpack.c.b16 %v2436, %v2435
        %v2454 = vpack.c.b16 %v2438, %v2437
        %v2456 = vsel %vm648, %v2439, 0
        %v2459 = vsel %vm648, %v2440, 0
        %v2462 = vsel %vm648, %v2441, 0
        %v2465 = vsel %vm648, %v2442, 0
        %v2468 = vsel %vm648, %v2443, 0
        %v2471 = vsel %vm648, %v2444, 0
        %v2474 = vsel %vm648, %v2445, 0
        %v2477 = vsel %vm648, %v2446, 0
        %v2480 = vsel %vm648, %v2447, 0
        %v2483 = vsel %vm648, %v2448, 0
        %v2486 = vsel %vm648, %v2449, 0
        %v2489 = vsel %vm648, %v2450, 0
        %v2492 = vsel %vm648, %v2451, 0
        %v2495 = vsel %vm648, %v2452, 0
        %v2498 = vsel %vm648, %v2453, 0
        %v2501 = vsel %vm648, %v2454, 0
        %v2504 = vsel %vm697, %v2406, 0
        %2506 = vmatprep.subr.bf16.mxu0 0
        %2507 = vmatpush1.bf16.msra.mxu0 %v2504
        %2508 = vmatprep.subr.bf16.mxu0 0
        %2509 = vmatpush1.bf16.msra.mxu0 0
        %2510 = vmatprep.subr.bf16.mxu0 0
        %2511 = vmatpush1.bf16.msra.mxu0 0
        %2512 = vmatprep.subr.bf16.mxu0 0
        %2513 = vmatpush1.bf16.msra.mxu0 0
        %2514 = vmatprep.subr.bf16.mxu0 0
        %2515 = vmatpush1.bf16.msra.mxu0 0
        %2516 = vmatprep.subr.bf16.mxu0 0
        %2517 = vmatpush1.bf16.msra.mxu0 0
        %2518 = vmatprep.subr.bf16.mxu0 0
        %2519 = vmatpush1.bf16.msra.mxu0 0
        %2520 = vmatprep.subr.bf16.mxu0 0
        %2521 = vmatpush1.bf16.msra.mxu0 0
        %2522 = vmatprep.subr.bf16.mxu0 0
        %2523 = vmatpush1.bf16.msra.mxu0 0
        %2524 = vmatprep.subr.bf16.mxu0 0
        %2525 = vmatpush1.bf16.msra.mxu0 0
        %2526 = vmatprep.subr.bf16.mxu0 0
        %2527 = vmatpush1.bf16.msra.mxu0 0
        %2528 = vmatprep.subr.bf16.mxu0 0
        %2529 = vmatpush1.bf16.msra.mxu0 0
        %2530 = vmatprep.subr.bf16.mxu0 0
        %2531 = vmatpush1.bf16.msra.mxu0 0
        %2532 = vmatprep.subr.bf16.mxu0 0
        %2533 = vmatpush1.bf16.msra.mxu0 0
        %2534 = vmatprep.subr.bf16.mxu0 0
        %2535 = vmatpush1.bf16.msra.mxu0 0
        %2536 = vmatprep.subr.bf16.mxu0 0
        %2537 = vmatpush1.bf16.msra.mxu0 0
        %2538 = vmatprep.mubr.bf16.mxu0 0
        %2539 = vmatmul.mubr.bf16.gmra.mrb[0].mxu0 %v2456
        %v2540 = vpop.f32.mrb[0].mxu0
        %v2541 = vadd.f32 0.0, %v2540
        %v2542 = vpop.f32.mrb[0].mxu0
        %v2543 = vpop.f32.mrb[0].mxu0
        %v2544 = vadd.f32 0.0, %v2543
        %v2545 = vpop.f32.mrb[0].mxu0
        %2546 = vmatprep.mubr.bf16.mxu0 0
        %2547 = vmatmul.mubr.bf16.gmra.mrb[0].mxu0 %v2459
        %v2548 = vpop.f32.mrb[0].mxu0
        %v2549 = vadd.f32 0.0, %v2548
        %v2550 = vpop.f32.mrb[0].mxu0
        %v2551 = vpop.f32.mrb[0].mxu0
        %v2552 = vadd.f32 0.0, %v2551
        %v2553 = vpop.f32.mrb[0].mxu0
        %2554 = vmatprep.mubr.bf16.mxu0 0
        %2555 = vmatmul.mubr.bf16.gmra.mrb[0].mxu0 %v2462
        %v2556 = vpop.f32.mrb[0].mxu0
        %v2557 = vadd.f32 0.0, %v2556
        %v2558 = vpop.f32.mrb[0].mxu0
        %v2559 = vpop.f32.mrb[0].mxu0
        %v2560 = vadd.f32 0.0, %v2559
        %v2561 = vpop.f32.mrb[0].mxu0
        %2562 = vmatprep.mubr.bf16.mxu0 0
        %2563 = vmatmul.mubr.bf16.gmra.mrb[0].mxu0 %v2465
        %v2564 = vpop.f32.mrb[0].mxu0
        %v2565 = vadd.f32 0.0, %v2564
        %v2566 = vpop.f32.mrb[0].mxu0
        %v2567 = vpop.f32.mrb[0].mxu0
        %v2568 = vadd.f32 0.0, %v2567
        %v2569 = vpop.f32.mrb[0].mxu0
        %2570 = vmatprep.mubr.bf16.mxu0 0
        %2571 = vmatmul.mubr.bf16.gmra.mrb[0].mxu0 %v2468
        %v2572 = vpop.f32.mrb[0].mxu0
        %v2573 = vadd.f32 0.0, %v2572
        %v2574 = vpop.f32.mrb[0].mxu0
        %v2575 = vpop.f32.mrb[0].mxu0
        %v2576 = vadd.f32 0.0, %v2575
        %v2577 = vpop.f32.mrb[0].mxu0
        %2578 = vmatprep.mubr.bf16.mxu0 0
        %2579 = vmatmul.mubr.bf16.gmra.mrb[0].mxu0 %v2471
        %v2580 = vpop.f32.mrb[0].mxu0
        %v2581 = vadd.f32 0.0, %v2580
        %v2582 = vpop.f32.mrb[0].mxu0
        %v2583 = vpop.f32.mrb[0].mxu0
        %v2584 = vadd.f32 0.0, %v2583
        %v2585 = vpop.f32.mrb[0].mxu0
        %2586 = vmatprep.mubr.bf16.mxu0 0
        %2587 = vmatmul.mubr.bf16.gmra.mrb[0].mxu0 %v2474
        %v2588 = vpop.f32.mrb[0].mxu0
        %v2589 = vadd.f32 0.0, %v2588
        %v2590 = vpop.f32.mrb[0].mxu0
        %v2591 = vpop.f32.mrb[0].mxu0
        %v2592 = vadd.f32 0.0, %v2591
        %v2593 = vpop.f32.mrb[0].mxu0
        %2594 = vmatprep.mubr.bf16.mxu0 0
        %2595 = vmatmul.mubr.bf16.gmra.mrb[0].mxu0 %v2477
        %v2596 = vpop.f32.mrb[0].mxu0
        %v2597 = vadd.f32 0.0, %v2596
        %v2598 = vpop.f32.mrb[0].mxu0
        %v2599 = vpop.f32.mrb[0].mxu0
        %v2600 = vadd.f32 0.0, %v2599
        %v2601 = vpop.f32.mrb[0].mxu0
        %2602 = vmatprep.mubr.bf16.mxu0 0
        %2603 = vmatmul.mubr.bf16.gmra.mrb[0].mxu0 %v2480
        %v2604 = vpop.f32.mrb[0].mxu0
        %v2605 = vadd.f32 0.0, %v2604
        %v2606 = vpop.f32.mrb[0].mxu0
        %v2607 = vpop.f32.mrb[0].mxu0
        %v2608 = vadd.f32 0.0, %v2607
        %v2609 = vpop.f32.mrb[0].mxu0
        %2610 = vmatprep.mubr.bf16.mxu0 0
        %2611 = vmatmul.mubr.bf16.gmra.mrb[0].mxu0 %v2483
        %v2612 = vpop.f32.mrb[0].mxu0
        %v2613 = vadd.f32 0.0, %v2612
        %v2614 = vpop.f32.mrb[0].mxu0
        %v2615 = vpop.f32.mrb[0].mxu0
        %v2616 = vadd.f32 0.0, %v2615
        %v2617 = vpop.f32.mrb[0].mxu0
        %2618 = vmatprep.mubr.bf16.mxu0 0
        %2619 = vmatmul.mubr.bf16.gmra.mrb[0].mxu0 %v2486
        %v2620 = vpop.f32.mrb[0].mxu0
        %v2621 = vadd.f32 0.0, %v2620
        %v2622 = vpop.f32.mrb[0].mxu0
        %v2623 = vpop.f32.mrb[0].mxu0
        %v2624 = vadd.f32 0.0, %v2623
        %v2625 = vpop.f32.mrb[0].mxu0
        %2626 = vmatprep.mubr.bf16.mxu0 0
        %2627 = vmatmul.mubr.bf16.gmra.mrb[0].mxu0 %v2489
        %v2628 = vpop.f32.mrb[0].mxu0
        %v2629 = vadd.f32 0.0, %v2628
        %v2630 = vpop.f32.mrb[0].mxu0
        %v2631 = vpop.f32.mrb[0].mxu0
        %v2632 = vadd.f32 0.0, %v2631
        %v2633 = vpop.f32.mrb[0].mxu0
        %2634 = vmatprep.mubr.bf16.mxu0 0
        %2635 = vmatmul.mubr.bf16.gmra.mrb[0].mxu0 %v2492
        %v2636 = vpop.f32.mrb[0].mxu0
        %v2637 = vadd.f32 0.0, %v2636
        %v2638 = vpop.f32.mrb[0].mxu0
        %v2639 = vpop.f32.mrb[0].mxu0
        %v2640 = vadd.f32 0.0, %v2639
        %v2641 = vpop.f32.mrb[0].mxu0
        %2642 = vmatprep.mubr.bf16.mxu0 0
        %2643 = vmatmul.mubr.bf16.gmra.mrb[0].mxu0 %v2495
        %v2644 = vpop.f32.mrb[0].mxu0
        %v2645 = vadd.f32 0.0, %v2644
        %v2646 = vpop.f32.mrb[0].mxu0
        %v2647 = vpop.f32.mrb[0].mxu0
        %v2648 = vadd.f32 0.0, %v2647
        %v2649 = vpop.f32.mrb[0].mxu0
        %2650 = vmatprep.mubr.bf16.mxu0 0
        %2651 = vmatmul.mubr.bf16.gmra.mrb[0].mxu0 %v2498
        %v2652 = vpop.f32.mrb[0].mxu0
        %v2653 = vadd.f32 0.0, %v2652
        %v2654 = vpop.f32.mrb[0].mxu0
        %v2655 = vpop.f32.mrb[0].mxu0
        %v2656 = vadd.f32 0.0, %v2655
        %v2657 = vpop.f32.mrb[0].mxu0
        %2658 = vmatprep.mubr.bf16.mxu0 0
        %2659 = vmatmul.mubr.bf16.gmra.mrb[0].mxu0 %v2501
        %v2660 = vpop.f32.mrb[0].mxu0
        %v2661 = vadd.f32 0.0, %v2660
        %v2662 = vpop.f32.mrb[0].mxu0
        %v2663 = vpop.f32.mrb[0].mxu0
        %v2664 = vadd.f32 0.0, %v2663
        %v2665 = vpop.f32.mrb[0].mxu0
        %2666 = vdwg.mxu0
        %v2667 = vadd.f32 %v1941, %v2541
        %v2668 = vadd.f32 %v1942, %v2544
        %v2669 = vadd.f32 %v1943, %v2549
        %v2670 = vadd.f32 %v1944, %v2552
        %v2671 = vadd.f32 %v1945, %v2557
        %v2672 = vadd.f32 %v1946, %v2560
        %v2673 = vadd.f32 %v1947, %v2565
        %v2674 = vadd.f32 %v1948, %v2568
        %v2675 = vadd.f32 %v1949, %v2573
        %v2676 = vadd.f32 %v1950, %v2576
        %v2677 = vadd.f32 %v1951, %v2581
        %v2678 = vadd.f32 %v1952, %v2584
        %v2679 = vadd.f32 %v1953, %v2589
        %v2680 = vadd.f32 %v1954, %v2592
        %v2681 = vadd.f32 %v1955, %v2597
        %v2682 = vadd.f32 %v1956, %v2600
        %v2683 = vadd.f32 %v1957, %v2605
        %v2684 = vadd.f32 %v1958, %v2608
        %v2685 = vadd.f32 %v1959, %v2613
        %v2686 = vadd.f32 %v1960, %v2616
        %v2687 = vadd.f32 %v1961, %v2621
        %v2688 = vadd.f32 %v1962, %v2624
        %v2689 = vadd.f32 %v1963, %v2629
        %v2690 = vadd.f32 %v1964, %v2632
        %v2691 = vadd.f32 %v1965, %v2637
        %v2692 = vadd.f32 %v1966, %v2640
        %v2693 = vadd.f32 %v1967, %v2645
        %v2694 = vadd.f32 %v1968, %v2648
        %v2695 = vadd.f32 %v1969, %v2653
        %v2696 = vadd.f32 %v1970, %v2656
        %v2697 = vadd.f32 %v1971, %v2661
        %v2698 = vadd.f32 %v1972, %v2664
        %v2699 = vld [vmem:[%s1614] sm:$0xe]
        %v2700 = vld [vmem:[%s1614 + $0xc] sm:$0xe]
        %v2701 = vld [vmem:[%s1614 + $0x18] sm:$0xe]
        %v2702 = vld [vmem:[%s1614 + $0x24] sm:$0xe]
        %v2703 = vld [vmem:[%s1614 + $0x30] sm:$0xe]
        %v2704 = vld [vmem:[%s1614 + $0x3c] sm:$0xe]
        %v2705 = vld [vmem:[%s1614 + $0x48] sm:$0xe]
        %v2706 = vld [vmem:[%s1614 + $0x54] sm:$0xe]
        %v2707 = vld [vmem:[%s1614 + $0x60] sm:$0xe]
        %v2708 = vld [vmem:[%s1614 + $0x6c] sm:$0xe]
        %v2709 = vld [vmem:[%s1614 + $0x78] sm:$0xe]
        %v2710 = vld [vmem:[%s1614 + $0x84] sm:$0xe]
        %v2711 = vld [vmem:[%s1614 + $0x90] sm:$0xe]
        %v2712 = vld [vmem:[%s1614 + $0x9c] sm:$0xe]
        %v2713 = vld [vmem:[%s1614 + $0xa8] sm:$0xe]
        %v2714 = vld [vmem:[%s1614 + $0xb4] sm:$0xe]
        %v2763 = vrot.slane %v2699, 5
        %v2764 = vrot.slane %v2763, 4
        %v2765 = vrot.slane %v1974, 5
        %v2766 = vsel %vm1204, %v2764, %v2765
        %v2767 = vrot.slane %v2765, 4
        %v2768 = vrot.slane %v1975, 5
        %v2769 = vsel %vm1204, %v2767, %v2768
        %v2770 = vrot.slane %v2700, 5
        %v2771 = vrot.slane %v2770, 4
        %v2772 = vrot.slane %v1977, 5
        %v2773 = vsel %vm1204, %v2771, %v2772
        %v2774 = vrot.slane %v2772, 4
        %v2775 = vrot.slane %v1978, 5
        %v2776 = vsel %vm1204, %v2774, %v2775
        %v2777 = vrot.slane %v2701, 5
        %v2778 = vrot.slane %v2777, 4
        %v2779 = vrot.slane %v1980, 5
        %v2780 = vsel %vm1204, %v2778, %v2779
        %v2781 = vrot.slane %v2779, 4
        %v2782 = vrot.slane %v1981, 5
        %v2783 = vsel %vm1204, %v2781, %v2782
        %v2784 = vrot.slane %v2702, 5
        %v2785 = vrot.slane %v2784, 4
        %v2786 = vrot.slane %v1983, 5
        %v2787 = vsel %vm1204, %v2785, %v2786
        %v2788 = vrot.slane %v2786, 4
        %v2789 = vrot.slane %v1984, 5
        %v2790 = vsel %vm1204, %v2788, %v2789
        %v2791 = vrot.slane %v2703, 5
        %v2792 = vrot.slane %v2791, 4
        %v2793 = vrot.slane %v1986, 5
        %v2794 = vsel %vm1204, %v2792, %v2793
        %v2795 = vrot.slane %v2793, 4
        %v2796 = vrot.slane %v1987, 5
        %v2797 = vsel %vm1204, %v2795, %v2796
        %v2798 = vrot.slane %v2704, 5
        %v2799 = vrot.slane %v2798, 4
        %v2800 = vrot.slane %v1989, 5
        %v2801 = vsel %vm1204, %v2799, %v2800
        %v2802 = vrot.slane %v2800, 4
        %v2803 = vrot.slane %v1990, 5
        %v2804 = vsel %vm1204, %v2802, %v2803
        %v2805 = vrot.slane %v2705, 5
        %v2806 = vrot.slane %v2805, 4
        %v2807 = vrot.slane %v1992, 5
        %v2808 = vsel %vm1204, %v2806, %v2807
        %v2809 = vrot.slane %v2807, 4
        %v2810 = vrot.slane %v1993, 5
        %v2811 = vsel %vm1204, %v2809, %v2810
        %v2812 = vrot.slane %v2706, 5
        %v2813 = vrot.slane %v2812, 4
        %v2814 = vrot.slane %v1995, 5
        %v2815 = vsel %vm1204, %v2813, %v2814
        %v2816 = vrot.slane %v2814, 4
        %v2817 = vrot.slane %v1996, 5
        %v2818 = vsel %vm1204, %v2816, %v2817
        %v2819 = vrot.slane %v2707, 5
        %v2820 = vrot.slane %v2819, 4
        %v2821 = vrot.slane %v1998, 5
        %v2822 = vsel %vm1204, %v2820, %v2821
        %v2823 = vrot.slane %v2821, 4
        %v2824 = vrot.slane %v1999, 5
        %v2825 = vsel %vm1204, %v2823, %v2824
        %v2826 = vrot.slane %v2708, 5
        %v2827 = vrot.slane %v2826, 4
        %v2828 = vrot.slane %v2001, 5
        %v2829 = vsel %vm1204, %v2827, %v2828
        %v2830 = vrot.slane %v2828, 4
        %v2831 = vrot.slane %v2002, 5
        %v2832 = vsel %vm1204, %v2830, %v2831
        %v2833 = vrot.slane %v2709, 5
        %v2834 = vrot.slane %v2833, 4
        %v2835 = vrot.slane %v2004, 5
        %v2836 = vsel %vm1204, %v2834, %v2835
        %v2837 = vrot.slane %v2835, 4
        %v2838 = vrot.slane %v2005, 5
        %v2839 = vsel %vm1204, %v2837, %v2838
        %v2840 = vrot.slane %v2710, 5
        %v2841 = vrot.slane %v2840, 4
        %v2842 = vrot.slane %v2007, 5
        %v2843 = vsel %vm1204, %v2841, %v2842
        %v2844 = vrot.slane %v2842, 4
        %v2845 = vrot.slane %v2008, 5
        %v2846 = vsel %vm1204, %v2844, %v2845
        %v2847 = vrot.slane %v2711, 5
        %v2848 = vrot.slane %v2847, 4
        %v2849 = vrot.slane %v2010, 5
        %v2850 = vsel %vm1204, %v2848, %v2849
        %v2851 = vrot.slane %v2849, 4
        %v2852 = vrot.slane %v2011, 5
        %v2853 = vsel %vm1204, %v2851, %v2852
        %v2854 = vrot.slane %v2712, 5
        %v2855 = vrot.slane %v2854, 4
        %v2856 = vrot.slane %v2013, 5
        %v2857 = vsel %vm1204, %v2855, %v2856
        %v2858 = vrot.slane %v2856, 4
        %v2859 = vrot.slane %v2014, 5
        %v2860 = vsel %vm1204, %v2858, %v2859
        %v2861 = vrot.slane %v2713, 5
        %v2862 = vrot.slane %v2861, 4
        %v2863 = vrot.slane %v2016, 5
        %v2864 = vsel %vm1204, %v2862, %v2863
        %v2865 = vrot.slane %v2863, 4
        %v2866 = vrot.slane %v2017, 5
        %v2867 = vsel %vm1204, %v2865, %v2866
        %v2868 = vrot.slane %v2714, 5
        %v2869 = vrot.slane %v2868, 4
        %v2870 = vrot.slane %v2019, 5
        %v2871 = vsel %vm1204, %v2869, %v2870
        %v2872 = vrot.slane %v2870, 4
        %v2873 = vrot.slane %v2020, 5
        %v2874 = vsel %vm1204, %v2872, %v2873
        %s2875 = scalar_lea.vmem %s1, 10
        %v2876 = vld [vmem:[%s2875] sm:$0x3]
        %v2877 = vunpack.c.l.b16 %v2766
        %v2878 = vunpack.c.l.b16 %v2769
        %v2879 = vunpack.c.l.b16 %v2773
        %v2880 = vunpack.c.l.b16 %v2776
        %v2881 = vunpack.c.l.b16 %v2780
        %v2882 = vunpack.c.l.b16 %v2783
        %v2883 = vunpack.c.l.b16 %v2787
        %v2884 = vunpack.c.l.b16 %v2790
        %v2885 = vunpack.c.l.b16 %v2794
        %v2886 = vunpack.c.l.b16 %v2797
        %v2887 = vunpack.c.l.b16 %v2801
        %v2888 = vunpack.c.l.b16 %v2804
        %v2889 = vunpack.c.l.b16 %v2808
        %v2890 = vunpack.c.l.b16 %v2811
        %v2891 = vunpack.c.l.b16 %v2815
        %v2892 = vunpack.c.l.b16 %v2818
        %v2893 = vunpack.c.l.b16 %v2822
        %v2894 = vunpack.c.l.b16 %v2825
        %v2895 = vunpack.c.l.b16 %v2829
        %v2896 = vunpack.c.l.b16 %v2832
        %v2897 = vunpack.c.l.b16 %v2836
        %v2898 = vunpack.c.l.b16 %v2839
        %v2899 = vunpack.c.l.b16 %v2843
        %v2900 = vunpack.c.l.b16 %v2846
        %v2901 = vunpack.c.l.b16 %v2850
        %v2902 = vunpack.c.l.b16 %v2853
        %v2903 = vunpack.c.l.b16 %v2857
        %v2904 = vunpack.c.l.b16 %v2860
        %v2905 = vunpack.c.l.b16 %v2864
        %v2906 = vunpack.c.l.b16 %v2867
        %v2907 = vunpack.c.l.b16 %v2871
        %v2908 = vunpack.c.l.b16 %v2874
        %v2909 = vpack.c.b16 %v2878, %v2877
        %v2910 = vpack.c.b16 %v2880, %v2879
        %v2911 = vpack.c.b16 %v2882, %v2881
        %v2912 = vpack.c.b16 %v2884, %v2883
        %v2913 = vpack.c.b16 %v2886, %v2885
        %v2914 = vpack.c.b16 %v2888, %v2887
        %v2915 = vpack.c.b16 %v2890, %v2889
        %v2916 = vpack.c.b16 %v2892, %v2891
        %v2917 = vpack.c.b16 %v2894, %v2893
        %v2918 = vpack.c.b16 %v2896, %v2895
        %v2919 = vpack.c.b16 %v2898, %v2897
        %v2920 = vpack.c.b16 %v2900, %v2899
        %v2921 = vpack.c.b16 %v2902, %v2901
        %v2922 = vpack.c.b16 %v2904, %v2903
        %v2923 = vpack.c.b16 %v2906, %v2905
        %v2924 = vpack.c.b16 %v2908, %v2907
        %v2926 = vsel %vm648, %v2909, 0
        %v2929 = vsel %vm648, %v2910, 0
        %v2932 = vsel %vm648, %v2911, 0
        %v2935 = vsel %vm648, %v2912, 0
        %v2938 = vsel %vm648, %v2913, 0
        %v2941 = vsel %vm648, %v2914, 0
        %v2944 = vsel %vm648, %v2915, 0
        %v2947 = vsel %vm648, %v2916, 0
        %v2950 = vsel %vm648, %v2917, 0
        %v2953 = vsel %vm648, %v2918, 0
        %v2956 = vsel %vm648, %v2919, 0
        %v2959 = vsel %vm648, %v2920, 0
        %v2962 = vsel %vm648, %v2921, 0
        %v2965 = vsel %vm648, %v2922, 0
        %v2968 = vsel %vm648, %v2923, 0
        %v2971 = vsel %vm648, %v2924, 0
        %v2974 = vsel %vm697, %v2876, 0
        %2976 = vmatprep.subr.bf16.mxu0 0
        %2977 = vmatpush1.bf16.msra.mxu0 %v2974
        %2978 = vmatprep.subr.bf16.mxu0 0
        %2979 = vmatpush1.bf16.msra.mxu0 0
        %2980 = vmatprep.subr.bf16.mxu0 0
        %2981 = vmatpush1.bf16.msra.mxu0 0
        %2982 = vmatprep.subr.bf16.mxu0 0
        %2983 = vmatpush1.bf16.msra.mxu0 0
        %2984 = vmatprep.subr.bf16.mxu0 0
        %2985 = vmatpush1.bf16.msra.mxu0 0
        %2986 = vmatprep.subr.bf16.mxu0 0
        %2987 = vmatpush1.bf16.msra.mxu0 0
        %2988 = vmatprep.subr.bf16.mxu0 0
        %2989 = vmatpush1.bf16.msra.mxu0 0
        %2990 = vmatprep.subr.bf16.mxu0 0
        %2991 = vmatpush1.bf16.msra.mxu0 0
        %2992 = vmatprep.subr.bf16.mxu0 0
        %2993 = vmatpush1.bf16.msra.mxu0 0
        %2994 = vmatprep.subr.bf16.mxu0 0
        %2995 = vmatpush1.bf16.msra.mxu0 0
        %2996 = vmatprep.subr.bf16.mxu0 0
        %2997 = vmatpush1.bf16.msra.mxu0 0
        %2998 = vmatprep.subr.bf16.mxu0 0
        %2999 = vmatpush1.bf16.msra.mxu0 0
        %3000 = vmatprep.subr.bf16.mxu0 0
        %3001 = vmatpush1.bf16.msra.mxu0 0
        %3002 = vmatprep.subr.bf16.mxu0 0
        %3003 = vmatpush1.bf16.msra.mxu0 0
        %3004 = vmatprep.subr.bf16.mxu0 0
        %3005 = vmatpush1.bf16.msra.mxu0 0
        %3006 = vmatprep.subr.bf16.mxu0 0
        %3007 = vmatpush1.bf16.msra.mxu0 0
        %3008 = vmatprep.mubr.bf16.mxu0 0
        %3009 = vmatmul.mubr.bf16.gmra.mrb[0].mxu0 %v2926
        %v3010 = vpop.f32.mrb[0].mxu0
        %v3011 = vadd.f32 0.0, %v3010
        %v3012 = vpop.f32.mrb[0].mxu0
        %v3013 = vpop.f32.mrb[0].mxu0
        %v3014 = vadd.f32 0.0, %v3013
        %v3015 = vpop.f32.mrb[0].mxu0
        %3016 = vmatprep.mubr.bf16.mxu0 0
        %3017 = vmatmul.mubr.bf16.gmra.mrb[0].mxu0 %v2929
        %v3018 = vpop.f32.mrb[0].mxu0
        %v3019 = vadd.f32 0.0, %v3018
        %v3020 = vpop.f32.mrb[0].mxu0
        %v3021 = vpop.f32.mrb[0].mxu0
        %v3022 = vadd.f32 0.0, %v3021
        %v3023 = vpop.f32.mrb[0].mxu0
        %3024 = vmatprep.mubr.bf16.mxu0 0
        %3025 = vmatmul.mubr.bf16.gmra.mrb[0].mxu0 %v2932
        %v3026 = vpop.f32.mrb[0].mxu0
        %v3027 = vadd.f32 0.0, %v3026
        %v3028 = vpop.f32.mrb[0].mxu0
        %v3029 = vpop.f32.mrb[0].mxu0
        %v3030 = vadd.f32 0.0, %v3029
        %v3031 = vpop.f32.mrb[0].mxu0
        %3032 = vmatprep.mubr.bf16.mxu0 0
        %3033 = vmatmul.mubr.bf16.gmra.mrb[0].mxu0 %v2935
        %v3034 = vpop.f32.mrb[0].mxu0
        %v3035 = vadd.f32 0.0, %v3034
        %v3036 = vpop.f32.mrb[0].mxu0
        %v3037 = vpop.f32.mrb[0].mxu0
        %v3038 = vadd.f32 0.0, %v3037
        %v3039 = vpop.f32.mrb[0].mxu0
        %3040 = vmatprep.mubr.bf16.mxu0 0
        %3041 = vmatmul.mubr.bf16.gmra.mrb[0].mxu0 %v2938
        %v3042 = vpop.f32.mrb[0].mxu0
        %v3043 = vadd.f32 0.0, %v3042
        %v3044 = vpop.f32.mrb[0].mxu0
        %v3045 = vpop.f32.mrb[0].mxu0
        %v3046 = vadd.f32 0.0, %v3045
        %v3047 = vpop.f32.mrb[0].mxu0
        %3048 = vmatprep.mubr.bf16.mxu0 0
        %3049 = vmatmul.mubr.bf16.gmra.mrb[0].mxu0 %v2941
        %v3050 = vpop.f32.mrb[0].mxu0
        %v3051 = vadd.f32 0.0, %v3050
        %v3052 = vpop.f32.mrb[0].mxu0
        %v3053 = vpop.f32.mrb[0].mxu0
        %v3054 = vadd.f32 0.0, %v3053
        %v3055 = vpop.f32.mrb[0].mxu0
        %3056 = vmatprep.mubr.bf16.mxu0 0
        %3057 = vmatmul.mubr.bf16.gmra.mrb[0].mxu0 %v2944
        %v3058 = vpop.f32.mrb[0].mxu0
        %v3059 = vadd.f32 0.0, %v3058
        %v3060 = vpop.f32.mrb[0].mxu0
        %v3061 = vpop.f32.mrb[0].mxu0
        %v3062 = vadd.f32 0.0, %v3061
        %v3063 = vpop.f32.mrb[0].mxu0
        %3064 = vmatprep.mubr.bf16.mxu0 0
        %3065 = vmatmul.mubr.bf16.gmra.mrb[0].mxu0 %v2947
        %v3066 = vpop.f32.mrb[0].mxu0
        %v3067 = vadd.f32 0.0, %v3066
        %v3068 = vpop.f32.mrb[0].mxu0
        %v3069 = vpop.f32.mrb[0].mxu0
        %v3070 = vadd.f32 0.0, %v3069
        %v3071 = vpop.f32.mrb[0].mxu0
        %3072 = vmatprep.mubr.bf16.mxu0 0
        %3073 = vmatmul.mubr.bf16.gmra.mrb[0].mxu0 %v2950
        %v3074 = vpop.f32.mrb[0].mxu0
        %v3075 = vadd.f32 0.0, %v3074
        %v3076 = vpop.f32.mrb[0].mxu0
        %v3077 = vpop.f32.mrb[0].mxu0
        %v3078 = vadd.f32 0.0, %v3077
        %v3079 = vpop.f32.mrb[0].mxu0
        %3080 = vmatprep.mubr.bf16.mxu0 0
        %3081 = vmatmul.mubr.bf16.gmra.mrb[0].mxu0 %v2953
        %v3082 = vpop.f32.mrb[0].mxu0
        %v3083 = vadd.f32 0.0, %v3082
        %v3084 = vpop.f32.mrb[0].mxu0
        %v3085 = vpop.f32.mrb[0].mxu0
        %v3086 = vadd.f32 0.0, %v3085
        %v3087 = vpop.f32.mrb[0].mxu0
        %3088 = vmatprep.mubr.bf16.mxu0 0
        %3089 = vmatmul.mubr.bf16.gmra.mrb[0].mxu0 %v2956
        %v3090 = vpop.f32.mrb[0].mxu0
        %v3091 = vadd.f32 0.0, %v3090
        %v3092 = vpop.f32.mrb[0].mxu0
        %v3093 = vpop.f32.mrb[0].mxu0
        %v3094 = vadd.f32 0.0, %v3093
        %v3095 = vpop.f32.mrb[0].mxu0
        %3096 = vmatprep.mubr.bf16.mxu0 0
        %3097 = vmatmul.mubr.bf16.gmra.mrb[0].mxu0 %v2959
        %v3098 = vpop.f32.mrb[0].mxu0
        %v3099 = vadd.f32 0.0, %v3098
        %v3100 = vpop.f32.mrb[0].mxu0
        %v3101 = vpop.f32.mrb[0].mxu0
        %v3102 = vadd.f32 0.0, %v3101
        %v3103 = vpop.f32.mrb[0].mxu0
        %3104 = vmatprep.mubr.bf16.mxu0 0
        %3105 = vmatmul.mubr.bf16.gmra.mrb[0].mxu0 %v2962
        %v3106 = vpop.f32.mrb[0].mxu0
        %v3107 = vadd.f32 0.0, %v3106
        %v3108 = vpop.f32.mrb[0].mxu0
        %v3109 = vpop.f32.mrb[0].mxu0
        %v3110 = vadd.f32 0.0, %v3109
        %v3111 = vpop.f32.mrb[0].mxu0
        %3112 = vmatprep.mubr.bf16.mxu0 0
        %3113 = vmatmul.mubr.bf16.gmra.mrb[0].mxu0 %v2965
        %v3114 = vpop.f32.mrb[0].mxu0
        %v3115 = vadd.f32 0.0, %v3114
        %v3116 = vpop.f32.mrb[0].mxu0
        %v3117 = vpop.f32.mrb[0].mxu0
        %v3118 = vadd.f32 0.0, %v3117
        %v3119 = vpop.f32.mrb[0].mxu0
        %3120 = vmatprep.mubr.bf16.mxu0 0
        %3121 = vmatmul.mubr.bf16.gmra.mrb[0].mxu0 %v2968
        %v3122 = vpop.f32.mrb[0].mxu0
        %v3123 = vadd.f32 0.0, %v3122
        %v3124 = vpop.f32.mrb[0].mxu0
        %v3125 = vpop.f32.mrb[0].mxu0
        %v3126 = vadd.f32 0.0, %v3125
        %v3127 = vpop.f32.mrb[0].mxu0
        %3128 = vmatprep.mubr.bf16.mxu0 0
        %3129 = vmatmul.mubr.bf16.gmra.mrb[0].mxu0 %v2971
        %v3130 = vpop.f32.mrb[0].mxu0
        %v3131 = vadd.f32 0.0, %v3130
        %v3132 = vpop.f32.mrb[0].mxu0
        %v3133 = vpop.f32.mrb[0].mxu0
        %v3134 = vadd.f32 0.0, %v3133
        %v3135 = vpop.f32.mrb[0].mxu0
        %3136 = vdwg.mxu0
        %v3137 = vadd.f32 %v2667, %v3011
        %v3138 = vadd.f32 %v2668, %v3014
        %v3139 = vadd.f32 %v2669, %v3019
        %v3140 = vadd.f32 %v2670, %v3022
        %v3141 = vadd.f32 %v2671, %v3027
        %v3142 = vadd.f32 %v2672, %v3030
        %v3143 = vadd.f32 %v2673, %v3035
        %v3144 = vadd.f32 %v2674, %v3038
        %v3145 = vadd.f32 %v2675, %v3043
        %v3146 = vadd.f32 %v2676, %v3046
        %v3147 = vadd.f32 %v2677, %v3051
        %v3148 = vadd.f32 %v2678, %v3054
        %v3149 = vadd.f32 %v2679, %v3059
        %v3150 = vadd.f32 %v2680, %v3062
        %v3151 = vadd.f32 %v2681, %v3067
        %v3152 = vadd.f32 %v2682, %v3070
        %v3153 = vadd.f32 %v2683, %v3075
        %v3154 = vadd.f32 %v2684, %v3078
        %v3155 = vadd.f32 %v2685, %v3083
        %v3156 = vadd.f32 %v2686, %v3086
        %v3157 = vadd.f32 %v2687, %v3091
        %v3158 = vadd.f32 %v2688, %v3094
        %v3159 = vadd.f32 %v2689, %v3099
        %v3160 = vadd.f32 %v2690, %v3102
        %v3161 = vadd.f32 %v2691, %v3107
        %v3162 = vadd.f32 %v2692, %v3110
        %v3163 = vadd.f32 %v2693, %v3115
        %v3164 = vadd.f32 %v2694, %v3118
        %v3165 = vadd.f32 %v2695, %v3123
        %v3166 = vadd.f32 %v2696, %v3126
        %v3167 = vadd.f32 %v2697, %v3131
        %v3168 = vadd.f32 %v2698, %v3134
        %s3169 = sadd.s32 %s158, 2
        %s3170 = smul.u32 %s3169, 3
        %s3171 = smul.addr %s3170, 4
        %s3172 = scalar_lea.vmem %s155, %s3171
        %v3173 = vld [vmem:[%s3172] sm:$0xf]
        %v3174 = vld [vmem:[%s3172 + $0x4] sm:$0xf]
        %v3175 = vld [vmem:[%s3172 + $0xc] sm:$0xf]
        %v3176 = vld [vmem:[%s3172 + $0x10] sm:$0xf]
        %v3177 = vld [vmem:[%s3172 + $0x18] sm:$0xf]
        %v3178 = vld [vmem:[%s3172 + $0x1c] sm:$0xf]
        %v3179 = vld [vmem:[%s3172 + $0x24] sm:$0xf]
        %v3180 = vld [vmem:[%s3172 + $0x28] sm:$0xf]
        %v3181 = vld [vmem:[%s3172 + $0x30] sm:$0xf]
        %v3182 = vld [vmem:[%s3172 + $0x34] sm:$0xf]
        %v3183 = vld [vmem:[%s3172 + $0x3c] sm:$0xf]
        %v3184 = vld [vmem:[%s3172 + $0x40] sm:$0xf]
        %v3185 = vld [vmem:[%s3172 + $0x48] sm:$0xf]
        %v3186 = vld [vmem:[%s3172 + $0x4c] sm:$0xf]
        %v3187 = vld [vmem:[%s3172 + $0x54] sm:$0xf]
        %v3188 = vld [vmem:[%s3172 + $0x58] sm:$0xf]
        %v3189 = vld [vmem:[%s3172 + $0x60] sm:$0xf]
        %v3190 = vld [vmem:[%s3172 + $0x64] sm:$0xf]
        %v3191 = vld [vmem:[%s3172 + $0x6c] sm:$0xf]
        %v3192 = vld [vmem:[%s3172 + $0x70] sm:$0xf]
        %v3193 = vld [vmem:[%s3172 + $0x78] sm:$0xf]
        %v3194 = vld [vmem:[%s3172 + $0x7c] sm:$0xf]
        %v3195 = vld [vmem:[%s3172 + $0x84] sm:$0xf]
        %v3196 = vld [vmem:[%s3172 + $0x88] sm:$0xf]
        %v3197 = vld [vmem:[%s3172 + $0x90] sm:$0xf]
        %v3198 = vld [vmem:[%s3172 + $0x94] sm:$0xf]
        %v3199 = vld [vmem:[%s3172 + $0x9c] sm:$0xf]
        %v3200 = vld [vmem:[%s3172 + $0xa0] sm:$0xf]
        %v3201 = vld [vmem:[%s3172 + $0xa8] sm:$0xf]
        %v3202 = vld [vmem:[%s3172 + $0xac] sm:$0xf]
        %v3203 = vld [vmem:[%s3172 + $0xb4] sm:$0xf]
        %v3204 = vld [vmem:[%s3172 + $0xb8] sm:$0xf]
        %s3205 = scalar_lea.vmem %s1, 12
        %v3206 = vld [vmem:[%s3205] sm:$0x3]
        %v3239 = vunpack.c.l.b16 %v3173
        %v3240 = vunpack.c.l.b16 %v3174
        %v3241 = vunpack.c.l.b16 %v3175
        %v3242 = vunpack.c.l.b16 %v3176
        %v3243 = vunpack.c.l.b16 %v3177
        %v3244 = vunpack.c.l.b16 %v3178
        %v3245 = vunpack.c.l.b16 %v3179
        %v3246 = vunpack.c.l.b16 %v3180
        %v3247 = vunpack.c.l.b16 %v3181
        %v3248 = vunpack.c.l.b16 %v3182
        %v3249 = vunpack.c.l.b16 %v3183
        %v3250 = vunpack.c.l.b16 %v3184
        %v3251 = vunpack.c.l.b16 %v3185
        %v3252 = vunpack.c.l.b16 %v3186
        %v3253 = vunpack.c.l.b16 %v3187
        %v3254 = vunpack.c.l.b16 %v3188
        %v3255 = vunpack.c.l.b16 %v3189
        %v3256 = vunpack.c.l.b16 %v3190
        %v3257 = vunpack.c.l.b16 %v3191
        %v3258 = vunpack.c.l.b16 %v3192
        %v3259 = vunpack.c.l.b16 %v3193
        %v3260 = vunpack.c.l.b16 %v3194
        %v3261 = vunpack.c.l.b16 %v3195
        %v3262 = vunpack.c.l.b16 %v3196
        %v3263 = vunpack.c.l.b16 %v3197
        %v3264 = vunpack.c.l.b16 %v3198
        %v3265 = vunpack.c.l.b16 %v3199
        %v3266 = vunpack.c.l.b16 %v3200
        %v3267 = vunpack.c.l.b16 %v3201
        %v3268 = vunpack.c.l.b16 %v3202
        %v3269 = vunpack.c.l.b16 %v3203
        %v3270 = vunpack.c.l.b16 %v3204
        %v3271 = vpack.c.b16 %v3240, %v3239
        %v3272 = vpack.c.b16 %v3242, %v3241
        %v3273 = vpack.c.b16 %v3244, %v3243
        %v3274 = vpack.c.b16 %v3246, %v3245
        %v3275 = vpack.c.b16 %v3248, %v3247
        %v3276 = vpack.c.b16 %v3250, %v3249
        %v3277 = vpack.c.b16 %v3252, %v3251
        %v3278 = vpack.c.b16 %v3254, %v3253
        %v3279 = vpack.c.b16 %v3256, %v3255
        %v3280 = vpack.c.b16 %v3258, %v3257
        %v3281 = vpack.c.b16 %v3260, %v3259
        %v3282 = vpack.c.b16 %v3262, %v3261
        %v3283 = vpack.c.b16 %v3264, %v3263
        %v3284 = vpack.c.b16 %v3266, %v3265
        %v3285 = vpack.c.b16 %v3268, %v3267
        %v3286 = vpack.c.b16 %v3270, %v3269
        %v3288 = vsel %vm648, %v3271, 0
        %v3291 = vsel %vm648, %v3272, 0
        %v3294 = vsel %vm648, %v3273, 0
        %v3297 = vsel %vm648, %v3274, 0
        %v3300 = vsel %vm648, %v3275, 0
        %v3303 = vsel %vm648, %v3276, 0
        %v3306 = vsel %vm648, %v3277, 0
        %v3309 = vsel %vm648, %v3278, 0
        %v3312 = vsel %vm648, %v3279, 0
        %v3315 = vsel %vm648, %v3280, 0
        %v3318 = vsel %vm648, %v3281, 0
        %v3321 = vsel %vm648, %v3282, 0
        %v3324 = vsel %vm648, %v3283, 0
        %v3327 = vsel %vm648, %v3284, 0
        %v3330 = vsel %vm648, %v3285, 0
        %v3333 = vsel %vm648, %v3286, 0
        %v3336 = vsel %vm697, %v3206, 0
        %3338 = vmatprep.subr.bf16.mxu0 0
        %3339 = vmatpush1.bf16.msra.mxu0 %v3336
        %3340 = vmatprep.subr.bf16.mxu0 0
        %3341 = vmatpush1.bf16.msra.mxu0 0
        %3342 = vmatprep.subr.bf16.mxu0 0
        %3343 = vmatpush1.bf16.msra.mxu0 0
        %3344 = vmatprep.subr.bf16.mxu0 0
        %3345 = vmatpush1.bf16.msra.mxu0 0
        %3346 = vmatprep.subr.bf16.mxu0 0
        %3347 = vmatpush1.bf16.msra.mxu0 0
        %3348 = vmatprep.subr.bf16.mxu0 0
        %3349 = vmatpush1.bf16.msra.mxu0 0
        %3350 = vmatprep.subr.bf16.mxu0 0
        %3351 = vmatpush1.bf16.msra.mxu0 0
        %3352 = vmatprep.subr.bf16.mxu0 0
        %3353 = vmatpush1.bf16.msra.mxu0 0
        %3354 = vmatprep.subr.bf16.mxu0 0
        %3355 = vmatpush1.bf16.msra.mxu0 0
        %3356 = vmatprep.subr.bf16.mxu0 0
        %3357 = vmatpush1.bf16.msra.mxu0 0
        %3358 = vmatprep.subr.bf16.mxu0 0
        %3359 = vmatpush1.bf16.msra.mxu0 0
        %3360 = vmatprep.subr.bf16.mxu0 0
        %3361 = vmatpush1.bf16.msra.mxu0 0
        %3362 = vmatprep.subr.bf16.mxu0 0
        %3363 = vmatpush1.bf16.msra.mxu0 0
        %3364 = vmatprep.subr.bf16.mxu0 0
        %3365 = vmatpush1.bf16.msra.mxu0 0
        %3366 = vmatprep.subr.bf16.mxu0 0
        %3367 = vmatpush1.bf16.msra.mxu0 0
        %3368 = vmatprep.subr.bf16.mxu0 0
        %3369 = vmatpush1.bf16.msra.mxu0 0
        %3370 = vmatprep.mubr.bf16.mxu0 0
        %3371 = vmatmul.mubr.bf16.gmra.mrb[0].mxu0 %v3288
        %v3372 = vpop.f32.mrb[0].mxu0
        %v3373 = vadd.f32 0.0, %v3372
        %v3374 = vpop.f32.mrb[0].mxu0
        %v3375 = vpop.f32.mrb[0].mxu0
        %v3376 = vadd.f32 0.0, %v3375
        %v3377 = vpop.f32.mrb[0].mxu0
        %3378 = vmatprep.mubr.bf16.mxu0 0
        %3379 = vmatmul.mubr.bf16.gmra.mrb[0].mxu0 %v3291
        %v3380 = vpop.f32.mrb[0].mxu0
        %v3381 = vadd.f32 0.0, %v3380
        %v3382 = vpop.f32.mrb[0].mxu0
        %v3383 = vpop.f32.mrb[0].mxu0
        %v3384 = vadd.f32 0.0, %v3383
        %v3385 = vpop.f32.mrb[0].mxu0
        %3386 = vmatprep.mubr.bf16.mxu0 0
        %3387 = vmatmul.mubr.bf16.gmra.mrb[0].mxu0 %v3294
        %v3388 = vpop.f32.mrb[0].mxu0
        %v3389 = vadd.f32 0.0, %v3388
        %v3390 = vpop.f32.mrb[0].mxu0
        %v3391 = vpop.f32.mrb[0].mxu0
        %v3392 = vadd.f32 0.0, %v3391
        %v3393 = vpop.f32.mrb[0].mxu0
        %3394 = vmatprep.mubr.bf16.mxu0 0
        %3395 = vmatmul.mubr.bf16.gmra.mrb[0].mxu0 %v3297
        %v3396 = vpop.f32.mrb[0].mxu0
        %v3397 = vadd.f32 0.0, %v3396
        %v3398 = vpop.f32.mrb[0].mxu0
        %v3399 = vpop.f32.mrb[0].mxu0
        %v3400 = vadd.f32 0.0, %v3399
        %v3401 = vpop.f32.mrb[0].mxu0
        %3402 = vmatprep.mubr.bf16.mxu0 0
        %3403 = vmatmul.mubr.bf16.gmra.mrb[0].mxu0 %v3300
        %v3404 = vpop.f32.mrb[0].mxu0
        %v3405 = vadd.f32 0.0, %v3404
        %v3406 = vpop.f32.mrb[0].mxu0
        %v3407 = vpop.f32.mrb[0].mxu0
        %v3408 = vadd.f32 0.0, %v3407
        %v3409 = vpop.f32.mrb[0].mxu0
        %3410 = vmatprep.mubr.bf16.mxu0 0
        %3411 = vmatmul.mubr.bf16.gmra.mrb[0].mxu0 %v3303
        %v3412 = vpop.f32.mrb[0].mxu0
        %v3413 = vadd.f32 0.0, %v3412
        %v3414 = vpop.f32.mrb[0].mxu0
        %v3415 = vpop.f32.mrb[0].mxu0
        %v3416 = vadd.f32 0.0, %v3415
        %v3417 = vpop.f32.mrb[0].mxu0
        %3418 = vmatprep.mubr.bf16.mxu0 0
        %3419 = vmatmul.mubr.bf16.gmra.mrb[0].mxu0 %v3306
        %v3420 = vpop.f32.mrb[0].mxu0
        %v3421 = vadd.f32 0.0, %v3420
        %v3422 = vpop.f32.mrb[0].mxu0
        %v3423 = vpop.f32.mrb[0].mxu0
        %v3424 = vadd.f32 0.0, %v3423
        %v3425 = vpop.f32.mrb[0].mxu0
        %3426 = vmatprep.mubr.bf16.mxu0 0
        %3427 = vmatmul.mubr.bf16.gmra.mrb[0].mxu0 %v3309
        %v3428 = vpop.f32.mrb[0].mxu0
        %v3429 = vadd.f32 0.0, %v3428
        %v3430 = vpop.f32.mrb[0].mxu0
        %v3431 = vpop.f32.mrb[0].mxu0
        %v3432 = vadd.f32 0.0, %v3431
        %v3433 = vpop.f32.mrb[0].mxu0
        %3434 = vmatprep.mubr.bf16.mxu0 0
        %3435 = vmatmul.mubr.bf16.gmra.mrb[0].mxu0 %v3312
        %v3436 = vpop.f32.mrb[0].mxu0
        %v3437 = vadd.f32 0.0, %v3436
        %v3438 = vpop.f32.mrb[0].mxu0
        %v3439 = vpop.f32.mrb[0].mxu0
        %v3440 = vadd.f32 0.0, %v3439
        %v3441 = vpop.f32.mrb[0].mxu0
        %3442 = vmatprep.mubr.bf16.mxu0 0
        %3443 = vmatmul.mubr.bf16.gmra.mrb[0].mxu0 %v3315
        %v3444 = vpop.f32.mrb[0].mxu0
        %v3445 = vadd.f32 0.0, %v3444
        %v3446 = vpop.f32.mrb[0].mxu0
        %v3447 = vpop.f32.mrb[0].mxu0
        %v3448 = vadd.f32 0.0, %v3447
        %v3449 = vpop.f32.mrb[0].mxu0
        %3450 = vmatprep.mubr.bf16.mxu0 0
        %3451 = vmatmul.mubr.bf16.gmra.mrb[0].mxu0 %v3318
        %v3452 = vpop.f32.mrb[0].mxu0
        %v3453 = vadd.f32 0.0, %v3452
        %v3454 = vpop.f32.mrb[0].mxu0
        %v3455 = vpop.f32.mrb[0].mxu0
        %v3456 = vadd.f32 0.0, %v3455
        %v3457 = vpop.f32.mrb[0].mxu0
        %3458 = vmatprep.mubr.bf16.mxu0 0
        %3459 = vmatmul.mubr.bf16.gmra.mrb[0].mxu0 %v3321
        %v3460 = vpop.f32.mrb[0].mxu0
        %v3461 = vadd.f32 0.0, %v3460
        %v3462 = vpop.f32.mrb[0].mxu0
        %v3463 = vpop.f32.mrb[0].mxu0
        %v3464 = vadd.f32 0.0, %v3463
        %v3465 = vpop.f32.mrb[0].mxu0
        %3466 = vmatprep.mubr.bf16.mxu0 0
        %3467 = vmatmul.mubr.bf16.gmra.mrb[0].mxu0 %v3324
        %v3468 = vpop.f32.mrb[0].mxu0
        %v3469 = vadd.f32 0.0, %v3468
        %v3470 = vpop.f32.mrb[0].mxu0
        %v3471 = vpop.f32.mrb[0].mxu0
        %v3472 = vadd.f32 0.0, %v3471
        %v3473 = vpop.f32.mrb[0].mxu0
        %3474 = vmatprep.mubr.bf16.mxu0 0
        %3475 = vmatmul.mubr.bf16.gmra.mrb[0].mxu0 %v3327
        %v3476 = vpop.f32.mrb[0].mxu0
        %v3477 = vadd.f32 0.0, %v3476
        %v3478 = vpop.f32.mrb[0].mxu0
        %v3479 = vpop.f32.mrb[0].mxu0
        %v3480 = vadd.f32 0.0, %v3479
        %v3481 = vpop.f32.mrb[0].mxu0
        %3482 = vmatprep.mubr.bf16.mxu0 0
        %3483 = vmatmul.mubr.bf16.gmra.mrb[0].mxu0 %v3330
        %v3484 = vpop.f32.mrb[0].mxu0
        %v3485 = vadd.f32 0.0, %v3484
        %v3486 = vpop.f32.mrb[0].mxu0
        %v3487 = vpop.f32.mrb[0].mxu0
        %v3488 = vadd.f32 0.0, %v3487
        %v3489 = vpop.f32.mrb[0].mxu0
        %3490 = vmatprep.mubr.bf16.mxu0 0
        %3491 = vmatmul.mubr.bf16.gmra.mrb[0].mxu0 %v3333
        %v3492 = vpop.f32.mrb[0].mxu0
        %v3493 = vadd.f32 0.0, %v3492
        %v3494 = vpop.f32.mrb[0].mxu0
        %v3495 = vpop.f32.mrb[0].mxu0
        %v3496 = vadd.f32 0.0, %v3495
        %v3497 = vpop.f32.mrb[0].mxu0
        %3498 = vdwg.mxu0
        %v3499 = vadd.f32 %v3137, %v3373
        %v3500 = vadd.f32 %v3138, %v3376
        %v3501 = vadd.f32 %v3139, %v3381
        %v3502 = vadd.f32 %v3140, %v3384
        %v3503 = vadd.f32 %v3141, %v3389
        %v3504 = vadd.f32 %v3142, %v3392
        %v3505 = vadd.f32 %v3143, %v3397
        %v3506 = vadd.f32 %v3144, %v3400
        %v3507 = vadd.f32 %v3145, %v3405
        %v3508 = vadd.f32 %v3146, %v3408
        %v3509 = vadd.f32 %v3147, %v3413
        %v3510 = vadd.f32 %v3148, %v3416
        %v3511 = vadd.f32 %v3149, %v3421
        %v3512 = vadd.f32 %v3150, %v3424
        %v3513 = vadd.f32 %v3151, %v3429
        %v3514 = vadd.f32 %v3152, %v3432
        %v3515 = vadd.f32 %v3153, %v3437
        %v3516 = vadd.f32 %v3154, %v3440
        %v3517 = vadd.f32 %v3155, %v3445
        %v3518 = vadd.f32 %v3156, %v3448
        %v3519 = vadd.f32 %v3157, %v3453
        %v3520 = vadd.f32 %v3158, %v3456
        %v3521 = vadd.f32 %v3159, %v3461
        %v3522 = vadd.f32 %v3160, %v3464
        %v3523 = vadd.f32 %v3161, %v3469
        %v3524 = vadd.f32 %v3162, %v3472
        %v3525 = vadd.f32 %v3163, %v3477
        %v3526 = vadd.f32 %v3164, %v3480
        %v3527 = vadd.f32 %v3165, %v3485
        %v3528 = vadd.f32 %v3166, %v3488
        %v3529 = vadd.f32 %v3167, %v3493
        %v3530 = vadd.f32 %v3168, %v3496
        %v3531 = vld [vmem:[%s3172] sm:$0xf]
        %v3532 = vld [vmem:[%s3172 + $0x4] sm:$0xf]
        %v3533 = vld [vmem:[%s3172 + $0x8] sm:$0x1]
        %v3534 = vld [vmem:[%s3172 + $0xc] sm:$0xf]
        %v3535 = vld [vmem:[%s3172 + $0x10] sm:$0xf]
        %v3536 = vld [vmem:[%s3172 + $0x14] sm:$0x1]
        %v3537 = vld [vmem:[%s3172 + $0x18] sm:$0xf]
        %v3538 = vld [vmem:[%s3172 + $0x1c] sm:$0xf]
        %v3539 = vld [vmem:[%s3172 + $0x20] sm:$0x1]
        %v3540 = vld [vmem:[%s3172 + $0x24] sm:$0xf]
        %v3541 = vld [vmem:[%s3172 + $0x28] sm:$0xf]
        %v3542 = vld [vmem:[%s3172 + $0x2c] sm:$0x1]
        %v3543 = vld [vmem:[%s3172 + $0x30] sm:$0xf]
        %v3544 = vld [vmem:[%s3172 + $0x34] sm:$0xf]
        %v3545 = vld [vmem:[%s3172 + $0x38] sm:$0x1]
        %v3546 = vld [vmem:[%s3172 + $0x3c] sm:$0xf]
        %v3547 = vld [vmem:[%s3172 + $0x40] sm:$0xf]
        %v3548 = vld [vmem:[%s3172 + $0x44] sm:$0x1]
        %v3549 = vld [vmem:[%s3172 + $0x48] sm:$0xf]
        %v3550 = vld [vmem:[%s3172 + $0x4c] sm:$0xf]
        %v3551 = vld [vmem:[%s3172 + $0x50] sm:$0x1]
        %v3552 = vld [vmem:[%s3172 + $0x54] sm:$0xf]
        %v3553 = vld [vmem:[%s3172 + $0x58] sm:$0xf]
        %v3554 = vld [vmem:[%s3172 + $0x5c] sm:$0x1]
        %v3555 = vld [vmem:[%s3172 + $0x60] sm:$0xf]
        %v3556 = vld [vmem:[%s3172 + $0x64] sm:$0xf]
        %v3557 = vld [vmem:[%s3172 + $0x68] sm:$0x1]
        %v3558 = vld [vmem:[%s3172 + $0x6c] sm:$0xf]
        %v3559 = vld [vmem:[%s3172 + $0x70] sm:$0xf]
        %v3560 = vld [vmem:[%s3172 + $0x74] sm:$0x1]
        %v3561 = vld [vmem:[%s3172 + $0x78] sm:$0xf]
        %v3562 = vld [vmem:[%s3172 + $0x7c] sm:$0xf]
        %v3563 = vld [vmem:[%s3172 + $0x80] sm:$0x1]
        %v3564 = vld [vmem:[%s3172 + $0x84] sm:$0xf]
        %v3565 = vld [vmem:[%s3172 + $0x88] sm:$0xf]
        %v3566 = vld [vmem:[%s3172 + $0x8c] sm:$0x1]
        %v3567 = vld [vmem:[%s3172 + $0x90] sm:$0xf]
        %v3568 = vld [vmem:[%s3172 + $0x94] sm:$0xf]
        %v3569 = vld [vmem:[%s3172 + $0x98] sm:$0x1]
        %v3570 = vld [vmem:[%s3172 + $0x9c] sm:$0xf]
        %v3571 = vld [vmem:[%s3172 + $0xa0] sm:$0xf]
        %v3572 = vld [vmem:[%s3172 + $0xa4] sm:$0x1]
        %v3573 = vld [vmem:[%s3172 + $0xa8] sm:$0xf]
        %v3574 = vld [vmem:[%s3172 + $0xac] sm:$0xf]
        %v3575 = vld [vmem:[%s3172 + $0xb0] sm:$0x1]
        %v3576 = vld [vmem:[%s3172 + $0xb4] sm:$0xf]
        %v3577 = vld [vmem:[%s3172 + $0xb8] sm:$0xf]
        %v3578 = vld [vmem:[%s3172 + $0xbc] sm:$0x1]
        %v3580 = vshrl.u32 %v3531, 16
        %v3582 = vrot.slane %v3580, 4
        %v3583 = vshll.u32 %v3531, 16
        %v3585 = vrot.slane %v3583, 5
        %v3586 = vor.u32 %v3582, %v3585
        %v3587 = vrot.slane %v3586, 4
        %v3589 = vshll.u32 %v3532, 16
        %v3591 = vrot.slane %v3589, 5
        %v3592 = vsel %vm213, %v3587, %v3591
        %v3593 = vshrl.u32 %v3532, 16
        %v3595 = vrot.slane %v3593, 4
        %v3596 = vor.u32 %v3595, %v3591
        %v3597 = vrot.slane %v3596, 4
        %v3599 = vshll.u32 %v3533, 16
        %v3601 = vrot.slane %v3599, 5
        %v3602 = vsel %vm213, %v3597, %v3601
        %v3604 = vshrl.u32 %v3534, 16
        %v3606 = vrot.slane %v3604, 4
        %v3607 = vshll.u32 %v3534, 16
        %v3609 = vrot.slane %v3607, 5
        %v3610 = vor.u32 %v3606, %v3609
        %v3611 = vrot.slane %v3610, 4
        %v3613 = vshll.u32 %v3535, 16
        %v3615 = vrot.slane %v3613, 5
        %v3616 = vsel %vm213, %v3611, %v3615
        %v3617 = vshrl.u32 %v3535, 16
        %v3619 = vrot.slane %v3617, 4
        %v3620 = vor.u32 %v3619, %v3615
        %v3621 = vrot.slane %v3620, 4
        %v3623 = vshll.u32 %v3536, 16
        %v3625 = vrot.slane %v3623, 5
        %v3626 = vsel %vm213, %v3621, %v3625
        %v3628 = vshrl.u32 %v3537, 16
        %v3630 = vrot.slane %v3628, 4
        %v3631 = vshll.u32 %v3537, 16
        %v3633 = vrot.slane %v3631, 5
        %v3634 = vor.u32 %v3630, %v3633
        %v3635 = vrot.slane %v3634, 4
        %v3637 = vshll.u32 %v3538, 16
        %v3639 = vrot.slane %v3637, 5
        %v3640 = vsel %vm213, %v3635, %v3639
        %v3641 = vshrl.u32 %v3538, 16
        %v3643 = vrot.slane %v3641, 4
        %v3644 = vor.u32 %v3643, %v3639
        %v3645 = vrot.slane %v3644, 4
        %v3647 = vshll.u32 %v3539, 16
        %v3649 = vrot.slane %v3647, 5
        %v3650 = vsel %vm213, %v3645, %v3649
        %v3652 = vshrl.u32 %v3540, 16
        %v3654 = vrot.slane %v3652, 4
        %v3655 = vshll.u32 %v3540, 16
        %v3657 = vrot.slane %v3655, 5
        %v3658 = vor.u32 %v3654, %v3657
        %v3659 = vrot.slane %v3658, 4
        %v3661 = vshll.u32 %v3541, 16
        %v3663 = vrot.slane %v3661, 5
        %v3664 = vsel %vm213, %v3659, %v3663
        %v3665 = vshrl.u32 %v3541, 16
        %v3667 = vrot.slane %v3665, 4
        %v3668 = vor.u32 %v3667, %v3663
        %v3669 = vrot.slane %v3668, 4
        %v3671 = vshll.u32 %v3542, 16
        %v3673 = vrot.slane %v3671, 5
        %v3674 = vsel %vm213, %v3669, %v3673
        %v3676 = vshrl.u32 %v3543, 16
        %v3678 = vrot.slane %v3676, 4
        %v3679 = vshll.u32 %v3543, 16
        %v3681 = vrot.slane %v3679, 5
        %v3682 = vor.u32 %v3678, %v3681
        %v3683 = vrot.slane %v3682, 4
        %v3685 = vshll.u32 %v3544, 16
        %v3687 = vrot.slane %v3685, 5
        %v3688 = vsel %vm213, %v3683, %v3687
        %v3689 = vshrl.u32 %v3544, 16
        %v3691 = vrot.slane %v3689, 4
        %v3692 = vor.u32 %v3691, %v3687
        %v3693 = vrot.slane %v3692, 4
        %v3695 = vshll.u32 %v3545, 16
        %v3697 = vrot.slane %v3695, 5
        %v3698 = vsel %vm213, %v3693, %v3697
        %v3700 = vshrl.u32 %v3546, 16
        %v3702 = vrot.slane %v3700, 4
        %v3703 = vshll.u32 %v3546, 16
        %v3705 = vrot.slane %v3703, 5
        %v3706 = vor.u32 %v3702, %v3705
        %v3707 = vrot.slane %v3706, 4
        %v3709 = vshll.u32 %v3547, 16
        %v3711 = vrot.slane %v3709, 5
        %v3712 = vsel %vm213, %v3707, %v3711
        %v3713 = vshrl.u32 %v3547, 16
        %v3715 = vrot.slane %v3713, 4
        %v3716 = vor.u32 %v3715, %v3711
        %v3717 = vrot.slane %v3716, 4
        %v3719 = vshll.u32 %v3548, 16
        %v3721 = vrot.slane %v3719, 5
        %v3722 = vsel %vm213, %v3717, %v3721
        %v3724 = vshrl.u32 %v3549, 16
        %v3726 = vrot.slane %v3724, 4
        %v3727 = vshll.u32 %v3549, 16
        %v3729 = vrot.slane %v3727, 5
        %v3730 = vor.u32 %v3726, %v3729
        %v3731 = vrot.slane %v3730, 4
        %v3733 = vshll.u32 %v3550, 16
        %v3735 = vrot.slane %v3733, 5
        %v3736 = vsel %vm213, %v3731, %v3735
        %v3737 = vshrl.u32 %v3550, 16
        %v3739 = vrot.slane %v3737, 4
        %v3740 = vor.u32 %v3739, %v3735
        %v3741 = vrot.slane %v3740, 4
        %v3743 = vshll.u32 %v3551, 16
        %v3745 = vrot.slane %v3743, 5
        %v3746 = vsel %vm213, %v3741, %v3745
        %v3748 = vshrl.u32 %v3552, 16
        %v3750 = vrot.slane %v3748, 4
        %v3751 = vshll.u32 %v3552, 16
        %v3753 = vrot.slane %v3751, 5
        %v3754 = vor.u32 %v3750, %v3753
        %v3755 = vrot.slane %v3754, 4
        %v3757 = vshll.u32 %v3553, 16
        %v3759 = vrot.slane %v3757, 5
        %v3760 = vsel %vm213, %v3755, %v3759
        %v3761 = vshrl.u32 %v3553, 16
        %v3763 = vrot.slane %v3761, 4
        %v3764 = vor.u32 %v3763, %v3759
        %v3765 = vrot.slane %v3764, 4
        %v3767 = vshll.u32 %v3554, 16
        %v3769 = vrot.slane %v3767, 5
        %v3770 = vsel %vm213, %v3765, %v3769
        %v3772 = vshrl.u32 %v3555, 16
        %v3774 = vrot.slane %v3772, 4
        %v3775 = vshll.u32 %v3555, 16
        %v3777 = vrot.slane %v3775, 5
        %v3778 = vor.u32 %v3774, %v3777
        %v3779 = vrot.slane %v3778, 4
        %v3781 = vshll.u32 %v3556, 16
        %v3783 = vrot.slane %v3781, 5
        %v3784 = vsel %vm213, %v3779, %v3783
        %v3785 = vshrl.u32 %v3556, 16
        %v3787 = vrot.slane %v3785, 4
        %v3788 = vor.u32 %v3787, %v3783
        %v3789 = vrot.slane %v3788, 4
        %v3791 = vshll.u32 %v3557, 16
        %v3793 = vrot.slane %v3791, 5
        %v3794 = vsel %vm213, %v3789, %v3793
        %v3796 = vshrl.u32 %v3558, 16
        %v3798 = vrot.slane %v3796, 4
        %v3799 = vshll.u32 %v3558, 16
        %v3801 = vrot.slane %v3799, 5
        %v3802 = vor.u32 %v3798, %v3801
        %v3803 = vrot.slane %v3802, 4
        %v3805 = vshll.u32 %v3559, 16
        %v3807 = vrot.slane %v3805, 5
        %v3808 = vsel %vm213, %v3803, %v3807
        %v3809 = vshrl.u32 %v3559, 16
        %v3811 = vrot.slane %v3809, 4
        %v3812 = vor.u32 %v3811, %v3807
        %v3813 = vrot.slane %v3812, 4
        %v3815 = vshll.u32 %v3560, 16
        %v3817 = vrot.slane %v3815, 5
        %v3818 = vsel %vm213, %v3813, %v3817
        %v3820 = vshrl.u32 %v3561, 16
        %v3822 = vrot.slane %v3820, 4
        %v3823 = vshll.u32 %v3561, 16
        %v3825 = vrot.slane %v3823, 5
        %v3826 = vor.u32 %v3822, %v3825
        %v3827 = vrot.slane %v3826, 4
        %v3829 = vshll.u32 %v3562, 16
        %v3831 = vrot.slane %v3829, 5
        %v3832 = vsel %vm213, %v3827, %v3831
        %v3833 = vshrl.u32 %v3562, 16
        %v3835 = vrot.slane %v3833, 4
        %v3836 = vor.u32 %v3835, %v3831
        %v3837 = vrot.slane %v3836, 4
        %v3839 = vshll.u32 %v3563, 16
        %v3841 = vrot.slane %v3839, 5
        %v3842 = vsel %vm213, %v3837, %v3841
        %v3844 = vshrl.u32 %v3564, 16
        %v3846 = vrot.slane %v3844, 4
        %v3847 = vshll.u32 %v3564, 16
        %v3849 = vrot.slane %v3847, 5
        %v3850 = vor.u32 %v3846, %v3849
        %v3851 = vrot.slane %v3850, 4
        %v3853 = vshll.u32 %v3565, 16
        %v3855 = vrot.slane %v3853, 5
        %v3856 = vsel %vm213, %v3851, %v3855
        %v3857 = vshrl.u32 %v3565, 16
        %v3859 = vrot.slane %v3857, 4
        %v3860 = vor.u32 %v3859, %v3855
        %v3861 = vrot.slane %v3860, 4
        %v3863 = vshll.u32 %v3566, 16
        %v3865 = vrot.slane %v3863, 5
        %v3866 = vsel %vm213, %v3861, %v3865
        %v3868 = vshrl.u32 %v3567, 16
        %v3870 = vrot.slane %v3868, 4
        %v3871 = vshll.u32 %v3567, 16
        %v3873 = vrot.slane %v3871, 5
        %v3874 = vor.u32 %v3870, %v3873
        %v3875 = vrot.slane %v3874, 4
        %v3877 = vshll.u32 %v3568, 16
        %v3879 = vrot.slane %v3877, 5
        %v3880 = vsel %vm213, %v3875, %v3879
        %v3881 = vshrl.u32 %v3568, 16
        %v3883 = vrot.slane %v3881, 4
        %v3884 = vor.u32 %v3883, %v3879
        %v3885 = vrot.slane %v3884, 4
        %v3887 = vshll.u32 %v3569, 16
        %v3889 = vrot.slane %v3887, 5
        %v3890 = vsel %vm213, %v3885, %v3889
        %v3892 = vshrl.u32 %v3570, 16
        %v3894 = vrot.slane %v3892, 4
        %v3895 = vshll.u32 %v3570, 16
        %v3897 = vrot.slane %v3895, 5
        %v3898 = vor.u32 %v3894, %v3897
        %v3899 = vrot.slane %v3898, 4
        %v3901 = vshll.u32 %v3571, 16
        %v3903 = vrot.slane %v3901, 5
        %v3904 = vsel %vm213, %v3899, %v3903
        %v3905 = vshrl.u32 %v3571, 16
        %v3907 = vrot.slane %v3905, 4
        %v3908 = vor.u32 %v3907, %v3903
        %v3909 = vrot.slane %v3908, 4
        %v3911 = vshll.u32 %v3572, 16
        %v3913 = vrot.slane %v3911, 5
        %v3914 = vsel %vm213, %v3909, %v3913
        %v3916 = vshrl.u32 %v3573, 16
        %v3918 = vrot.slane %v3916, 4
        %v3919 = vshll.u32 %v3573, 16
        %v3921 = vrot.slane %v3919, 5
        %v3922 = vor.u32 %v3918, %v3921
        %v3923 = vrot.slane %v3922, 4
        %v3925 = vshll.u32 %v3574, 16
        %v3927 = vrot.slane %v3925, 5
        %v3928 = vsel %vm213, %v3923, %v3927
        %v3929 = vshrl.u32 %v3574, 16
        %v3931 = vrot.slane %v3929, 4
        %v3932 = vor.u32 %v3931, %v3927
        %v3933 = vrot.slane %v3932, 4
        %v3935 = vshll.u32 %v3575, 16
        %v3937 = vrot.slane %v3935, 5
        %v3938 = vsel %vm213, %v3933, %v3937
        %v3940 = vshrl.u32 %v3576, 16
        %v3942 = vrot.slane %v3940, 4
        %v3943 = vshll.u32 %v3576, 16
        %v3945 = vrot.slane %v3943, 5
        %v3946 = vor.u32 %v3942, %v3945
        %v3947 = vrot.slane %v3946, 4
        %v3949 = vshll.u32 %v3577, 16
        %v3951 = vrot.slane %v3949, 5
        %v3952 = vsel %vm213, %v3947, %v3951
        %v3953 = vshrl.u32 %v3577, 16
        %v3955 = vrot.slane %v3953, 4
        %v3956 = vor.u32 %v3955, %v3951
        %v3957 = vrot.slane %v3956, 4
        %v3959 = vshll.u32 %v3578, 16
        %v3961 = vrot.slane %v3959, 5
        %v3962 = vsel %vm213, %v3957, %v3961
        %s3963 = scalar_lea.vmem %s1, 14
        %v3964 = vld [vmem:[%s3963] sm:$0x3]
        %v3965 = vunpack.c.l.b16 %v3592
        %v3966 = vunpack.c.l.b16 %v3602
        %v3967 = vunpack.c.l.b16 %v3616
        %v3968 = vunpack.c.l.b16 %v3626
        %v3969 = vunpack.c.l.b16 %v3640
        %v3970 = vunpack.c.l.b16 %v3650
        %v3971 = vunpack.c.l.b16 %v3664
        %v3972 = vunpack.c.l.b16 %v3674
        %v3973 = vunpack.c.l.b16 %v3688
        %v3974 = vunpack.c.l.b16 %v3698
        %v3975 = vunpack.c.l.b16 %v3712
        %v3976 = vunpack.c.l.b16 %v3722
        %v3977 = vunpack.c.l.b16 %v3736
        %v3978 = vunpack.c.l.b16 %v3746
        %v3979 = vunpack.c.l.b16 %v3760
        %v3980 = vunpack.c.l.b16 %v3770
        %v3981 = vunpack.c.l.b16 %v3784
        %v3982 = vunpack.c.l.b16 %v3794
        %v3983 = vunpack.c.l.b16 %v3808
        %v3984 = vunpack.c.l.b16 %v3818
        %v3985 = vunpack.c.l.b16 %v3832
        %v3986 = vunpack.c.l.b16 %v3842
        %v3987 = vunpack.c.l.b16 %v3856
        %v3988 = vunpack.c.l.b16 %v3866
        %v3989 = vunpack.c.l.b16 %v3880
        %v3990 = vunpack.c.l.b16 %v3890
        %v3991 = vunpack.c.l.b16 %v3904
        %v3992 = vunpack.c.l.b16 %v3914
        %v3993 = vunpack.c.l.b16 %v3928
        %v3994 = vunpack.c.l.b16 %v3938
        %v3995 = vunpack.c.l.b16 %v3952
        %v3996 = vunpack.c.l.b16 %v3962
        %v3997 = vpack.c.b16 %v3966, %v3965
        %v3998 = vpack.c.b16 %v3968, %v3967
        %v3999 = vpack.c.b16 %v3970, %v3969
        %v4000 = vpack.c.b16 %v3972, %v3971
        %v4001 = vpack.c.b16 %v3974, %v3973
        %v4002 = vpack.c.b16 %v3976, %v3975
        %v4003 = vpack.c.b16 %v3978, %v3977
        %v4004 = vpack.c.b16 %v3980, %v3979
        %v4005 = vpack.c.b16 %v3982, %v3981
        %v4006 = vpack.c.b16 %v3984, %v3983
        %v4007 = vpack.c.b16 %v3986, %v3985
        %v4008 = vpack.c.b16 %v3988, %v3987
        %v4009 = vpack.c.b16 %v3990, %v3989
        %v4010 = vpack.c.b16 %v3992, %v3991
        %v4011 = vpack.c.b16 %v3994, %v3993
        %v4012 = vpack.c.b16 %v3996, %v3995
        %v4014 = vsel %vm648, %v3997, 0
        %v4017 = vsel %vm648, %v3998, 0
        %v4020 = vsel %vm648, %v3999, 0
        %v4023 = vsel %vm648, %v4000, 0
        %v4026 = vsel %vm648, %v4001, 0
        %v4029 = vsel %vm648, %v4002, 0
        %v4032 = vsel %vm648, %v4003, 0
        %v4035 = vsel %vm648, %v4004, 0
        %v4038 = vsel %vm648, %v4005, 0
        %v4041 = vsel %vm648, %v4006, 0
        %v4044 = vsel %vm648, %v4007, 0
        %v4047 = vsel %vm648, %v4008, 0
        %v4050 = vsel %vm648, %v4009, 0
        %v4053 = vsel %vm648, %v4010, 0
        %v4056 = vsel %vm648, %v4011, 0
        %v4059 = vsel %vm648, %v4012, 0
        %v4062 = vsel %vm697, %v3964, 0
        %4064 = vmatprep.subr.bf16.mxu0 0
        %4065 = vmatpush1.bf16.msra.mxu0 %v4062
        %4066 = vmatprep.subr.bf16.mxu0 0
        %4067 = vmatpush1.bf16.msra.mxu0 0
        %4068 = vmatprep.subr.bf16.mxu0 0
        %4069 = vmatpush1.bf16.msra.mxu0 0
        %4070 = vmatprep.subr.bf16.mxu0 0
        %4071 = vmatpush1.bf16.msra.mxu0 0
        %4072 = vmatprep.subr.bf16.mxu0 0
        %4073 = vmatpush1.bf16.msra.mxu0 0
        %4074 = vmatprep.subr.bf16.mxu0 0
        %4075 = vmatpush1.bf16.msra.mxu0 0
        %4076 = vmatprep.subr.bf16.mxu0 0
        %4077 = vmatpush1.bf16.msra.mxu0 0
        %4078 = vmatprep.subr.bf16.mxu0 0
        %4079 = vmatpush1.bf16.msra.mxu0 0
        %4080 = vmatprep.subr.bf16.mxu0 0
        %4081 = vmatpush1.bf16.msra.mxu0 0
        %4082 = vmatprep.subr.bf16.mxu0 0
        %4083 = vmatpush1.bf16.msra.mxu0 0
        %4084 = vmatprep.subr.bf16.mxu0 0
        %4085 = vmatpush1.bf16.msra.mxu0 0
        %4086 = vmatprep.subr.bf16.mxu0 0
        %4087 = vmatpush1.bf16.msra.mxu0 0
        %4088 = vmatprep.subr.bf16.mxu0 0
        %4089 = vmatpush1.bf16.msra.mxu0 0
        %4090 = vmatprep.subr.bf16.mxu0 0
        %4091 = vmatpush1.bf16.msra.mxu0 0
        %4092 = vmatprep.subr.bf16.mxu0 0
        %4093 = vmatpush1.bf16.msra.mxu0 0
        %4094 = vmatprep.subr.bf16.mxu0 0
        %4095 = vmatpush1.bf16.msra.mxu0 0
        %4096 = vmatprep.mubr.bf16.mxu0 0
        %4097 = vmatmul.mubr.bf16.gmra.mrb[0].mxu0 %v4014
        %v4098 = vpop.f32.mrb[0].mxu0
        %v4099 = vadd.f32 0.0, %v4098
        %v4100 = vpop.f32.mrb[0].mxu0
        %v4101 = vpop.f32.mrb[0].mxu0
        %v4102 = vadd.f32 0.0, %v4101
        %v4103 = vpop.f32.mrb[0].mxu0
        %4104 = vmatprep.mubr.bf16.mxu0 0
        %4105 = vmatmul.mubr.bf16.gmra.mrb[0].mxu0 %v4017
        %v4106 = vpop.f32.mrb[0].mxu0
        %v4107 = vadd.f32 0.0, %v4106
        %v4108 = vpop.f32.mrb[0].mxu0
        %v4109 = vpop.f32.mrb[0].mxu0
        %v4110 = vadd.f32 0.0, %v4109
        %v4111 = vpop.f32.mrb[0].mxu0
        %4112 = vmatprep.mubr.bf16.mxu0 0
        %4113 = vmatmul.mubr.bf16.gmra.mrb[0].mxu0 %v4020
        %v4114 = vpop.f32.mrb[0].mxu0
        %v4115 = vadd.f32 0.0, %v4114
        %v4116 = vpop.f32.mrb[0].mxu0
        %v4117 = vpop.f32.mrb[0].mxu0
        %v4118 = vadd.f32 0.0, %v4117
        %v4119 = vpop.f32.mrb[0].mxu0
        %4120 = vmatprep.mubr.bf16.mxu0 0
        %4121 = vmatmul.mubr.bf16.gmra.mrb[0].mxu0 %v4023
        %v4122 = vpop.f32.mrb[0].mxu0
        %v4123 = vadd.f32 0.0, %v4122
        %v4124 = vpop.f32.mrb[0].mxu0
        %v4125 = vpop.f32.mrb[0].mxu0
        %v4126 = vadd.f32 0.0, %v4125
        %v4127 = vpop.f32.mrb[0].mxu0
        %4128 = vmatprep.mubr.bf16.mxu0 0
        %4129 = vmatmul.mubr.bf16.gmra.mrb[0].mxu0 %v4026
        %v4130 = vpop.f32.mrb[0].mxu0
        %v4131 = vadd.f32 0.0, %v4130
        %v4132 = vpop.f32.mrb[0].mxu0
        %v4133 = vpop.f32.mrb[0].mxu0
        %v4134 = vadd.f32 0.0, %v4133
        %v4135 = vpop.f32.mrb[0].mxu0
        %4136 = vmatprep.mubr.bf16.mxu0 0
        %4137 = vmatmul.mubr.bf16.gmra.mrb[0].mxu0 %v4029
        %v4138 = vpop.f32.mrb[0].mxu0
        %v4139 = vadd.f32 0.0, %v4138
        %v4140 = vpop.f32.mrb[0].mxu0
        %v4141 = vpop.f32.mrb[0].mxu0
        %v4142 = vadd.f32 0.0, %v4141
        %v4143 = vpop.f32.mrb[0].mxu0
        %4144 = vmatprep.mubr.bf16.mxu0 0
        %4145 = vmatmul.mubr.bf16.gmra.mrb[0].mxu0 %v4032
        %v4146 = vpop.f32.mrb[0].mxu0
        %v4147 = vadd.f32 0.0, %v4146
        %v4148 = vpop.f32.mrb[0].mxu0
        %v4149 = vpop.f32.mrb[0].mxu0
        %v4150 = vadd.f32 0.0, %v4149
        %v4151 = vpop.f32.mrb[0].mxu0
        %4152 = vmatprep.mubr.bf16.mxu0 0
        %4153 = vmatmul.mubr.bf16.gmra.mrb[0].mxu0 %v4035
        %v4154 = vpop.f32.mrb[0].mxu0
        %v4155 = vadd.f32 0.0, %v4154
        %v4156 = vpop.f32.mrb[0].mxu0
        %v4157 = vpop.f32.mrb[0].mxu0
        %v4158 = vadd.f32 0.0, %v4157
        %v4159 = vpop.f32.mrb[0].mxu0
        %4160 = vmatprep.mubr.bf16.mxu0 0
        %4161 = vmatmul.mubr.bf16.gmra.mrb[0].mxu0 %v4038
        %v4162 = vpop.f32.mrb[0].mxu0
        %v4163 = vadd.f32 0.0, %v4162
        %v4164 = vpop.f32.mrb[0].mxu0
        %v4165 = vpop.f32.mrb[0].mxu0
        %v4166 = vadd.f32 0.0, %v4165
        %v4167 = vpop.f32.mrb[0].mxu0
        %4168 = vmatprep.mubr.bf16.mxu0 0
        %4169 = vmatmul.mubr.bf16.gmra.mrb[0].mxu0 %v4041
        %v4170 = vpop.f32.mrb[0].mxu0
        %v4171 = vadd.f32 0.0, %v4170
        %v4172 = vpop.f32.mrb[0].mxu0
        %v4173 = vpop.f32.mrb[0].mxu0
        %v4174 = vadd.f32 0.0, %v4173
        %v4175 = vpop.f32.mrb[0].mxu0
        %4176 = vmatprep.mubr.bf16.mxu0 0
        %4177 = vmatmul.mubr.bf16.gmra.mrb[0].mxu0 %v4044
        %v4178 = vpop.f32.mrb[0].mxu0
        %v4179 = vadd.f32 0.0, %v4178
        %v4180 = vpop.f32.mrb[0].mxu0
        %v4181 = vpop.f32.mrb[0].mxu0
        %v4182 = vadd.f32 0.0, %v4181
        %v4183 = vpop.f32.mrb[0].mxu0
        %4184 = vmatprep.mubr.bf16.mxu0 0
        %4185 = vmatmul.mubr.bf16.gmra.mrb[0].mxu0 %v4047
        %v4186 = vpop.f32.mrb[0].mxu0
        %v4187 = vadd.f32 0.0, %v4186
        %v4188 = vpop.f32.mrb[0].mxu0
        %v4189 = vpop.f32.mrb[0].mxu0
        %v4190 = vadd.f32 0.0, %v4189
        %v4191 = vpop.f32.mrb[0].mxu0
        %4192 = vmatprep.mubr.bf16.mxu0 0
        %4193 = vmatmul.mubr.bf16.gmra.mrb[0].mxu0 %v4050
        %v4194 = vpop.f32.mrb[0].mxu0
        %v4195 = vadd.f32 0.0, %v4194
        %v4196 = vpop.f32.mrb[0].mxu0
        %v4197 = vpop.f32.mrb[0].mxu0
        %v4198 = vadd.f32 0.0, %v4197
        %v4199 = vpop.f32.mrb[0].mxu0
        %4200 = vmatprep.mubr.bf16.mxu0 0
        %4201 = vmatmul.mubr.bf16.gmra.mrb[0].mxu0 %v4053
        %v4202 = vpop.f32.mrb[0].mxu0
        %v4203 = vadd.f32 0.0, %v4202
        %v4204 = vpop.f32.mrb[0].mxu0
        %v4205 = vpop.f32.mrb[0].mxu0
        %v4206 = vadd.f32 0.0, %v4205
        %v4207 = vpop.f32.mrb[0].mxu0
        %4208 = vmatprep.mubr.bf16.mxu0 0
        %4209 = vmatmul.mubr.bf16.gmra.mrb[0].mxu0 %v4056
        %v4210 = vpop.f32.mrb[0].mxu0
        %v4211 = vadd.f32 0.0, %v4210
        %v4212 = vpop.f32.mrb[0].mxu0
        %v4213 = vpop.f32.mrb[0].mxu0
        %v4214 = vadd.f32 0.0, %v4213
        %v4215 = vpop.f32.mrb[0].mxu0
        %4216 = vmatprep.mubr.bf16.mxu0 0
        %4217 = vmatmul.mubr.bf16.gmra.mrb[0].mxu0 %v4059
        %v4218 = vpop.f32.mrb[0].mxu0
        %v4219 = vadd.f32 0.0, %v4218
        %v4220 = vpop.f32.mrb[0].mxu0
        %v4221 = vpop.f32.mrb[0].mxu0
        %v4222 = vadd.f32 0.0, %v4221
        %v4223 = vpop.f32.mrb[0].mxu0
        %4224 = vdwg.mxu0
        %v4225 = vadd.f32 %v3499, %v4099
        %v4226 = vadd.f32 %v3500, %v4102
        %v4227 = vadd.f32 %v3501, %v4107
        %v4228 = vadd.f32 %v3502, %v4110
        %v4229 = vadd.f32 %v3503, %v4115
        %v4230 = vadd.f32 %v3504, %v4118
        %v4231 = vadd.f32 %v3505, %v4123
        %v4232 = vadd.f32 %v3506, %v4126
        %v4233 = vadd.f32 %v3507, %v4131
        %v4234 = vadd.f32 %v3508, %v4134
        %v4235 = vadd.f32 %v3509, %v4139
        %v4236 = vadd.f32 %v3510, %v4142
        %v4237 = vadd.f32 %v3511, %v4147
        %v4238 = vadd.f32 %v3512, %v4150
        %v4239 = vadd.f32 %v3513, %v4155
        %v4240 = vadd.f32 %v3514, %v4158
        %v4241 = vadd.f32 %v3515, %v4163
        %v4242 = vadd.f32 %v3516, %v4166
        %v4243 = vadd.f32 %v3517, %v4171
        %v4244 = vadd.f32 %v3518, %v4174
        %v4245 = vadd.f32 %v3519, %v4179
        %v4246 = vadd.f32 %v3520, %v4182
        %v4247 = vadd.f32 %v3521, %v4187
        %v4248 = vadd.f32 %v3522, %v4190
        %v4249 = vadd.f32 %v3523, %v4195
        %v4250 = vadd.f32 %v3524, %v4198
        %v4251 = vadd.f32 %v3525, %v4203
        %v4252 = vadd.f32 %v3526, %v4206
        %v4253 = vadd.f32 %v3527, %v4211
        %v4254 = vadd.f32 %v3528, %v4214
        %v4255 = vadd.f32 %v3529, %v4219
        %v4256 = vadd.f32 %v3530, %v4222
        %v4257 = vld [vmem:[%s3172] sm:$0xe]
        %v4258 = vld [vmem:[%s3172 + $0xc] sm:$0xe]
        %v4259 = vld [vmem:[%s3172 + $0x18] sm:$0xe]
        %v4260 = vld [vmem:[%s3172 + $0x24] sm:$0xe]
        %v4261 = vld [vmem:[%s3172 + $0x30] sm:$0xe]
        %v4262 = vld [vmem:[%s3172 + $0x3c] sm:$0xe]
        %v4263 = vld [vmem:[%s3172 + $0x48] sm:$0xe]
        %v4264 = vld [vmem:[%s3172 + $0x54] sm:$0xe]
        %v4265 = vld [vmem:[%s3172 + $0x60] sm:$0xe]
        %v4266 = vld [vmem:[%s3172 + $0x6c] sm:$0xe]
        %v4267 = vld [vmem:[%s3172 + $0x78] sm:$0xe]
        %v4268 = vld [vmem:[%s3172 + $0x84] sm:$0xe]
        %v4269 = vld [vmem:[%s3172 + $0x90] sm:$0xe]
        %v4270 = vld [vmem:[%s3172 + $0x9c] sm:$0xe]
        %v4271 = vld [vmem:[%s3172 + $0xa8] sm:$0xe]
        %v4272 = vld [vmem:[%s3172 + $0xb4] sm:$0xe]
        %v4321 = vrot.slane %v4257, 5
        %v4322 = vrot.slane %v4321, 4
        %v4323 = vrot.slane %v3532, 5
        %v4324 = vsel %vm1204, %v4322, %v4323
        %v4325 = vrot.slane %v4323, 4
        %v4326 = vrot.slane %v3533, 5
        %v4327 = vsel %vm1204, %v4325, %v4326
        %v4328 = vrot.slane %v4258, 5
        %v4329 = vrot.slane %v4328, 4
        %v4330 = vrot.slane %v3535, 5
        %v4331 = vsel %vm1204, %v4329, %v4330
        %v4332 = vrot.slane %v4330, 4
        %v4333 = vrot.slane %v3536, 5
        %v4334 = vsel %vm1204, %v4332, %v4333
        %v4335 = vrot.slane %v4259, 5
        %v4336 = vrot.slane %v4335, 4
        %v4337 = vrot.slane %v3538, 5
        %v4338 = vsel %vm1204, %v4336, %v4337
        %v4339 = vrot.slane %v4337, 4
        %v4340 = vrot.slane %v3539, 5
        %v4341 = vsel %vm1204, %v4339, %v4340
        %v4342 = vrot.slane %v4260, 5
        %v4343 = vrot.slane %v4342, 4
        %v4344 = vrot.slane %v3541, 5
        %v4345 = vsel %vm1204, %v4343, %v4344
        %v4346 = vrot.slane %v4344, 4
        %v4347 = vrot.slane %v3542, 5
        %v4348 = vsel %vm1204, %v4346, %v4347
        %v4349 = vrot.slane %v4261, 5
        %v4350 = vrot.slane %v4349, 4
        %v4351 = vrot.slane %v3544, 5
        %v4352 = vsel %vm1204, %v4350, %v4351
        %v4353 = vrot.slane %v4351, 4
        %v4354 = vrot.slane %v3545, 5
        %v4355 = vsel %vm1204, %v4353, %v4354
        %v4356 = vrot.slane %v4262, 5
        %v4357 = vrot.slane %v4356, 4
        %v4358 = vrot.slane %v3547, 5
        %v4359 = vsel %vm1204, %v4357, %v4358
        %v4360 = vrot.slane %v4358, 4
        %v4361 = vrot.slane %v3548, 5
        %v4362 = vsel %vm1204, %v4360, %v4361
        %v4363 = vrot.slane %v4263, 5
        %v4364 = vrot.slane %v4363, 4
        %v4365 = vrot.slane %v3550, 5
        %v4366 = vsel %vm1204, %v4364, %v4365
        %v4367 = vrot.slane %v4365, 4
        %v4368 = vrot.slane %v3551, 5
        %v4369 = vsel %vm1204, %v4367, %v4368
        %v4370 = vrot.slane %v4264, 5
        %v4371 = vrot.slane %v4370, 4
        %v4372 = vrot.slane %v3553, 5
        %v4373 = vsel %vm1204, %v4371, %v4372
        %v4374 = vrot.slane %v4372, 4
        %v4375 = vrot.slane %v3554, 5
        %v4376 = vsel %vm1204, %v4374, %v4375
        %v4377 = vrot.slane %v4265, 5
        %v4378 = vrot.slane %v4377, 4
        %v4379 = vrot.slane %v3556, 5
        %v4380 = vsel %vm1204, %v4378, %v4379
        %v4381 = vrot.slane %v4379, 4
        %v4382 = vrot.slane %v3557, 5
        %v4383 = vsel %vm1204, %v4381, %v4382
        %v4384 = vrot.slane %v4266, 5
        %v4385 = vrot.slane %v4384, 4
        %v4386 = vrot.slane %v3559, 5
        %v4387 = vsel %vm1204, %v4385, %v4386
        %v4388 = vrot.slane %v4386, 4
        %v4389 = vrot.slane %v3560, 5
        %v4390 = vsel %vm1204, %v4388, %v4389
        %v4391 = vrot.slane %v4267, 5
        %v4392 = vrot.slane %v4391, 4
        %v4393 = vrot.slane %v3562, 5
        %v4394 = vsel %vm1204, %v4392, %v4393
        %v4395 = vrot.slane %v4393, 4
        %v4396 = vrot.slane %v3563, 5
        %v4397 = vsel %vm1204, %v4395, %v4396
        %v4398 = vrot.slane %v4268, 5
        %v4399 = vrot.slane %v4398, 4
        %v4400 = vrot.slane %v3565, 5
        %v4401 = vsel %vm1204, %v4399, %v4400
        %v4402 = vrot.slane %v4400, 4
        %v4403 = vrot.slane %v3566, 5
        %v4404 = vsel %vm1204, %v4402, %v4403
        %v4405 = vrot.slane %v4269, 5
        %v4406 = vrot.slane %v4405, 4
        %v4407 = vrot.slane %v3568, 5
        %v4408 = vsel %vm1204, %v4406, %v4407
        %v4409 = vrot.slane %v4407, 4
        %v4410 = vrot.slane %v3569, 5
        %v4411 = vsel %vm1204, %v4409, %v4410
        %v4412 = vrot.slane %v4270, 5
        %v4413 = vrot.slane %v4412, 4
        %v4414 = vrot.slane %v3571, 5
        %v4415 = vsel %vm1204, %v4413, %v4414
        %v4416 = vrot.slane %v4414, 4
        %v4417 = vrot.slane %v3572, 5
        %v4418 = vsel %vm1204, %v4416, %v4417
        %v4419 = vrot.slane %v4271, 5
        %v4420 = vrot.slane %v4419, 4
        %v4421 = vrot.slane %v3574, 5
        %v4422 = vsel %vm1204, %v4420, %v4421
        %v4423 = vrot.slane %v4421, 4
        %v4424 = vrot.slane %v3575, 5
        %v4425 = vsel %vm1204, %v4423, %v4424
        %v4426 = vrot.slane %v4272, 5
        %v4427 = vrot.slane %v4426, 4
        %v4428 = vrot.slane %v3577, 5
        %v4429 = vsel %vm1204, %v4427, %v4428
        %v4430 = vrot.slane %v4428, 4
        %v4431 = vrot.slane %v3578, 5
        %v4432 = vsel %vm1204, %v4430, %v4431
        %s4433 = scalar_lea.vmem %s1, 16
        %v4434 = vld [vmem:[%s4433] sm:$0x3]
        %v4435 = vunpack.c.l.b16 %v4324
        %v4436 = vunpack.c.l.b16 %v4327
        %v4437 = vunpack.c.l.b16 %v4331
        %v4438 = vunpack.c.l.b16 %v4334
        %v4439 = vunpack.c.l.b16 %v4338
        %v4440 = vunpack.c.l.b16 %v4341
        %v4441 = vunpack.c.l.b16 %v4345
        %v4442 = vunpack.c.l.b16 %v4348
        %v4443 = vunpack.c.l.b16 %v4352
        %v4444 = vunpack.c.l.b16 %v4355
        %v4445 = vunpack.c.l.b16 %v4359
        %v4446 = vunpack.c.l.b16 %v4362
        %v4447 = vunpack.c.l.b16 %v4366
        %v4448 = vunpack.c.l.b16 %v4369
        %v4449 = vunpack.c.l.b16 %v4373
        %v4450 = vunpack.c.l.b16 %v4376
        %v4451 = vunpack.c.l.b16 %v4380
        %v4452 = vunpack.c.l.b16 %v4383
        %v4453 = vunpack.c.l.b16 %v4387
        %v4454 = vunpack.c.l.b16 %v4390
        %v4455 = vunpack.c.l.b16 %v4394
        %v4456 = vunpack.c.l.b16 %v4397
        %v4457 = vunpack.c.l.b16 %v4401
        %v4458 = vunpack.c.l.b16 %v4404
        %v4459 = vunpack.c.l.b16 %v4408
        %v4460 = vunpack.c.l.b16 %v4411
        %v4461 = vunpack.c.l.b16 %v4415
        %v4462 = vunpack.c.l.b16 %v4418
        %v4463 = vunpack.c.l.b16 %v4422
        %v4464 = vunpack.c.l.b16 %v4425
        %v4465 = vunpack.c.l.b16 %v4429
        %v4466 = vunpack.c.l.b16 %v4432
        %v4467 = vpack.c.b16 %v4436, %v4435
        %v4468 = vpack.c.b16 %v4438, %v4437
        %v4469 = vpack.c.b16 %v4440, %v4439
        %v4470 = vpack.c.b16 %v4442, %v4441
        %v4471 = vpack.c.b16 %v4444, %v4443
        %v4472 = vpack.c.b16 %v4446, %v4445
        %v4473 = vpack.c.b16 %v4448, %v4447
        %v4474 = vpack.c.b16 %v4450, %v4449
        %v4475 = vpack.c.b16 %v4452, %v4451
        %v4476 = vpack.c.b16 %v4454, %v4453
        %v4477 = vpack.c.b16 %v4456, %v4455
        %v4478 = vpack.c.b16 %v4458, %v4457
        %v4479 = vpack.c.b16 %v4460, %v4459
        %v4480 = vpack.c.b16 %v4462, %v4461
        %v4481 = vpack.c.b16 %v4464, %v4463
        %v4482 = vpack.c.b16 %v4466, %v4465
        %v4484 = vsel %vm648, %v4467, 0
        %v4487 = vsel %vm648, %v4468, 0
        %v4490 = vsel %vm648, %v4469, 0
        %v4493 = vsel %vm648, %v4470, 0
        %v4496 = vsel %vm648, %v4471, 0
        %v4499 = vsel %vm648, %v4472, 0
        %v4502 = vsel %vm648, %v4473, 0
        %v4505 = vsel %vm648, %v4474, 0
        %v4508 = vsel %vm648, %v4475, 0
        %v4511 = vsel %vm648, %v4476, 0
        %v4514 = vsel %vm648, %v4477, 0
        %v4517 = vsel %vm648, %v4478, 0
        %v4520 = vsel %vm648, %v4479, 0
        %v4523 = vsel %vm648, %v4480, 0
        %v4526 = vsel %vm648, %v4481, 0
        %v4529 = vsel %vm648, %v4482, 0
        %v4532 = vsel %vm697, %v4434, 0
        %4534 = vmatprep.subr.bf16.mxu0 0
        %4535 = vmatpush1.bf16.msra.mxu0 %v4532
        %4536 = vmatprep.subr.bf16.mxu0 0
        %4537 = vmatpush1.bf16.msra.mxu0 0
        %4538 = vmatprep.subr.bf16.mxu0 0
        %4539 = vmatpush1.bf16.msra.mxu0 0
        %4540 = vmatprep.subr.bf16.mxu0 0
        %4541 = vmatpush1.bf16.msra.mxu0 0
        %4542 = vmatprep.subr.bf16.mxu0 0
        %4543 = vmatpush1.bf16.msra.mxu0 0
        %4544 = vmatprep.subr.bf16.mxu0 0
        %4545 = vmatpush1.bf16.msra.mxu0 0
        %4546 = vmatprep.subr.bf16.mxu0 0
        %4547 = vmatpush1.bf16.msra.mxu0 0
        %4548 = vmatprep.subr.bf16.mxu0 0
        %4549 = vmatpush1.bf16.msra.mxu0 0
        %4550 = vmatprep.subr.bf16.mxu0 0
        %4551 = vmatpush1.bf16.msra.mxu0 0
        %4552 = vmatprep.subr.bf16.mxu0 0
        %4553 = vmatpush1.bf16.msra.mxu0 0
        %4554 = vmatprep.subr.bf16.mxu0 0
        %4555 = vmatpush1.bf16.msra.mxu0 0
        %4556 = vmatprep.subr.bf16.mxu0 0
        %4557 = vmatpush1.bf16.msra.mxu0 0
        %4558 = vmatprep.subr.bf16.mxu0 0
        %4559 = vmatpush1.bf16.msra.mxu0 0
        %4560 = vmatprep.subr.bf16.mxu0 0
        %4561 = vmatpush1.bf16.msra.mxu0 0
        %4562 = vmatprep.subr.bf16.mxu0 0
        %4563 = vmatpush1.bf16.msra.mxu0 0
        %4564 = vmatprep.subr.bf16.mxu0 0
        %4565 = vmatpush1.bf16.msra.mxu0 0
        %4566 = vmatprep.mubr.bf16.mxu0 0
        %4567 = vmatmul.mubr.bf16.gmra.mrb[0].mxu0 %v4484
        %v4568 = vpop.f32.mrb[0].mxu0
        %v4569 = vadd.f32 0.0, %v4568
        %v4570 = vpop.f32.mrb[0].mxu0
        %v4571 = vpop.f32.mrb[0].mxu0
        %v4572 = vadd.f32 0.0, %v4571
        %v4573 = vpop.f32.mrb[0].mxu0
        %4574 = vmatprep.mubr.bf16.mxu0 0
        %4575 = vmatmul.mubr.bf16.gmra.mrb[0].mxu0 %v4487
        %v4576 = vpop.f32.mrb[0].mxu0
        %v4577 = vadd.f32 0.0, %v4576
        %v4578 = vpop.f32.mrb[0].mxu0
        %v4579 = vpop.f32.mrb[0].mxu0
        %v4580 = vadd.f32 0.0, %v4579
        %v4581 = vpop.f32.mrb[0].mxu0
        %4582 = vmatprep.mubr.bf16.mxu0 0
        %4583 = vmatmul.mubr.bf16.gmra.mrb[0].mxu0 %v4490
        %v4584 = vpop.f32.mrb[0].mxu0
        %v4585 = vadd.f32 0.0, %v4584
        %v4586 = vpop.f32.mrb[0].mxu0
        %v4587 = vpop.f32.mrb[0].mxu0
        %v4588 = vadd.f32 0.0, %v4587
        %v4589 = vpop.f32.mrb[0].mxu0
        %4590 = vmatprep.mubr.bf16.mxu0 0
        %4591 = vmatmul.mubr.bf16.gmra.mrb[0].mxu0 %v4493
        %v4592 = vpop.f32.mrb[0].mxu0
        %v4593 = vadd.f32 0.0, %v4592
        %v4594 = vpop.f32.mrb[0].mxu0
        %v4595 = vpop.f32.mrb[0].mxu0
        %v4596 = vadd.f32 0.0, %v4595
        %v4597 = vpop.f32.mrb[0].mxu0
        %4598 = vmatprep.mubr.bf16.mxu0 0
        %4599 = vmatmul.mubr.bf16.gmra.mrb[0].mxu0 %v4496
        %v4600 = vpop.f32.mrb[0].mxu0
        %v4601 = vadd.f32 0.0, %v4600
        %v4602 = vpop.f32.mrb[0].mxu0
        %v4603 = vpop.f32.mrb[0].mxu0
        %v4604 = vadd.f32 0.0, %v4603
        %v4605 = vpop.f32.mrb[0].mxu0
        %4606 = vmatprep.mubr.bf16.mxu0 0
        %4607 = vmatmul.mubr.bf16.gmra.mrb[0].mxu0 %v4499
        %v4608 = vpop.f32.mrb[0].mxu0
        %v4609 = vadd.f32 0.0, %v4608
        %v4610 = vpop.f32.mrb[0].mxu0
        %v4611 = vpop.f32.mrb[0].mxu0
        %v4612 = vadd.f32 0.0, %v4611
        %v4613 = vpop.f32.mrb[0].mxu0
        %4614 = vmatprep.mubr.bf16.mxu0 0
        %4615 = vmatmul.mubr.bf16.gmra.mrb[0].mxu0 %v4502
        %v4616 = vpop.f32.mrb[0].mxu0
        %v4617 = vadd.f32 0.0, %v4616
        %v4618 = vpop.f32.mrb[0].mxu0
        %v4619 = vpop.f32.mrb[0].mxu0
        %v4620 = vadd.f32 0.0, %v4619
        %v4621 = vpop.f32.mrb[0].mxu0
        %4622 = vmatprep.mubr.bf16.mxu0 0
        %4623 = vmatmul.mubr.bf16.gmra.mrb[0].mxu0 %v4505
        %v4624 = vpop.f32.mrb[0].mxu0
        %v4625 = vadd.f32 0.0, %v4624
        %v4626 = vpop.f32.mrb[0].mxu0
        %v4627 = vpop.f32.mrb[0].mxu0
        %v4628 = vadd.f32 0.0, %v4627
        %v4629 = vpop.f32.mrb[0].mxu0
        %4630 = vmatprep.mubr.bf16.mxu0 0
        %4631 = vmatmul.mubr.bf16.gmra.mrb[0].mxu0 %v4508
        %v4632 = vpop.f32.mrb[0].mxu0
        %v4633 = vadd.f32 0.0, %v4632
        %v4634 = vpop.f32.mrb[0].mxu0
        %v4635 = vpop.f32.mrb[0].mxu0
        %v4636 = vadd.f32 0.0, %v4635
        %v4637 = vpop.f32.mrb[0].mxu0
        %4638 = vmatprep.mubr.bf16.mxu0 0
        %4639 = vmatmul.mubr.bf16.gmra.mrb[0].mxu0 %v4511
        %v4640 = vpop.f32.mrb[0].mxu0
        %v4641 = vadd.f32 0.0, %v4640
        %v4642 = vpop.f32.mrb[0].mxu0
        %v4643 = vpop.f32.mrb[0].mxu0
        %v4644 = vadd.f32 0.0, %v4643
        %v4645 = vpop.f32.mrb[0].mxu0
        %4646 = vmatprep.mubr.bf16.mxu0 0
        %4647 = vmatmul.mubr.bf16.gmra.mrb[0].mxu0 %v4514
        %v4648 = vpop.f32.mrb[0].mxu0
        %v4649 = vadd.f32 0.0, %v4648
        %v4650 = vpop.f32.mrb[0].mxu0
        %v4651 = vpop.f32.mrb[0].mxu0
        %v4652 = vadd.f32 0.0, %v4651
        %v4653 = vpop.f32.mrb[0].mxu0
        %4654 = vmatprep.mubr.bf16.mxu0 0
        %4655 = vmatmul.mubr.bf16.gmra.mrb[0].mxu0 %v4517
        %v4656 = vpop.f32.mrb[0].mxu0
        %v4657 = vadd.f32 0.0, %v4656
        %v4658 = vpop.f32.mrb[0].mxu0
        %v4659 = vpop.f32.mrb[0].mxu0
        %v4660 = vadd.f32 0.0, %v4659
        %v4661 = vpop.f32.mrb[0].mxu0
        %4662 = vmatprep.mubr.bf16.mxu0 0
        %4663 = vmatmul.mubr.bf16.gmra.mrb[0].mxu0 %v4520
        %v4664 = vpop.f32.mrb[0].mxu0
        %v4665 = vadd.f32 0.0, %v4664
        %v4666 = vpop.f32.mrb[0].mxu0
        %v4667 = vpop.f32.mrb[0].mxu0
        %v4668 = vadd.f32 0.0, %v4667
        %v4669 = vpop.f32.mrb[0].mxu0
        %4670 = vmatprep.mubr.bf16.mxu0 0
        %4671 = vmatmul.mubr.bf16.gmra.mrb[0].mxu0 %v4523
        %v4672 = vpop.f32.mrb[0].mxu0
        %v4673 = vadd.f32 0.0, %v4672
        %v4674 = vpop.f32.mrb[0].mxu0
        %v4675 = vpop.f32.mrb[0].mxu0
        %v4676 = vadd.f32 0.0, %v4675
        %v4677 = vpop.f32.mrb[0].mxu0
        %4678 = vmatprep.mubr.bf16.mxu0 0
        %4679 = vmatmul.mubr.bf16.gmra.mrb[0].mxu0 %v4526
        %v4680 = vpop.f32.mrb[0].mxu0
        %v4681 = vadd.f32 0.0, %v4680
        %v4682 = vpop.f32.mrb[0].mxu0
        %v4683 = vpop.f32.mrb[0].mxu0
        %v4684 = vadd.f32 0.0, %v4683
        %v4685 = vpop.f32.mrb[0].mxu0
        %4686 = vmatprep.mubr.bf16.mxu0 0
        %4687 = vmatmul.mubr.bf16.gmra.mrb[0].mxu0 %v4529
        %v4688 = vpop.f32.mrb[0].mxu0
        %v4689 = vadd.f32 0.0, %v4688
        %v4690 = vpop.f32.mrb[0].mxu0
        %v4691 = vpop.f32.mrb[0].mxu0
        %v4692 = vadd.f32 0.0, %v4691
        %v4693 = vpop.f32.mrb[0].mxu0
        %4694 = vdwg.mxu0
        %v4695 = vadd.f32 %v4225, %v4569
        %v4696 = vadd.f32 %v4226, %v4572
        %v4697 = vadd.f32 %v4227, %v4577
        %v4698 = vadd.f32 %v4228, %v4580
        %v4699 = vadd.f32 %v4229, %v4585
        %v4700 = vadd.f32 %v4230, %v4588
        %v4701 = vadd.f32 %v4231, %v4593
        %v4702 = vadd.f32 %v4232, %v4596
        %v4703 = vadd.f32 %v4233, %v4601
        %v4704 = vadd.f32 %v4234, %v4604
        %v4705 = vadd.f32 %v4235, %v4609
        %v4706 = vadd.f32 %v4236, %v4612
        %v4707 = vadd.f32 %v4237, %v4617
        %v4708 = vadd.f32 %v4238, %v4620
        %v4709 = vadd.f32 %v4239, %v4625
        %v4710 = vadd.f32 %v4240, %v4628
        %v4711 = vadd.f32 %v4241, %v4633
        %v4712 = vadd.f32 %v4242, %v4636
        %v4713 = vadd.f32 %v4243, %v4641
        %v4714 = vadd.f32 %v4244, %v4644
        %v4715 = vadd.f32 %v4245, %v4649
        %v4716 = vadd.f32 %v4246, %v4652
        %v4717 = vadd.f32 %v4247, %v4657
        %v4718 = vadd.f32 %v4248, %v4660
        %v4719 = vadd.f32 %v4249, %v4665
        %v4720 = vadd.f32 %v4250, %v4668
        %v4721 = vadd.f32 %v4251, %v4673
        %v4722 = vadd.f32 %v4252, %v4676
        %v4723 = vadd.f32 %v4253, %v4681
        %v4724 = vadd.f32 %v4254, %v4684
        %v4725 = vadd.f32 %v4255, %v4689
        %v4726 = vadd.f32 %v4256, %v4692
        %v4727 = vmax.f32 %v4695, 0.0
        %v4728 = vmax.f32 %v4696, 0.0
        %v4729 = vmax.f32 %v4697, 0.0
        %v4730 = vmax.f32 %v4698, 0.0
        %v4731 = vmax.f32 %v4699, 0.0
        %v4732 = vmax.f32 %v4700, 0.0
        %v4733 = vmax.f32 %v4701, 0.0
        %v4734 = vmax.f32 %v4702, 0.0
        %v4735 = vmax.f32 %v4703, 0.0
        %v4736 = vmax.f32 %v4704, 0.0
        %v4737 = vmax.f32 %v4705, 0.0
        %v4738 = vmax.f32 %v4706, 0.0
        %v4739 = vmax.f32 %v4707, 0.0
        %v4740 = vmax.f32 %v4708, 0.0
        %v4741 = vmax.f32 %v4709, 0.0
        %v4742 = vmax.f32 %v4710, 0.0
        %v4743 = vmax.f32 %v4711, 0.0
        %v4744 = vmax.f32 %v4712, 0.0
        %v4745 = vmax.f32 %v4713, 0.0
        %v4746 = vmax.f32 %v4714, 0.0
        %v4747 = vmax.f32 %v4715, 0.0
        %v4748 = vmax.f32 %v4716, 0.0
        %v4749 = vmax.f32 %v4717, 0.0
        %v4750 = vmax.f32 %v4718, 0.0
        %v4751 = vmax.f32 %v4719, 0.0
        %v4752 = vmax.f32 %v4720, 0.0
        %v4753 = vmax.f32 %v4721, 0.0
        %v4754 = vmax.f32 %v4722, 0.0
        %v4755 = vmax.f32 %v4723, 0.0
        %v4756 = vmax.f32 %v4724, 0.0
        %v4757 = vmax.f32 %v4725, 0.0
        %v4758 = vmax.f32 %v4726, 0.0
        %4759 = vxpose.xlu0.b32.start [1/16] %v4727, 128
        %4760 = vxpose.xlu0.b32.cont [2/16] %v4728, 128
        %4761 = vxpose.xlu0.b32.cont [3/16] %v4729, 128
        %4762 = vxpose.xlu0.b32.cont [4/16] %v4730, 128
        %4763 = vxpose.xlu0.b32.cont [5/16] %v4731, 128
        %4764 = vxpose.xlu0.b32.cont [6/16] %v4732, 128
        %4765 = vxpose.xlu0.b32.cont [7/16] %v4733, 128
        %4766 = vxpose.xlu0.b32.cont [8/16] %v4734, 128
        %4767 = vxpose.xlu0.b32.cont [9/16] %v4735, 128
        %4768 = vxpose.xlu0.b32.cont [10/16] %v4736, 128
        %4769 = vxpose.xlu0.b32.cont [11/16] %v4737, 128
        %4770 = vxpose.xlu0.b32.cont [12/16] %v4738, 128
        %4771 = vxpose.xlu0.b32.cont [13/16] %v4739, 128
        %4772 = vxpose.xlu0.b32.cont [14/16] %v4740, 128
        %4773 = vxpose.xlu0.b32.cont [15/16] %v4741, 128
        %4774 = vxpose.xlu0.b32.end [16/16] %v4742, 128
        %v4775 = vpop.trf.xlu0
        %v4776 = vpop.trf.xlu0
        %v4777 = vpop.trf.xlu0
        %v4778 = vpop.trf.xlu0
        %v4779 = vpop.trf.xlu0
        %v4780 = vpop.trf.xlu0
        %v4781 = vpop.trf.xlu0
        %v4782 = vpop.trf.xlu0
        %v4783 = vpop.trf.xlu0
        %v4784 = vpop.trf.xlu0
        %v4785 = vpop.trf.xlu0
        %v4786 = vpop.trf.xlu0
        %v4787 = vpop.trf.xlu0
        %v4788 = vpop.trf.xlu0
        %v4789 = vpop.trf.xlu0
        %v4790 = vpop.trf.xlu0
        %4791 = vxpose.xlu0.b32.start [1/16] %v4743, 128
        %4792 = vxpose.xlu0.b32.cont [2/16] %v4744, 128
        %4793 = vxpose.xlu0.b32.cont [3/16] %v4745, 128
        %4794 = vxpose.xlu0.b32.cont [4/16] %v4746, 128
        %4795 = vxpose.xlu0.b32.cont [5/16] %v4747, 128
        %4796 = vxpose.xlu0.b32.cont [6/16] %v4748, 128
        %4797 = vxpose.xlu0.b32.cont [7/16] %v4749, 128
        %4798 = vxpose.xlu0.b32.cont [8/16] %v4750, 128
        %4799 = vxpose.xlu0.b32.cont [9/16] %v4751, 128
        %4800 = vxpose.xlu0.b32.cont [10/16] %v4752, 128
        %4801 = vxpose.xlu0.b32.cont [11/16] %v4753, 128
        %4802 = vxpose.xlu0.b32.cont [12/16] %v4754, 128
        %4803 = vxpose.xlu0.b32.cont [13/16] %v4755, 128
        %4804 = vxpose.xlu0.b32.cont [14/16] %v4756, 128
        %4805 = vxpose.xlu0.b32.cont [15/16] %v4757, 128
        %4806 = vxpose.xlu0.b32.end [16/16] %v4758, 128
        %v4807 = vpop.trf.xlu0
        %v4808 = vpop.trf.xlu0
        %v4809 = vpop.trf.xlu0
        %v4810 = vpop.trf.xlu0
        %v4811 = vpop.trf.xlu0
        %v4812 = vpop.trf.xlu0
        %v4813 = vpop.trf.xlu0
        %v4814 = vpop.trf.xlu0
        %v4815 = vpop.trf.xlu0
        %v4816 = vpop.trf.xlu0
        %v4817 = vpop.trf.xlu0
        %v4818 = vpop.trf.xlu0
        %v4819 = vpop.trf.xlu0
        %v4820 = vpop.trf.xlu0
        %v4821 = vpop.trf.xlu0
        %v4822 = vpop.trf.xlu0
        %4823 = vst [vmem:[%s150] sm:$0xff] %v4775
        %4824 = vst [vmem:[%s150 + $0x8] sm:$0xff] %v4807
        %s4825 = sand.u32 %s85, 1
        %s4826 = scalar_lea.sflag [#allocation3], %s4825
        %s4827 = sand.u32 %s85, 1
        %s4828 = smul.addr %s4827, 16
        %s4829 = scalar_lea.vmem [#allocation2], %s4828
        // Predicated region
        $region29: #{tpu_custom_call.1} parent=27 // pred_check
          %p4830 = pneg %p95
        $region30: #{tpu_custom_call.1} parent=27 // pred_check_branch
          %4832 = sbr.rel (%p4830) target = $region32
        $region31: #{tpu_custom_call.1} parent=27 // pred_region
          %s4833 = smul.u32 2, %s21
          %s4835 = ssub.s32 256, 256
          %4836 = vsyncadd %s4826, %s4835
          %s4837 = smul.addr %s20, 2
          %s4838 = sadd.s32 %s4833, %s4837
          %s4839 = smul.addr %s4838, 128
          %s4840 = scalar_lea.hbm %s2, %s4839
          %s4842 = sshll.u32 %s4829, 4
          %s4843 = int_to_ptr.vmem [resolvable:$true] %s4842
          %4845 = dma.vmem_to_hbm [thread:$0]  %s4843, 256, %s4840, %s4826
        $region32: #{tpu_custom_call.1} parent=27 // pred_fallthru
          _
      $region28: #{tpu_custom_call.1} parent=5 // pred_fallthru
        _
      %p4846 = scmp.le.s32.totalorder 2, %s11
      // Predicated region
      $region33: #{tpu_custom_call.1} parent=5 // pred_check
        %p4847 = pneg %p4846
      $region34: #{tpu_custom_call.1} parent=5 // pred_check_branch
        %4849 = sbr.rel (%p4847) target = $region36
      $region35: #{tpu_custom_call.1} parent=5 // pred_region
        %s4850 = ssub.s32 %s11, 2
        // Predicated region
        $region37: #{tpu_custom_call.1} parent=35 // pred_check
          %p4851 = pneg %p101
        $region38: #{tpu_custom_call.1} parent=35 // pred_check_branch
          %4853 = sbr.rel (%p4851) target = $region40
        $region39: #{tpu_custom_call.1} parent=35 // pred_region
          %s4854 = sand.u32 %s86, 1
          %s4855 = scalar_lea.sflag [#allocation3], %s4854
          %s4856 = sand.u32 %s86, 1
          %s4857 = smul.addr %s4856, 16
          %s4858 = scalar_lea.vmem [#allocation2], %s4857
          %4859 = dma.done %s4855, 256
        $region40: #{tpu_custom_call.1} parent=35 // pred_fallthru
          _
      $region36: #{tpu_custom_call.1} parent=5 // pred_fallthru
        _
    $region6: #{tpu_custom_call.1} parent=1 // loop_footer
      %s15 = sadd.s32 1, %s11
    $region7: #{tpu_custom_call.1} parent=1 // loop_footer_branch
      %10 = sbr.rel target = $region3
    $region8: #{tpu_custom_call.1} parent=1 // loop_exit
      _
    %4860 = vsyncpa [#allocation3], 1
    %s4861 = scalar_lea.sflag [#allocation3], 1
    %4862 = vsyncpa %s4861, 1

</llo_original>
